<compile_context>
chip_gen: v7x
topology: tpu7x:2x2x1
jax: 0.10.0
libtpu: 0.0.40
codegen_flags: <defaults>
</compile_context>

<pallas_src>
import functools

import jax
import jax.numpy as jnp
from jax import lax
from jax.experimental import pallas as pl
from jax.experimental.pallas import tpu as pltpu

EPS = 1e-5
ROW_TILE = 256  # rows per block for the fused pointwise kernel (>=2 grid steps)


# ----------------------------------------------------------------------------
# Kernel 1: fused conv_i1 + conv_i2 + residual + BN/ReLU of conv_m1
# ----------------------------------------------------------------------------
def _fused_pw_kernel(x_ref, s1_ref, b1_ref, w1_ref, s2_ref, b2_ref, w2_ref,
                     s3_ref, b3_ref, out_ref):
    x = x_ref[...]
    a1 = jnp.maximum(x * s1_ref[...] + b1_ref[...], 0.0)
    h1 = jnp.dot(a1.astype(jnp.bfloat16), w1_ref[...],
                 preferred_element_type=jnp.float32)
    a2 = jnp.maximum(h1 * s2_ref[...] + b2_ref[...], 0.0)
    y = jnp.dot(a2.astype(jnp.bfloat16), w2_ref[...],
                preferred_element_type=jnp.float32)
    x_in = x + y
    out_ref[...] = jnp.maximum(x_in * s3_ref[...] + b3_ref[...], 0.0)


def fused_pointwise(x2, s1, b1, w1, s2, b2, w2, s3, b3, tm=ROW_TILE):
    M, C = x2.shape
    Cix = w1.shape[1]
    gm = pl.cdiv(M, tm)
    Mp = gm * tm
    xp = x2 if Mp == M else jnp.pad(x2, ((0, Mp - M), (0, 0)))
    out = pl.pallas_call(
        _fused_pw_kernel,
        out_shape=jax.ShapeDtypeStruct((Mp, C), jnp.float32),
        grid=(gm,),
        in_specs=[
            pl.BlockSpec((tm, C), lambda i: (i, 0)),
            pl.BlockSpec((1, C), lambda i: (0, 0)),
            pl.BlockSpec((1, C), lambda i: (0, 0)),
            pl.BlockSpec((C, Cix), lambda i: (0, 0)),
            pl.BlockSpec((1, Cix), lambda i: (0, 0)),
            pl.BlockSpec((1, Cix), lambda i: (0, 0)),
            pl.BlockSpec((Cix, C), lambda i: (0, 0)),
            pl.BlockSpec((1, C), lambda i: (0, 0)),
            pl.BlockSpec((1, C), lambda i: (0, 0)),
        ],
        out_specs=pl.BlockSpec((tm, C), lambda i: (i, 0)),
        compiler_params=pltpu.CompilerParams(dimension_semantics=("parallel",)),
    )(xp, s1.reshape(1, C), b1.reshape(1, C), w1,
      s2.reshape(1, Cix), b2.reshape(1, Cix), w2,
      s3.reshape(1, C), b3.reshape(1, C))
    return out if Mp == M else out[:M]


# ----------------------------------------------------------------------------
# Kernel 2: conv_m1 (3x3x3, pad 1,1,1) with in-VMEM im2col + fused BN/ReLU of
# conv_m2.  One output temporal plane per grid step; halo planes via index_map.
# ----------------------------------------------------------------------------
def _conv_m1_kernel(p0_ref, p1_ref, p2_ref, w_ref, s_ref, b_ref, out_ref,
                    patch_ref, *, H, W, C):
    planes = (p0_ref, p1_ref, p2_ref)
    HW = H * W
    for it in range(3):
        for ih in range(3):
            for iw in range(3):
                k = (it * 3 + ih) * 3 + iw
                tap = planes[it][ih:ih + H, iw:iw + W, :]        # (H, W, C) f32
                patch_ref[:, k * C:(k + 1) * C] = tap.reshape(HW, C)
    acc = jnp.dot(patch_ref[...].astype(jnp.bfloat16), w_ref[...],
                  preferred_element_type=jnp.float32)            # (HW, Cmid)
    out_ref[...] = jnp.maximum(acc * s_ref[...] + b_ref[...], 0.0)


def conv_m1_fused(a3p, w3, s4, b4, *, H, W):
    N, Tp, Hp, Wp, C = a3p.shape
    T = Tp - 2
    Cmid = w3.shape[1]
    HW = H * W
    kernel = functools.partial(_conv_m1_kernel, H=H, W=W, C=C)
    plane_specs = [
        pl.BlockSpec((None, None, Hp, Wp, C),
                     (lambda n, t, it=it: (n, t + it, 0, 0, 0)))
        for it in range(3)
    ]
    return pl.pallas_call(
        kernel,
        out_shape=jax.ShapeDtypeStruct((N, T, HW, Cmid), jnp.float32),
        grid=(N, T),
        in_specs=plane_specs + [
            pl.BlockSpec((27 * C, Cmid), lambda n, t: (0, 0)),
            pl.BlockSpec((1, Cmid), lambda n, t: (0, 0)),
            pl.BlockSpec((1, Cmid), lambda n, t: (0, 0)),
        ],
        out_specs=pl.BlockSpec((None, None, HW, Cmid), lambda n, t: (n, t, 0, 0)),
        scratch_shapes=[pltpu.VMEM((HW, 27 * C), jnp.float32)],
        compiler_params=pltpu.CompilerParams(
            dimension_semantics=("parallel", "parallel")),
    )(a3p, a3p, a3p, w3, s4.reshape(1, Cmid), b4.reshape(1, Cmid))


# ----------------------------------------------------------------------------
# Kernel 3: conv_m2 (1x3x3, pad 0,1,1) with in-VMEM im2col + fused residual +x
# ----------------------------------------------------------------------------
def _conv_m2_kernel(p_ref, w_ref, res_ref, out_ref, patch_ref, *, H, W, C):
    HW = H * W
    for ih in range(3):
        for iw in range(3):
            k = ih * 3 + iw
            tap = p_ref[ih:ih + H, iw:iw + W, :]                 # (H, W, Cmid)
            patch_ref[:, k * C:(k + 1) * C] = tap.reshape(HW, C)
    acc = jnp.dot(patch_ref[...].astype(jnp.bfloat16), w_ref[...],
                  preferred_element_type=jnp.float32)            # (HW, Cout)
    out_ref[...] = acc + res_ref[...]


def conv_m2_fused(a4p, w4, xres, *, H, W):
    N, T, Hp, Wp, Cmid = a4p.shape
    Cout = w4.shape[1]
    HW = H * W
    kernel = functools.partial(_conv_m2_kernel, H=H, W=W, C=Cmid)
    return pl.pallas_call(
        kernel,
        out_shape=jax.ShapeDtypeStruct((N, T, HW, Cout), jnp.float32),
        grid=(N, T),
        in_specs=[
            pl.BlockSpec((None, None, Hp, Wp, Cmid), lambda n, t: (n, t, 0, 0, 0)),
            pl.BlockSpec((9 * Cmid, Cout), lambda n, t: (0, 0)),
            pl.BlockSpec((None, None, HW, Cout), lambda n, t: (n, t, 0, 0)),
        ],
        out_specs=pl.BlockSpec((None, None, HW, Cout), lambda n, t: (n, t, 0, 0)),
        scratch_shapes=[pltpu.VMEM((HW, 9 * Cmid), jnp.float32)],
        compiler_params=pltpu.CompilerParams(
            dimension_semantics=("parallel", "parallel")),
    )(a4p, w4, xres)


# ----------------------------------------------------------------------------
# Parameters (deterministic synthetic init; shapes from MF_UNIT.__init__)
# ----------------------------------------------------------------------------
def init_bn_conv(key, cin, cout, kshape):
    k1, k2, k3, k4, k5 = jax.random.split(key, 5)
    return dict(
        gamma=1.0 + 0.1 * jax.random.normal(k1, (cin,), jnp.float32),
        beta=0.1 * jax.random.normal(k2, (cin,), jnp.float32),
        mean=0.1 * jax.random.normal(k3, (cin,), jnp.float32),
        var=jax.nn.softplus(jax.random.normal(k4, (cin,), jnp.float32)) + 0.5,
        w=0.1 * jax.random.normal(k5, (cout, cin) + kshape, jnp.float32),
    )


def fold_bn(p):
    scale = p["gamma"] * lax.rsqrt(p["var"] + EPS)
    shift = p["beta"] - p["mean"] * scale
    return scale, shift


# ----------------------------------------------------------------------------
# MF_UNIT forward (Pallas)
# ----------------------------------------------------------------------------
def mf_unit_pallas(x_ncdhw, params):
    # TODO(synk): first_block=True (conv_w1), stride != 1 and grouped (g > 1)
    # conv paths are not exercised by this config and are not implemented.
    N, C, T, H, W = x_ncdhw.shape
    # TODO(synk): in a full network keep activations channels-last end-to-end so
    # these entry/exit NCDHW<->NDHWC transposes (2 extra HBM passes) disappear.
    x = jnp.transpose(x_ncdhw, (0, 2, 3, 4, 1))               # (N, T, H, W, C)
    M = N * T * H * W
    x2 = x.reshape(M, C)

    s1, b1 = fold_bn(params["i1"])
    s2, b2 = fold_bn(params["i2"])
    s3, b3 = fold_bn(params["m1"])
    s4, b4 = fold_bn(params["m2"])

    cix = params["i1"]["w"].shape[0]
    cmid = params["m1"]["w"].shape[0]
    cout = params["m2"]["w"].shape[0]
    assert cout == C, "non-first-block MF_UNIT requires num_out == num_in"

    # Weights as bf16 MXU operands, laid out so tap k / channel c maps to
    # contraction row k*C + c (matches the in-kernel patch layout).
    w1 = params["i1"]["w"].reshape(cix, C).T.astype(jnp.bfloat16)            # (C, Cix)
    w2 = params["i2"]["w"].reshape(C, cix).T.astype(jnp.bfloat16)            # (Cix, C)
    w3 = params["m1"]["w"].transpose(2, 3, 4, 1, 0).reshape(27 * C, cmid)
    w3 = w3.astype(jnp.bfloat16)                                             # (27C, Cmid)
    w4 = params["m2"]["w"].transpose(2, 3, 4, 1, 0).reshape(9 * cmid, cout)
    w4 = w4.astype(jnp.bfloat16)                                             # (9Cmid, Cout)

    # Stage 1: conv_i1 + conv_i2 + residual + BN/ReLU of conv_m1 (one kernel).
    a3 = fused_pointwise(x2, s1, b1, w1, s2, b2, w2, s3, b3)                 # (M, C)
    a3p = jnp.pad(a3.reshape(N, T, H, W, C),
                  ((0, 0), (1, 1), (1, 1), (1, 1), (0, 0)))  # zero pad == conv pad

    # Stage 2: 3x3x3 conv (27 taps folded into one contraction) + BN/ReLU of m2.
    a4 = conv_m1_fused(a3p, w3, s4, b4, H=H, W=W)             # (N, T, H*W, Cmid)
    a4p = jnp.pad(a4.reshape(N, T, H, W, cmid),
                  ((0, 0), (0, 0), (1, 1), (1, 1), (0, 0)))

    # Stage 3: 1x3x3 conv + fused block residual (+x).
    out = conv_m2_fused(a4p, w4, x.reshape(N, T, H * W, C), H=H, W=W)
    return out.reshape(N, T, H, W, cout).transpose(0, 4, 1, 2, 3)            # NCDHW


# ----------------------------------------------------------------------------
# Pure-JAX reference (inference-mode BN, bf16 conv operands to match kernels)
# ----------------------------------------------------------------------------
def bn_ac_conv_ref(x, p, pad):
    scale, shift = fold_bn(p)
    h = x * scale[None, :, None, None, None] + shift[None, :, None, None, None]
    h = jnp.maximum(h, 0.0)
    return lax.conv_general_dilated(
        h.astype(jnp.bfloat16), p["w"].astype(jnp.bfloat16),
        window_strides=(1, 1, 1),
        padding=[(pad[0], pad[0]), (pad[1], pad[1]), (pad[2], pad[2])],
        dimension_numbers=("NCDHW", "OIDHW", "NCDHW"),
        preferred_element_type=jnp.float32)


def mf_unit_ref(x, params):
    h = bn_ac_conv_ref(x, params["i1"], (0, 0, 0))
    x_in = x + bn_ac_conv_ref(h, params["i2"], (0, 0, 0))
    h = bn_ac_conv_ref(x_in, params["m1"], (1, 1, 1))
    h = bn_ac_conv_ref(h, params["m2"], (0, 1, 1))
    return h + x


# ----------------------------------------------------------------------------
if __name__ == "__main__":
    key = jax.random.PRNGKey(0)
    N, C_in, T, H, W = 2, 8, 4, 8, 8          # num_in = 8
    num_mid, num_out = 16, 8                  # num_out == num_in (no conv_w1)
    num_ix = num_mid // 4

    kx, k1, k2, k3, k4 = jax.random.split(key, 5)
    x = jax.random.normal(kx, (N, C_in, T, H, W), jnp.float32)
    params = {
        "i1": init_bn_conv(k1, C_in, num_ix, (1, 1, 1)),
        "i2": init_bn_conv(k2, num_ix, C_in, (1, 1, 1)),
        "m1": init_bn_conv(k3, C_in, num_mid, (3, 3, 3)),
        "m2": init_bn_conv(k4, num_mid, num_out, (1, 3, 3)),
    }

    out = jax.block_until_ready(jax.jit(mf_unit_pallas)(x, params))
    ref = jax.block_until_ready(jax.jit(mf_unit_ref)(x, params))

    assert out.shape == ref.shape == (N, num_out, T, H, W)
    err = float(jnp.max(jnp.abs(out - ref)))
    if err > 2e-2:
        raise SystemExit(f"numerical mismatch: max abs err = {err}")
    print("KERNEL_OK")
</pallas_src>

<mosaic_0001>
module attributes {stable_mosaic.version = 11 : i64} {
  func.func @_fused_pw_kernel(%arg0: i32, %arg1: memref<256x8xf32, #tpu.memory_space<vmem>>, %arg2: memref<1x8xf32, #tpu.memory_space<vmem>>, %arg3: memref<1x8xf32, #tpu.memory_space<vmem>>, %arg4: memref<8x4xbf16, #tpu.memory_space<vmem>>, %arg5: memref<1x4xf32, #tpu.memory_space<vmem>>, %arg6: memref<1x4xf32, #tpu.memory_space<vmem>>, %arg7: memref<4x8xbf16, #tpu.memory_space<vmem>>, %arg8: memref<1x8xf32, #tpu.memory_space<vmem>>, %arg9: memref<1x8xf32, #tpu.memory_space<vmem>>, %arg10: memref<256x8xf32, #tpu.memory_space<vmem>>) attributes {dimension_semantics = [#tpu.dimension_semantics<parallel>], iteration_bounds = array<i64: 2>, scalar_prefetch = 0 : i64, scratch_operands = 0 : i64, tpu.core_type = #tpu.core_type<tc>, window_params = [{transform_indices = @transform_0, window_bounds = array<i64: 256, 8>}, {pipeline_mode = #tpu.pipeline_mode<synchronous>, transform_indices = @transform_1, window_bounds = array<i64: 1, 8>}, {pipeline_mode = #tpu.pipeline_mode<synchronous>, transform_indices = @transform_2, window_bounds = array<i64: 1, 8>}, {pipeline_mode = #tpu.pipeline_mode<synchronous>, transform_indices = @transform_3, window_bounds = array<i64: 8, 4>}, {pipeline_mode = #tpu.pipeline_mode<synchronous>, transform_indices = @transform_4, window_bounds = array<i64: 1, 4>}, {pipeline_mode = #tpu.pipeline_mode<synchronous>, transform_indices = @transform_5, window_bounds = array<i64: 1, 4>}, {pipeline_mode = #tpu.pipeline_mode<synchronous>, transform_indices = @transform_6, window_bounds = array<i64: 4, 8>}, {pipeline_mode = #tpu.pipeline_mode<synchronous>, transform_indices = @transform_7, window_bounds = array<i64: 1, 8>}, {pipeline_mode = #tpu.pipeline_mode<synchronous>, transform_indices = @transform_8, window_bounds = array<i64: 1, 8>}, {transform_indices = @transform_9, window_bounds = array<i64: 256, 8>}]} {
    %c0 = arith.constant 0 : index
    %c0_0 = arith.constant 0 : index
    %0 = vector.load %arg1[%c0, %c0_0] : memref<256x8xf32, #tpu.memory_space<vmem>>, vector<256x8xf32>
    %c0_1 = arith.constant 0 : index
    %c0_2 = arith.constant 0 : index
    %1 = vector.load %arg2[%c0_1, %c0_2] : memref<1x8xf32, #tpu.memory_space<vmem>>, vector<1x8xf32>
    %2 = vector.broadcast %1 : vector<1x8xf32> to vector<256x8xf32>
    %3 = arith.mulf %0, %2 : vector<256x8xf32>
    %c0_3 = arith.constant 0 : index
    %c0_4 = arith.constant 0 : index
    %4 = vector.load %arg3[%c0_3, %c0_4] : memref<1x8xf32, #tpu.memory_space<vmem>>, vector<1x8xf32>
    %5 = vector.broadcast %4 : vector<1x8xf32> to vector<256x8xf32>
    %6 = arith.addf %3, %5 : vector<256x8xf32>
    %cst = arith.constant 0.000000e+00 : f32
    %7 = vector.broadcast %cst : f32 to vector<256x8xf32>
    %8 = arith.maximumf %6, %7 : vector<256x8xf32>
    %9 = arith.truncf %8 : vector<256x8xf32> to vector<256x8xbf16>
    %c0_5 = arith.constant 0 : index
    %c0_6 = arith.constant 0 : index
    %10 = vector.load %arg4[%c0_5, %c0_6] : memref<8x4xbf16, #tpu.memory_space<vmem>>, vector<8x4xbf16>
    %cst_7 = arith.constant dense<0.000000e+00> : vector<256x4xf32>
    %11 = tpu.matmul %9, %10, %cst_7 {dimension_numbers = #tpu.dot_dimension_numbers<[1], [0], [0], [1], [0, 0, 1, 1], [], []>} : vector<256x8xbf16>, vector<8x4xbf16>, vector<256x4xf32> -> vector<256x4xf32>
    %c0_8 = arith.constant 0 : index
    %c0_9 = arith.constant 0 : index
    %12 = vector.load %arg5[%c0_8, %c0_9] : memref<1x4xf32, #tpu.memory_space<vmem>>, vector<1x4xf32>
    %13 = vector.broadcast %12 : vector<1x4xf32> to vector<256x4xf32>
    %14 = arith.mulf %11, %13 : vector<256x4xf32>
    %c0_10 = arith.constant 0 : index
    %c0_11 = arith.constant 0 : index
    %15 = vector.load %arg6[%c0_10, %c0_11] : memref<1x4xf32, #tpu.memory_space<vmem>>, vector<1x4xf32>
    %16 = vector.broadcast %15 : vector<1x4xf32> to vector<256x4xf32>
    %17 = arith.addf %14, %16 : vector<256x4xf32>
    %cst_12 = arith.constant 0.000000e+00 : f32
    %18 = vector.broadcast %cst_12 : f32 to vector<256x4xf32>
    %19 = arith.maximumf %17, %18 : vector<256x4xf32>
    %20 = arith.truncf %19 : vector<256x4xf32> to vector<256x4xbf16>
    %c0_13 = arith.constant 0 : index
    %c0_14 = arith.constant 0 : index
    %21 = vector.load %arg7[%c0_13, %c0_14] : memref<4x8xbf16, #tpu.memory_space<vmem>>, vector<4x8xbf16>
    %cst_15 = arith.constant dense<0.000000e+00> : vector<256x8xf32>
    %22 = tpu.matmul %20, %21, %cst_15 {dimension_numbers = #tpu.dot_dimension_numbers<[1], [0], [0], [1], [0, 0, 1, 1], [], []>} : vector<256x4xbf16>, vector<4x8xbf16>, vector<256x8xf32> -> vector<256x8xf32>
    %23 = arith.addf %0, %22 : vector<256x8xf32>
    %c0_16 = arith.constant 0 : index
    %c0_17 = arith.constant 0 : index
    %24 = vector.load %arg8[%c0_16, %c0_17] : memref<1x8xf32, #tpu.memory_space<vmem>>, vector<1x8xf32>
    %25 = vector.broadcast %24 : vector<1x8xf32> to vector<256x8xf32>
    %26 = arith.mulf %23, %25 : vector<256x8xf32>
    %c0_18 = arith.constant 0 : index
    %c0_19 = arith.constant 0 : index
    %27 = vector.load %arg9[%c0_18, %c0_19] : memref<1x8xf32, #tpu.memory_space<vmem>>, vector<1x8xf32>
    %28 = vector.broadcast %27 : vector<1x8xf32> to vector<256x8xf32>
    %29 = arith.addf %26, %28 : vector<256x8xf32>
    %cst_20 = arith.constant 0.000000e+00 : f32
    %30 = vector.broadcast %cst_20 : f32 to vector<256x8xf32>
    %31 = arith.maximumf %29, %30 : vector<256x8xf32>
    %c0_21 = arith.constant 0 : index
    %c0_22 = arith.constant 0 : index
    %32 = vector.load %arg10[%c0_21, %c0_22] : memref<256x8xf32, #tpu.memory_space<vmem>>, vector<256x8xf32>
    tpu.vector_store %arg10[%c0_21, %c0_22], %31 {strides = array<i32>} : memref<256x8xf32, #tpu.memory_space<vmem>>, vector<256x8xf32>,
    return
  }
  func.func @transform_0(%arg0: i32) -> (i32, i32) {
    %c0_i32 = arith.constant 0 : i32
    %c0_i32_0 = arith.constant 0 : i32
    return %arg0, %c0_i32 : i32, i32
  }
  func.func @transform_1(%arg0: i32) -> (i32, i32) {
    %c0_i32 = arith.constant 0 : i32
    %c0_i32_0 = arith.constant 0 : i32
    %c0_i32_1 = arith.constant 0 : i32
    return %c0_i32, %c0_i32_0 : i32, i32
  }
  func.func @transform_2(%arg0: i32) -> (i32, i32) {
    %c0_i32 = arith.constant 0 : i32
    %c0_i32_0 = arith.constant 0 : i32
    %c0_i32_1 = arith.constant 0 : i32
    return %c0_i32, %c0_i32_0 : i32, i32
  }
  func.func @transform_3(%arg0: i32) -> (i32, i32) {
    %c0_i32 = arith.constant 0 : i32
    %c0_i32_0 = arith.constant 0 : i32
    %c0_i32_1 = arith.constant 0 : i32
    return %c0_i32, %c0_i32_0 : i32, i32
  }
  func.func @transform_4(%arg0: i32) -> (i32, i32) {
    %c0_i32 = arith.constant 0 : i32
    %c0_i32_0 = arith.constant 0 : i32
    %c0_i32_1 = arith.constant 0 : i32
    return %c0_i32, %c0_i32_0 : i32, i32
  }
  func.func @transform_5(%arg0: i32) -> (i32, i32) {
    %c0_i32 = arith.constant 0 : i32
    %c0_i32_0 = arith.constant 0 : i32
    %c0_i32_1 = arith.constant 0 : i32
    return %c0_i32, %c0_i32_0 : i32, i32
  }
  func.func @transform_6(%arg0: i32) -> (i32, i32) {
    %c0_i32 = arith.constant 0 : i32
    %c0_i32_0 = arith.constant 0 : i32
    %c0_i32_1 = arith.constant 0 : i32
    return %c0_i32, %c0_i32_0 : i32, i32
  }
  func.func @transform_7(%arg0: i32) -> (i32, i32) {
    %c0_i32 = arith.constant 0 : i32
    %c0_i32_0 = arith.constant 0 : i32
    %c0_i32_1 = arith.constant 0 : i32
    return %c0_i32, %c0_i32_0 : i32, i32
  }
  func.func @transform_8(%arg0: i32) -> (i32, i32) {
    %c0_i32 = arith.constant 0 : i32
    %c0_i32_0 = arith.constant 0 : i32
    %c0_i32_1 = arith.constant 0 : i32
    return %c0_i32, %c0_i32_0 : i32, i32
  }
  func.func @transform_9(%arg0: i32) -> (i32, i32) {
    %c0_i32 = arith.constant 0 : i32
    %c0_i32_0 = arith.constant 0 : i32
    return %arg0, %c0_i32 : i32, i32
  }
}

module attributes {stable_mosaic.version = 11 : i64} {
  func.func @_conv_m1_kernel(%arg0: i32, %arg1: i32, %arg2: memref<1x1x10x10x8xf32, #tpu.memory_space<vmem>>, %arg3: memref<1x1x10x10x8xf32, #tpu.memory_space<vmem>>, %arg4: memref<1x1x10x10x8xf32, #tpu.memory_space<vmem>>, %arg5: memref<216x16xbf16, #tpu.memory_space<vmem>>, %arg6: memref<1x16xf32, #tpu.memory_space<vmem>>, %arg7: memref<1x16xf32, #tpu.memory_space<vmem>>, %arg8: memref<1x1x64x16xf32, #tpu.memory_space<vmem>>, %arg9: memref<64x216xf32, #tpu.memory_space<vmem>>) attributes {dimension_semantics = [#tpu.dimension_semantics<parallel>, #tpu.dimension_semantics<parallel>], iteration_bounds = array<i64: 2, 4>, scalar_prefetch = 0 : i64, scratch_operands = 1 : i64, tpu.core_type = #tpu.core_type<tc>, window_params = [{transform_indices = @transform_0, window_bounds = array<i64: 1, 1, 10, 10, 8>}, {transform_indices = @transform_1, window_bounds = array<i64: 1, 1, 10, 10, 8>}, {transform_indices = @transform_2, window_bounds = array<i64: 1, 1, 10, 10, 8>}, {pipeline_mode = #tpu.pipeline_mode<synchronous>, transform_indices = @transform_3, window_bounds = array<i64: 216, 16>}, {pipeline_mode = #tpu.pipeline_mode<synchronous>, transform_indices = @transform_4, window_bounds = array<i64: 1, 16>}, {pipeline_mode = #tpu.pipeline_mode<synchronous>, transform_indices = @transform_5, window_bounds = array<i64: 1, 16>}, {transform_indices = @transform_6, window_bounds = array<i64: 1, 1, 64, 16>}]} {
    %c0 = arith.constant 0 : index
    %c0_0 = arith.constant 0 : index
    %c0_1 = arith.constant 0 : index
    %c0_2 = arith.constant 0 : index
    %c0_3 = arith.constant 0 : index
    %0 = vector.load %arg2[%c0, %c0_0, %c0_1, %c0_2, %c0_3] : memref<1x1x10x10x8xf32, #tpu.memory_space<vmem>>, vector<1x1x8x8x8xf32>
    %1 = vector.shape_cast %0 : vector<1x1x8x8x8xf32> to vector<8x8x8xf32>
    %2 = vector.shape_cast %1 : vector<8x8x8xf32> to vector<64x8xf32>
    %c0_4 = arith.constant 0 : index
    %c0_5 = arith.constant 0 : index
    %3 = vector.load %arg9[%c0_4, %c0_5] : memref<64x216xf32, #tpu.memory_space<vmem>>, vector<64x8xf32>
    tpu.vector_store %arg9[%c0_4, %c0_5], %2 {strides = array<i32>} : memref<64x216xf32, #tpu.memory_space<vmem>>, vector<64x8xf32>,
    %c0_6 = arith.constant 0 : index
    %c0_7 = arith.constant 0 : index
    %c0_8 = arith.constant 0 : index
    %c1 = arith.constant 1 : index
    %c0_9 = arith.constant 0 : index
    %4 = vector.load %arg2[%c0_6, %c0_7, %c0_8, %c1, %c0_9] : memref<1x1x10x10x8xf32, #tpu.memory_space<vmem>>, vector<1x1x8x8x8xf32>
    %5 = vector.shape_cast %4 : vector<1x1x8x8x8xf32> to vector<8x8x8xf32>
    %6 = vector.shape_cast %5 : vector<8x8x8xf32> to vector<64x8xf32>
    %c0_10 = arith.constant 0 : index
    %c8 = arith.constant 8 : index
    %7 = vector.load %arg9[%c0_10, %c8] : memref<64x216xf32, #tpu.memory_space<vmem>>, vector<64x8xf32>
    tpu.vector_store %arg9[%c0_10, %c8], %6 {strides = array<i32>} : memref<64x216xf32, #tpu.memory_space<vmem>>, vector<64x8xf32>,
    %c0_11 = arith.constant 0 : index
    %c0_12 = arith.constant 0 : index
    %c0_13 = arith.constant 0 : index
    %c2 = arith.constant 2 : index
    %c0_14 = arith.constant 0 : index
    %8 = vector.load %arg2[%c0_11, %c0_12, %c0_13, %c2, %c0_14] : memref<1x1x10x10x8xf32, #tpu.memory_space<vmem>>, vector<1x1x8x8x8xf32>
    %9 = vector.shape_cast %8 : vector<1x1x8x8x8xf32> to vector<8x8x8xf32>
    %10 = vector.shape_cast %9 : vector<8x8x8xf32> to vector<64x8xf32>
    %c0_15 = arith.constant 0 : index
    %c16 = arith.constant 16 : index
    %11 = vector.load %arg9[%c0_15, %c16] : memref<64x216xf32, #tpu.memory_space<vmem>>, vector<64x8xf32>
    tpu.vector_store %arg9[%c0_15, %c16], %10 {strides = array<i32>} : memref<64x216xf32, #tpu.memory_space<vmem>>, vector<64x8xf32>,
    %c0_16 = arith.constant 0 : index
    %c0_17 = arith.constant 0 : index
    %c1_18 = arith.constant 1 : index
    %c0_19 = arith.constant 0 : index
    %c0_20 = arith.constant 0 : index
    %12 = vector.load %arg2[%c0_16, %c0_17, %c1_18, %c0_19, %c0_20] : memref<1x1x10x10x8xf32, #tpu.memory_space<vmem>>, vector<1x1x8x8x8xf32>
    %13 = vector.shape_cast %12 : vector<1x1x8x8x8xf32> to vector<8x8x8xf32>
    %14 = vector.shape_cast %13 : vector<8x8x8xf32> to vector<64x8xf32>
    %c0_21 = arith.constant 0 : index
    %c24 = arith.constant 24 : index
    %15 = vector.load %arg9[%c0_21, %c24] : memref<64x216xf32, #tpu.memory_space<vmem>>, vector<64x8xf32>
    tpu.vector_store %arg9[%c0_21, %c24], %14 {strides = array<i32>} : memref<64x216xf32, #tpu.memory_space<vmem>>, vector<64x8xf32>,
    %c0_22 = arith.constant 0 : index
    %c0_23 = arith.constant 0 : index
    %c1_24 = arith.constant 1 : index
    %c1_25 = arith.constant 1 : index
    %c0_26 = arith.constant 0 : index
    %16 = vector.load %arg2[%c0_22, %c0_23, %c1_24, %c1_25, %c0_26] : memref<1x1x10x10x8xf32, #tpu.memory_space<vmem>>, vector<1x1x8x8x8xf32>
    %17 = vector.shape_cast %16 : vector<1x1x8x8x8xf32> to vector<8x8x8xf32>
    %18 = vector.shape_cast %17 : vector<8x8x8xf32> to vector<64x8xf32>
    %c0_27 = arith.constant 0 : index
    %c32 = arith.constant 32 : index
    %19 = vector.load %arg9[%c0_27, %c32] : memref<64x216xf32, #tpu.memory_space<vmem>>, vector<64x8xf32>
    tpu.vector_store %arg9[%c0_27, %c32], %18 {strides = array<i32>} : memref<64x216xf32, #tpu.memory_space<vmem>>, vector<64x8xf32>,
    %c0_28 = arith.constant 0 : index
    %c0_29 = arith.constant 0 : index
    %c1_30 = arith.constant 1 : index
    %c2_31 = arith.constant 2 : index
    %c0_32 = arith.constant 0 : index
    %20 = vector.load %arg2[%c0_28, %c0_29, %c1_30, %c2_31, %c0_32] : memref<1x1x10x10x8xf32, #tpu.memory_space<vmem>>, vector<1x1x8x8x8xf32>
    %21 = vector.shape_cast %20 : vector<1x1x8x8x8xf32> to vector<8x8x8xf32>
    %22 = vector.shape_cast %21 : vector<8x8x8xf32> to vector<64x8xf32>
    %c0_33 = arith.constant 0 : index
    %c40 = arith.constant 40 : index
    %23 = vector.load %arg9[%c0_33, %c40] : memref<64x216xf32, #tpu.memory_space<vmem>>, vector<64x8xf32>
    tpu.vector_store %arg9[%c0_33, %c40], %22 {strides = array<i32>} : memref<64x216xf32, #tpu.memory_space<vmem>>, vector<64x8xf32>,
    %c0_34 = arith.constant 0 : index
    %c0_35 = arith.constant 0 : index
    %c2_36 = arith.constant 2 : index
    %c0_37 = arith.constant 0 : index
    %c0_38 = arith.constant 0 : index
    %24 = vector.load %arg2[%c0_34, %c0_35, %c2_36, %c0_37, %c0_38] : memref<1x1x10x10x8xf32, #tpu.memory_space<vmem>>, vector<1x1x8x8x8xf32>
    %25 = vector.shape_cast %24 : vector<1x1x8x8x8xf32> to vector<8x8x8xf32>
    %26 = vector.shape_cast %25 : vector<8x8x8xf32> to vector<64x8xf32>
    %c0_39 = arith.constant 0 : index
    %c48 = arith.constant 48 : index
    %27 = vector.load %arg9[%c0_39, %c48] : memref<64x216xf32, #tpu.memory_space<vmem>>, vector<64x8xf32>
    tpu.vector_store %arg9[%c0_39, %c48], %26 {strides = array<i32>} : memref<64x216xf32, #tpu.memory_space<vmem>>, vector<64x8xf32>,
    %c0_40 = arith.constant 0 : index
    %c0_41 = arith.constant 0 : index
    %c2_42 = arith.constant 2 : index
    %c1_43 = arith.constant 1 : index
    %c0_44 = arith.constant 0 : index
    %28 = vector.load %arg2[%c0_40, %c0_41, %c2_42, %c1_43, %c0_44] : memref<1x1x10x10x8xf32, #tpu.memory_space<vmem>>, vector<1x1x8x8x8xf32>
    %29 = vector.shape_cast %28 : vector<1x1x8x8x8xf32> to vector<8x8x8xf32>
    %30 = vector.shape_cast %29 : vector<8x8x8xf32> to vector<64x8xf32>
    %c0_45 = arith.constant 0 : index
    %c56 = arith.constant 56 : index
    %31 = vector.load %arg9[%c0_45, %c56] : memref<64x216xf32, #tpu.memory_space<vmem>>, vector<64x8xf32>
    tpu.vector_store %arg9[%c0_45, %c56], %30 {strides = array<i32>} : memref<64x216xf32, #tpu.memory_space<vmem>>, vector<64x8xf32>,
    %c0_46 = arith.constant 0 : index
    %c0_47 = arith.constant 0 : index
    %c2_48 = arith.constant 2 : index
    %c2_49 = arith.constant 2 : index
    %c0_50 = arith.constant 0 : index
    %32 = vector.load %arg2[%c0_46, %c0_47, %c2_48, %c2_49, %c0_50] : memref<1x1x10x10x8xf32, #tpu.memory_space<vmem>>, vector<1x1x8x8x8xf32>
    %33 = vector.shape_cast %32 : vector<1x1x8x8x8xf32> to vector<8x8x8xf32>
    %34 = vector.shape_cast %33 : vector<8x8x8xf32> to vector<64x8xf32>
    %c0_51 = arith.constant 0 : index
    %c64 = arith.constant 64 : index
    %35 = vector.load %arg9[%c0_51, %c64] : memref<64x216xf32, #tpu.memory_space<vmem>>, vector<64x8xf32>
    tpu.vector_store %arg9[%c0_51, %c64], %34 {strides = array<i32>} : memref<64x216xf32, #tpu.memory_space<vmem>>, vector<64x8xf32>,
    %c0_52 = arith.constant 0 : index
    %c0_53 = arith.constant 0 : index
    %c0_54 = arith.constant 0 : index
    %c0_55 = arith.constant 0 : index
    %c0_56 = arith.constant 0 : index
    %36 = vector.load %arg3[%c0_52, %c0_53, %c0_54, %c0_55, %c0_56] : memref<1x1x10x10x8xf32, #tpu.memory_space<vmem>>, vector<1x1x8x8x8xf32>
    %37 = vector.shape_cast %36 : vector<1x1x8x8x8xf32> to vector<8x8x8xf32>
    %38 = vector.shape_cast %37 : vector<8x8x8xf32> to vector<64x8xf32>
    %c0_57 = arith.constant 0 : index
    %c72 = arith.constant 72 : index
    %39 = vector.load %arg9[%c0_57, %c72] : memref<64x216xf32, #tpu.memory_space<vmem>>, vector<64x8xf32>
    tpu.vector_store %arg9[%c0_57, %c72], %38 {strides = array<i32>} : memref<64x216xf32, #tpu.memory_space<vmem>>, vector<64x8xf32>,
    %c0_58 = arith.constant 0 : index
    %c0_59 = arith.constant 0 : index
    %c0_60 = arith.constant 0 : index
    %c1_61 = arith.constant 1 : index
    %c0_62 = arith.constant 0 : index
    %40 = vector.load %arg3[%c0_58, %c0_59, %c0_60, %c1_61, %c0_62] : memref<1x1x10x10x8xf32, #tpu.memory_space<vmem>>, vector<1x1x8x8x8xf32>
    %41 = vector.shape_cast %40 : vector<1x1x8x8x8xf32> to vector<8x8x8xf32>
    %42 = vector.shape_cast %41 : vector<8x8x8xf32> to vector<64x8xf32>
    %c0_63 = arith.constant 0 : index
    %c80 = arith.constant 80 : index
    %43 = vector.load %arg9[%c0_63, %c80] : memref<64x216xf32, #tpu.memory_space<vmem>>, vector<64x8xf32>
    tpu.vector_store %arg9[%c0_63, %c80], %42 {strides = array<i32>} : memref<64x216xf32, #tpu.memory_space<vmem>>, vector<64x8xf32>,
    %c0_64 = arith.constant 0 : index
    %c0_65 = arith.constant 0 : index
    %c0_66 = arith.constant 0 : index
    %c2_67 = arith.constant 2 : index
    %c0_68 = arith.constant 0 : index
    %44 = vector.load %arg3[%c0_64, %c0_65, %c0_66, %c2_67, %c0_68] : memref<1x1x10x10x8xf32, #tpu.memory_space<vmem>>, vector<1x1x8x8x8xf32>
    %45 = vector.shape_cast %44 : vector<1x1x8x8x8xf32> to vector<8x8x8xf32>
    %46 = vector.shape_cast %45 : vector<8x8x8xf32> to vector<64x8xf32>
    %c0_69 = arith.constant 0 : index
    %c88 = arith.constant 88 : index
    %47 = vector.load %arg9[%c0_69, %c88] : memref<64x216xf32, #tpu.memory_space<vmem>>, vector<64x8xf32>
    tpu.vector_store %arg9[%c0_69, %c88], %46 {strides = array<i32>} : memref<64x216xf32, #tpu.memory_space<vmem>>, vector<64x8xf32>,
    %c0_70 = arith.constant 0 : index
    %c0_71 = arith.constant 0 : index
    %c1_72 = arith.constant 1 : index
    %c0_73 = arith.constant 0 : index
    %c0_74 = arith.constant 0 : index
    %48 = vector.load %arg3[%c0_70, %c0_71, %c1_72, %c0_73, %c0_74] : memref<1x1x10x10x8xf32, #tpu.memory_space<vmem>>, vector<1x1x8x8x8xf32>
    %49 = vector.shape_cast %48 : vector<1x1x8x8x8xf32> to vector<8x8x8xf32>
    %50 = vector.shape_cast %49 : vector<8x8x8xf32> to vector<64x8xf32>
    %c0_75 = arith.constant 0 : index
    %c96 = arith.constant 96 : index
    %51 = vector.load %arg9[%c0_75, %c96] : memref<64x216xf32, #tpu.memory_space<vmem>>, vector<64x8xf32>
    tpu.vector_store %arg9[%c0_75, %c96], %50 {strides = array<i32>} : memref<64x216xf32, #tpu.memory_space<vmem>>, vector<64x8xf32>,
    %c0_76 = arith.constant 0 : index
    %c0_77 = arith.constant 0 : index
    %c1_78 = arith.constant 1 : index
    %c1_79 = arith.constant 1 : index
    %c0_80 = arith.constant 0 : index
    %52 = vector.load %arg3[%c0_76, %c0_77, %c1_78, %c1_79, %c0_80] : memref<1x1x10x10x8xf32, #tpu.memory_space<vmem>>, vector<1x1x8x8x8xf32>
    %53 = vector.shape_cast %52 : vector<1x1x8x8x8xf32> to vector<8x8x8xf32>
    %54 = vector.shape_cast %53 : vector<8x8x8xf32> to vector<64x8xf32>
    %c0_81 = arith.constant 0 : index
    %c104 = arith.constant 104 : index
    %55 = vector.load %arg9[%c0_81, %c104] : memref<64x216xf32, #tpu.memory_space<vmem>>, vector<64x8xf32>
    tpu.vector_store %arg9[%c0_81, %c104], %54 {strides = array<i32>} : memref<64x216xf32, #tpu.memory_space<vmem>>, vector<64x8xf32>,
    %c0_82 = arith.constant 0 : index
    %c0_83 = arith.constant 0 : index
    %c1_84 = arith.constant 1 : index
    %c2_85 = arith.constant 2 : index
    %c0_86 = arith.constant 0 : index
    %56 = vector.load %arg3[%c0_82, %c0_83, %c1_84, %c2_85, %c0_86] : memref<1x1x10x10x8xf32, #tpu.memory_space<vmem>>, vector<1x1x8x8x8xf32>
    %57 = vector.shape_cast %56 : vector<1x1x8x8x8xf32> to vector<8x8x8xf32>
    %58 = vector.shape_cast %57 : vector<8x8x8xf32> to vector<64x8xf32>
    %c0_87 = arith.constant 0 : index
    %c112 = arith.constant 112 : index
    %59 = vector.load %arg9[%c0_87, %c112] : memref<64x216xf32, #tpu.memory_space<vmem>>, vector<64x8xf32>
    tpu.vector_store %arg9[%c0_87, %c112], %58 {strides = array<i32>} : memref<64x216xf32, #tpu.memory_space<vmem>>, vector<64x8xf32>,
    %c0_88 = arith.constant 0 : index
    %c0_89 = arith.constant 0 : index
    %c2_90 = arith.constant 2 : index
    %c0_91 = arith.constant 0 : index
    %c0_92 = arith.constant 0 : index
    %60 = vector.load %arg3[%c0_88, %c0_89, %c2_90, %c0_91, %c0_92] : memref<1x1x10x10x8xf32, #tpu.memory_space<vmem>>, vector<1x1x8x8x8xf32>
    %61 = vector.shape_cast %60 : vector<1x1x8x8x8xf32> to vector<8x8x8xf32>
    %62 = vector.shape_cast %61 : vector<8x8x8xf32> to vector<64x8xf32>
    %c0_93 = arith.constant 0 : index
    %c120 = arith.constant 120 : index
    %63 = vector.load %arg9[%c0_93, %c120] : memref<64x216xf32, #tpu.memory_space<vmem>>, vector<64x8xf32>
    tpu.vector_store %arg9[%c0_93, %c120], %62 {strides = array<i32>} : memref<64x216xf32, #tpu.memory_space<vmem>>, vector<64x8xf32>,
    %c0_94 = arith.constant 0 : index
    %c0_95 = arith.constant 0 : index
    %c2_96 = arith.constant 2 : index
    %c1_97 = arith.constant 1 : index
    %c0_98 = arith.constant 0 : index
    %64 = vector.load %arg3[%c0_94, %c0_95, %c2_96, %c1_97, %c0_98] : memref<1x1x10x10x8xf32, #tpu.memory_space<vmem>>, vector<1x1x8x8x8xf32>
    %65 = vector.shape_cast %64 : vector<1x1x8x8x8xf32> to vector<8x8x8xf32>
    %66 = vector.shape_cast %65 : vector<8x8x8xf32> to vector<64x8xf32>
    %c0_99 = arith.constant 0 : index
    %c128 = arith.constant 128 : index
    %67 = vector.load %arg9[%c0_99, %c128] : memref<64x216xf32, #tpu.memory_space<vmem>>, vector<64x8xf32>
    tpu.vector_store %arg9[%c0_99, %c128], %66 {strides = array<i32>} : memref<64x216xf32, #tpu.memory_space<vmem>>, vector<64x8xf32>,
    %c0_100 = arith.constant 0 : index
    %c0_101 = arith.constant 0 : index
    %c2_102 = arith.constant 2 : index
    %c2_103 = arith.constant 2 : index
    %c0_104 = arith.constant 0 : index
    %68 = vector.load %arg3[%c0_100, %c0_101, %c2_102, %c2_103, %c0_104] : memref<1x1x10x10x8xf32, #tpu.memory_space<vmem>>, vector<1x1x8x8x8xf32>
    %69 = vector.shape_cast %68 : vector<1x1x8x8x8xf32> to vector<8x8x8xf32>
    %70 = vector.shape_cast %69 : vector<8x8x8xf32> to vector<64x8xf32>
    %c0_105 = arith.constant 0 : index
    %c136 = arith.constant 136 : index
    %71 = vector.load %arg9[%c0_105, %c136] : memref<64x216xf32, #tpu.memory_space<vmem>>, vector<64x8xf32>
    tpu.vector_store %arg9[%c0_105, %c136], %70 {strides = array<i32>} : memref<64x216xf32, #tpu.memory_space<vmem>>, vector<64x8xf32>,
    %c0_106 = arith.constant 0 : index
    %c0_107 = arith.constant 0 : index
    %c0_108 = arith.constant 0 : index
    %c0_109 = arith.constant 0 : index
    %c0_110 = arith.constant 0 : index
    %72 = vector.load %arg4[%c0_106, %c0_107, %c0_108, %c0_109, %c0_110] : memref<1x1x10x10x8xf32, #tpu.memory_space<vmem>>, vector<1x1x8x8x8xf32>
    %73 = vector.shape_cast %72 : vector<1x1x8x8x8xf32> to vector<8x8x8xf32>
    %74 = vector.shape_cast %73 : vector<8x8x8xf32> to vector<64x8xf32>
    %c0_111 = arith.constant 0 : index
    %c144 = arith.constant 144 : index
    %75 = vector.load %arg9[%c0_111, %c144] : memref<64x216xf32, #tpu.memory_space<vmem>>, vector<64x8xf32>
    tpu.vector_store %arg9[%c0_111, %c144], %74 {strides = array<i32>} : memref<64x216xf32, #tpu.memory_space<vmem>>, vector<64x8xf32>,
    %c0_112 = arith.constant 0 : index
    %c0_113 = arith.constant 0 : index
    %c0_114 = arith.constant 0 : index
    %c1_115 = arith.constant 1 : index
    %c0_116 = arith.constant 0 : index
    %76 = vector.load %arg4[%c0_112, %c0_113, %c0_114, %c1_115, %c0_116] : memref<1x1x10x10x8xf32, #tpu.memory_space<vmem>>, vector<1x1x8x8x8xf32>
    %77 = vector.shape_cast %76 : vector<1x1x8x8x8xf32> to vector<8x8x8xf32>
    %78 = vector.shape_cast %77 : vector<8x8x8xf32> to vector<64x8xf32>
    %c0_117 = arith.constant 0 : index
    %c152 = arith.constant 152 : index
    %79 = vector.load %arg9[%c0_117, %c152] : memref<64x216xf32, #tpu.memory_space<vmem>>, vector<64x8xf32>
    tpu.vector_store %arg9[%c0_117, %c152], %78 {strides = array<i32>} : memref<64x216xf32, #tpu.memory_space<vmem>>, vector<64x8xf32>,
    %c0_118 = arith.constant 0 : index
    %c0_119 = arith.constant 0 : index
    %c0_120 = arith.constant 0 : index
    %c2_121 = arith.constant 2 : index
    %c0_122 = arith.constant 0 : index
    %80 = vector.load %arg4[%c0_118, %c0_119, %c0_120, %c2_121, %c0_122] : memref<1x1x10x10x8xf32, #tpu.memory_space<vmem>>, vector<1x1x8x8x8xf32>
    %81 = vector.shape_cast %80 : vector<1x1x8x8x8xf32> to vector<8x8x8xf32>
    %82 = vector.shape_cast %81 : vector<8x8x8xf32> to vector<64x8xf32>
    %c0_123 = arith.constant 0 : index
    %c160 = arith.constant 160 : index
    %83 = vector.load %arg9[%c0_123, %c160] : memref<64x216xf32, #tpu.memory_space<vmem>>, vector<64x8xf32>
    tpu.vector_store %arg9[%c0_123, %c160], %82 {strides = array<i32>} : memref<64x216xf32, #tpu.memory_space<vmem>>, vector<64x8xf32>,
    %c0_124 = arith.constant 0 : index
    %c0_125 = arith.constant 0 : index
    %c1_126 = arith.constant 1 : index
    %c0_127 = arith.constant 0 : index
    %c0_128 = arith.constant 0 : index
    %84 = vector.load %arg4[%c0_124, %c0_125, %c1_126, %c0_127, %c0_128] : memref<1x1x10x10x8xf32, #tpu.memory_space<vmem>>, vector<1x1x8x8x8xf32>
    %85 = vector.shape_cast %84 : vector<1x1x8x8x8xf32> to vector<8x8x8xf32>
    %86 = vector.shape_cast %85 : vector<8x8x8xf32> to vector<64x8xf32>
    %c0_129 = arith.constant 0 : index
    %c168 = arith.constant 168 : index
    %87 = vector.load %arg9[%c0_129, %c168] : memref<64x216xf32, #tpu.memory_space<vmem>>, vector<64x8xf32>
    tpu.vector_store %arg9[%c0_129, %c168], %86 {strides = array<i32>} : memref<64x216xf32, #tpu.memory_space<vmem>>, vector<64x8xf32>,
    %c0_130 = arith.constant 0 : index
    %c0_131 = arith.constant 0 : index
    %c1_132 = arith.constant 1 : index
    %c1_133 = arith.constant 1 : index
    %c0_134 = arith.constant 0 : index
    %88 = vector.load %arg4[%c0_130, %c0_131, %c1_132, %c1_133, %c0_134] : memref<1x1x10x10x8xf32, #tpu.memory_space<vmem>>, vector<1x1x8x8x8xf32>
    %89 = vector.shape_cast %88 : vector<1x1x8x8x8xf32> to vector<8x8x8xf32>
    %90 = vector.shape_cast %89 : vector<8x8x8xf32> to vector<64x8xf32>
    %c0_135 = arith.constant 0 : index
    %c176 = arith.constant 176 : index
    %91 = vector.load %arg9[%c0_135, %c176] : memref<64x216xf32, #tpu.memory_space<vmem>>, vector<64x8xf32>
    tpu.vector_store %arg9[%c0_135, %c176], %90 {strides = array<i32>} : memref<64x216xf32, #tpu.memory_space<vmem>>, vector<64x8xf32>,
    %c0_136 = arith.constant 0 : index
    %c0_137 = arith.constant 0 : index
    %c1_138 = arith.constant 1 : index
    %c2_139 = arith.constant 2 : index
    %c0_140 = arith.constant 0 : index
    %92 = vector.load %arg4[%c0_136, %c0_137, %c1_138, %c2_139, %c0_140] : memref<1x1x10x10x8xf32, #tpu.memory_space<vmem>>, vector<1x1x8x8x8xf32>
    %93 = vector.shape_cast %92 : vector<1x1x8x8x8xf32> to vector<8x8x8xf32>
    %94 = vector.shape_cast %93 : vector<8x8x8xf32> to vector<64x8xf32>
    %c0_141 = arith.constant 0 : index
    %c184 = arith.constant 184 : index
    %95 = vector.load %arg9[%c0_141, %c184] : memref<64x216xf32, #tpu.memory_space<vmem>>, vector<64x8xf32>
    tpu.vector_store %arg9[%c0_141, %c184], %94 {strides = array<i32>} : memref<64x216xf32, #tpu.memory_space<vmem>>, vector<64x8xf32>,
    %c0_142 = arith.constant 0 : index
    %c0_143 = arith.constant 0 : index
    %c2_144 = arith.constant 2 : index
    %c0_145 = arith.constant 0 : index
    %c0_146 = arith.constant 0 : index
    %96 = vector.load %arg4[%c0_142, %c0_143, %c2_144, %c0_145, %c0_146] : memref<1x1x10x10x8xf32, #tpu.memory_space<vmem>>, vector<1x1x8x8x8xf32>
    %97 = vector.shape_cast %96 : vector<1x1x8x8x8xf32> to vector<8x8x8xf32>
    %98 = vector.shape_cast %97 : vector<8x8x8xf32> to vector<64x8xf32>
    %c0_147 = arith.constant 0 : index
    %c192 = arith.constant 192 : index
    %99 = vector.load %arg9[%c0_147, %c192] : memref<64x216xf32, #tpu.memory_space<vmem>>, vector<64x8xf32>
    tpu.vector_store %arg9[%c0_147, %c192], %98 {strides = array<i32>} : memref<64x216xf32, #tpu.memory_space<vmem>>, vector<64x8xf32>,
    %c0_148 = arith.constant 0 : index
    %c0_149 = arith.constant 0 : index
    %c2_150 = arith.constant 2 : index
    %c1_151 = arith.constant 1 : index
    %c0_152 = arith.constant 0 : index
    %100 = vector.load %arg4[%c0_148, %c0_149, %c2_150, %c1_151, %c0_152] : memref<1x1x10x10x8xf32, #tpu.memory_space<vmem>>, vector<1x1x8x8x8xf32>
    %101 = vector.shape_cast %100 : vector<1x1x8x8x8xf32> to vector<8x8x8xf32>
    %102 = vector.shape_cast %101 : vector<8x8x8xf32> to vector<64x8xf32>
    %c0_153 = arith.constant 0 : index
    %c200 = arith.constant 200 : index
    %103 = vector.load %arg9[%c0_153, %c200] : memref<64x216xf32, #tpu.memory_space<vmem>>, vector<64x8xf32>
    tpu.vector_store %arg9[%c0_153, %c200], %102 {strides = array<i32>} : memref<64x216xf32, #tpu.memory_space<vmem>>, vector<64x8xf32>,
    %c0_154 = arith.constant 0 : index
    %c0_155 = arith.constant 0 : index
    %c2_156 = arith.constant 2 : index
    %c2_157 = arith.constant 2 : index
    %c0_158 = arith.constant 0 : index
    %104 = vector.load %arg4[%c0_154, %c0_155, %c2_156, %c2_157, %c0_158] : memref<1x1x10x10x8xf32, #tpu.memory_space<vmem>>, vector<1x1x8x8x8xf32>
    %105 = vector.shape_cast %104 : vector<1x1x8x8x8xf32> to vector<8x8x8xf32>
    %106 = vector.shape_cast %105 : vector<8x8x8xf32> to vector<64x8xf32>
    %c0_159 = arith.constant 0 : index
    %c208 = arith.constant 208 : index
    %107 = vector.load %arg9[%c0_159, %c208] : memref<64x216xf32, #tpu.memory_space<vmem>>, vector<64x8xf32>
    tpu.vector_store %arg9[%c0_159, %c208], %106 {strides = array<i32>} : memref<64x216xf32, #tpu.memory_space<vmem>>, vector<64x8xf32>,
    %c0_160 = arith.constant 0 : index
    %c0_161 = arith.constant 0 : index
    %108 = vector.load %arg9[%c0_160, %c0_161] : memref<64x216xf32, #tpu.memory_space<vmem>>, vector<64x216xf32>
    %109 = arith.truncf %108 : vector<64x216xf32> to vector<64x216xbf16>
    %c0_162 = arith.constant 0 : index
    %c0_163 = arith.constant 0 : index
    %110 = vector.load %arg5[%c0_162, %c0_163] : memref<216x16xbf16, #tpu.memory_space<vmem>>, vector<216x16xbf16>
    %cst = arith.constant dense<0.000000e+00> : vector<64x16xf32>
    %111 = tpu.matmul %109, %110, %cst {dimension_numbers = #tpu.dot_dimension_numbers<[1], [0], [0], [1], [0, 0, 1, 1], [], []>} : vector<64x216xbf16>, vector<216x16xbf16>, vector<64x16xf32> -> vector<64x16xf32>
    %c0_164 = arith.constant 0 : index
    %c0_165 = arith.constant 0 : index
    %112 = vector.load %arg6[%c0_164, %c0_165] : memref<1x16xf32, #tpu.memory_space<vmem>>, vector<1x16xf32>
    %113 = vector.broadcast %112 : vector<1x16xf32> to vector<64x16xf32>
    %114 = arith.mulf %111, %113 : vector<64x16xf32>
    %c0_166 = arith.constant 0 : index
    %c0_167 = arith.constant 0 : index
    %115 = vector.load %arg7[%c0_166, %c0_167] : memref<1x16xf32, #tpu.memory_space<vmem>>, vector<1x16xf32>
    %116 = vector.broadcast %115 : vector<1x16xf32> to vector<64x16xf32>
    %117 = arith.addf %114, %116 : vector<64x16xf32>
    %cst_168 = arith.constant 0.000000e+00 : f32
    %118 = vector.broadcast %cst_168 : f32 to vector<64x16xf32>
    %119 = arith.maximumf %117, %118 : vector<64x16xf32>
    %c0_169 = arith.constant 0 : index
    %c0_170 = arith.constant 0 : index
    %c0_171 = arith.constant 0 : index
    %c0_172 = arith.constant 0 : index
    %120 = vector.load %arg8[%c0_169, %c0_170, %c0_171, %c0_172] : memref<1x1x64x16xf32, #tpu.memory_space<vmem>>, vector<1x1x64x16xf32>
    %121 = vector.shape_cast %120 : vector<1x1x64x16xf32> to vector<64x16xf32>
    %122 = vector.shape_cast %119 : vector<64x16xf32> to vector<1x1x64x16xf32>
    tpu.vector_store %arg8[%c0_169, %c0_170, %c0_171, %c0_172], %122 {strides = array<i32>} : memref<1x1x64x16xf32, #tpu.memory_space<vmem>>, vector<1x1x64x16xf32>,
    return
  }
  func.func @transform_0(%arg0: i32, %arg1: i32) -> (i32, i32, i32, i32, i32) {
    %c0_i32 = arith.constant 0 : i32
    %0 = arith.addi %arg1, %c0_i32 : i32
    %c0_i32_0 = arith.constant 0 : i32
    %c0_i32_1 = arith.constant 0 : i32
    %c0_i32_2 = arith.constant 0 : i32
    %c0_i32_3 = arith.constant 0 : i32
    return %arg0, %0, %c0_i32_0, %c0_i32_1, %c0_i32_2 : i32, i32, i32, i32, i32
  }
  func.func @transform_1(%arg0: i32, %arg1: i32) -> (i32, i32, i32, i32, i32) {
    %c1_i32 = arith.constant 1 : i32
    %0 = arith.addi %arg1, %c1_i32 : i32
    %c0_i32 = arith.constant 0 : i32
    %c0_i32_0 = arith.constant 0 : i32
    %c0_i32_1 = arith.constant 0 : i32
    %c0_i32_2 = arith.constant 0 : i32
    return %arg0, %0, %c0_i32, %c0_i32_0, %c0_i32_1 : i32, i32, i32, i32, i32
  }
  func.func @transform_2(%arg0: i32, %arg1: i32) -> (i32, i32, i32, i32, i32) {
    %c2_i32 = arith.constant 2 : i32
    %0 = arith.addi %arg1, %c2_i32 : i32
    %c0_i32 = arith.constant 0 : i32
    %c0_i32_0 = arith.constant 0 : i32
    %c0_i32_1 = arith.constant 0 : i32
    %c0_i32_2 = arith.constant 0 : i32
    return %arg0, %0, %c0_i32, %c0_i32_0, %c0_i32_1 : i32, i32, i32, i32, i32
  }
  func.func @transform_3(%arg0: i32, %arg1: i32) -> (i32, i32) {
    %c0_i32 = arith.constant 0 : i32
    %c0_i32_0 = arith.constant 0 : i32
    %c0_i32_1 = arith.constant 0 : i32
    return %c0_i32, %c0_i32_0 : i32, i32
  }
  func.func @transform_4(%arg0: i32, %arg1: i32) -> (i32, i32) {
    %c0_i32 = arith.constant 0 : i32
    %c0_i32_0 = arith.constant 0 : i32
    %c0_i32_1 = arith.constant 0 : i32
    return %c0_i32, %c0_i32_0 : i32, i32
  }
  func.func @transform_5(%arg0: i32, %arg1: i32) -> (i32, i32) {
    %c0_i32 = arith.constant 0 : i32
    %c0_i32_0 = arith.constant 0 : i32
    %c0_i32_1 = arith.constant 0 : i32
    return %c0_i32, %c0_i32_0 : i32, i32
  }
  func.func @transform_6(%arg0: i32, %arg1: i32) -> (i32, i32, i32, i32) {
    %c0_i32 = arith.constant 0 : i32
    %c0_i32_0 = arith.constant 0 : i32
    %c0_i32_1 = arith.constant 0 : i32
    return %arg0, %arg1, %c0_i32, %c0_i32_0 : i32, i32, i32, i32
  }
}

module attributes {stable_mosaic.version = 11 : i64} {
  func.func @_conv_m2_kernel(%arg0: i32, %arg1: i32, %arg2: memref<1x1x10x10x16xf32, #tpu.memory_space<vmem>>, %arg3: memref<144x8xbf16, #tpu.memory_space<vmem>>, %arg4: memref<1x1x64x8xf32, #tpu.memory_space<vmem>>, %arg5: memref<1x1x64x8xf32, #tpu.memory_space<vmem>>, %arg6: memref<64x144xf32, #tpu.memory_space<vmem>>) attributes {dimension_semantics = [#tpu.dimension_semantics<parallel>, #tpu.dimension_semantics<parallel>], iteration_bounds = array<i64: 2, 4>, scalar_prefetch = 0 : i64, scratch_operands = 1 : i64, tpu.core_type = #tpu.core_type<tc>, window_params = [{transform_indices = @transform_0, window_bounds = array<i64: 1, 1, 10, 10, 16>}, {pipeline_mode = #tpu.pipeline_mode<synchronous>, transform_indices = @transform_1, window_bounds = array<i64: 144, 8>}, {transform_indices = @transform_2, window_bounds = array<i64: 1, 1, 64, 8>}, {transform_indices = @transform_3, window_bounds = array<i64: 1, 1, 64, 8>}]} {
    %c0 = arith.constant 0 : index
    %c0_0 = arith.constant 0 : index
    %c0_1 = arith.constant 0 : index
    %c0_2 = arith.constant 0 : index
    %c0_3 = arith.constant 0 : index
    %0 = vector.load %arg2[%c0, %c0_0, %c0_1, %c0_2, %c0_3] : memref<1x1x10x10x16xf32, #tpu.memory_space<vmem>>, vector<1x1x8x8x16xf32>
    %1 = vector.shape_cast %0 : vector<1x1x8x8x16xf32> to vector<8x8x16xf32>
    %2 = vector.shape_cast %1 : vector<8x8x16xf32> to vector<64x16xf32>
    %c0_4 = arith.constant 0 : index
    %c0_5 = arith.constant 0 : index
    %3 = vector.load %arg6[%c0_4, %c0_5] : memref<64x144xf32, #tpu.memory_space<vmem>>, vector<64x16xf32>
    tpu.vector_store %arg6[%c0_4, %c0_5], %2 {strides = array<i32>} : memref<64x144xf32, #tpu.memory_space<vmem>>, vector<64x16xf32>,
    %c0_6 = arith.constant 0 : index
    %c0_7 = arith.constant 0 : index
    %c0_8 = arith.constant 0 : index
    %c1 = arith.constant 1 : index
    %c0_9 = arith.constant 0 : index
    %4 = vector.load %arg2[%c0_6, %c0_7, %c0_8, %c1, %c0_9] : memref<1x1x10x10x16xf32, #tpu.memory_space<vmem>>, vector<1x1x8x8x16xf32>
    %5 = vector.shape_cast %4 : vector<1x1x8x8x16xf32> to vector<8x8x16xf32>
    %6 = vector.shape_cast %5 : vector<8x8x16xf32> to vector<64x16xf32>
    %c0_10 = arith.constant 0 : index
    %c16 = arith.constant 16 : index
    %7 = vector.load %arg6[%c0_10, %c16] : memref<64x144xf32, #tpu.memory_space<vmem>>, vector<64x16xf32>
    tpu.vector_store %arg6[%c0_10, %c16], %6 {strides = array<i32>} : memref<64x144xf32, #tpu.memory_space<vmem>>, vector<64x16xf32>,
    %c0_11 = arith.constant 0 : index
    %c0_12 = arith.constant 0 : index
    %c0_13 = arith.constant 0 : index
    %c2 = arith.constant 2 : index
    %c0_14 = arith.constant 0 : index
    %8 = vector.load %arg2[%c0_11, %c0_12, %c0_13, %c2, %c0_14] : memref<1x1x10x10x16xf32, #tpu.memory_space<vmem>>, vector<1x1x8x8x16xf32>
    %9 = vector.shape_cast %8 : vector<1x1x8x8x16xf32> to vector<8x8x16xf32>
    %10 = vector.shape_cast %9 : vector<8x8x16xf32> to vector<64x16xf32>
    %c0_15 = arith.constant 0 : index
    %c32 = arith.constant 32 : index
    %11 = vector.load %arg6[%c0_15, %c32] : memref<64x144xf32, #tpu.memory_space<vmem>>, vector<64x16xf32>
    tpu.vector_store %arg6[%c0_15, %c32], %10 {strides = array<i32>} : memref<64x144xf32, #tpu.memory_space<vmem>>, vector<64x16xf32>,
    %c0_16 = arith.constant 0 : index
    %c0_17 = arith.constant 0 : index
    %c1_18 = arith.constant 1 : index
    %c0_19 = arith.constant 0 : index
    %c0_20 = arith.constant 0 : index
    %12 = vector.load %arg2[%c0_16, %c0_17, %c1_18, %c0_19, %c0_20] : memref<1x1x10x10x16xf32, #tpu.memory_space<vmem>>, vector<1x1x8x8x16xf32>
    %13 = vector.shape_cast %12 : vector<1x1x8x8x16xf32> to vector<8x8x16xf32>
    %14 = vector.shape_cast %13 : vector<8x8x16xf32> to vector<64x16xf32>
    %c0_21 = arith.constant 0 : index
    %c48 = arith.constant 48 : index
    %15 = vector.load %arg6[%c0_21, %c48] : memref<64x144xf32, #tpu.memory_space<vmem>>, vector<64x16xf32>
    tpu.vector_store %arg6[%c0_21, %c48], %14 {strides = array<i32>} : memref<64x144xf32, #tpu.memory_space<vmem>>, vector<64x16xf32>,
    %c0_22 = arith.constant 0 : index
    %c0_23 = arith.constant 0 : index
    %c1_24 = arith.constant 1 : index
    %c1_25 = arith.constant 1 : index
    %c0_26 = arith.constant 0 : index
    %16 = vector.load %arg2[%c0_22, %c0_23, %c1_24, %c1_25, %c0_26] : memref<1x1x10x10x16xf32, #tpu.memory_space<vmem>>, vector<1x1x8x8x16xf32>
    %17 = vector.shape_cast %16 : vector<1x1x8x8x16xf32> to vector<8x8x16xf32>
    %18 = vector.shape_cast %17 : vector<8x8x16xf32> to vector<64x16xf32>
    %c0_27 = arith.constant 0 : index
    %c64 = arith.constant 64 : index
    %19 = vector.load %arg6[%c0_27, %c64] : memref<64x144xf32, #tpu.memory_space<vmem>>, vector<64x16xf32>
    tpu.vector_store %arg6[%c0_27, %c64], %18 {strides = array<i32>} : memref<64x144xf32, #tpu.memory_space<vmem>>, vector<64x16xf32>,
    %c0_28 = arith.constant 0 : index
    %c0_29 = arith.constant 0 : index
    %c1_30 = arith.constant 1 : index
    %c2_31 = arith.constant 2 : index
    %c0_32 = arith.constant 0 : index
    %20 = vector.load %arg2[%c0_28, %c0_29, %c1_30, %c2_31, %c0_32] : memref<1x1x10x10x16xf32, #tpu.memory_space<vmem>>, vector<1x1x8x8x16xf32>
    %21 = vector.shape_cast %20 : vector<1x1x8x8x16xf32> to vector<8x8x16xf32>
    %22 = vector.shape_cast %21 : vector<8x8x16xf32> to vector<64x16xf32>
    %c0_33 = arith.constant 0 : index
    %c80 = arith.constant 80 : index
    %23 = vector.load %arg6[%c0_33, %c80] : memref<64x144xf32, #tpu.memory_space<vmem>>, vector<64x16xf32>
    tpu.vector_store %arg6[%c0_33, %c80], %22 {strides = array<i32>} : memref<64x144xf32, #tpu.memory_space<vmem>>, vector<64x16xf32>,
    %c0_34 = arith.constant 0 : index
    %c0_35 = arith.constant 0 : index
    %c2_36 = arith.constant 2 : index
    %c0_37 = arith.constant 0 : index
    %c0_38 = arith.constant 0 : index
    %24 = vector.load %arg2[%c0_34, %c0_35, %c2_36, %c0_37, %c0_38] : memref<1x1x10x10x16xf32, #tpu.memory_space<vmem>>, vector<1x1x8x8x16xf32>
    %25 = vector.shape_cast %24 : vector<1x1x8x8x16xf32> to vector<8x8x16xf32>
    %26 = vector.shape_cast %25 : vector<8x8x16xf32> to vector<64x16xf32>
    %c0_39 = arith.constant 0 : index
    %c96 = arith.constant 96 : index
    %27 = vector.load %arg6[%c0_39, %c96] : memref<64x144xf32, #tpu.memory_space<vmem>>, vector<64x16xf32>
    tpu.vector_store %arg6[%c0_39, %c96], %26 {strides = array<i32>} : memref<64x144xf32, #tpu.memory_space<vmem>>, vector<64x16xf32>,
    %c0_40 = arith.constant 0 : index
    %c0_41 = arith.constant 0 : index
    %c2_42 = arith.constant 2 : index
    %c1_43 = arith.constant 1 : index
    %c0_44 = arith.constant 0 : index
    %28 = vector.load %arg2[%c0_40, %c0_41, %c2_42, %c1_43, %c0_44] : memref<1x1x10x10x16xf32, #tpu.memory_space<vmem>>, vector<1x1x8x8x16xf32>
    %29 = vector.shape_cast %28 : vector<1x1x8x8x16xf32> to vector<8x8x16xf32>
    %30 = vector.shape_cast %29 : vector<8x8x16xf32> to vector<64x16xf32>
    %c0_45 = arith.constant 0 : index
    %c112 = arith.constant 112 : index
    %31 = vector.load %arg6[%c0_45, %c112] : memref<64x144xf32, #tpu.memory_space<vmem>>, vector<64x16xf32>
    tpu.vector_store %arg6[%c0_45, %c112], %30 {strides = array<i32>} : memref<64x144xf32, #tpu.memory_space<vmem>>, vector<64x16xf32>,
    %c0_46 = arith.constant 0 : index
    %c0_47 = arith.constant 0 : index
    %c2_48 = arith.constant 2 : index
    %c2_49 = arith.constant 2 : index
    %c0_50 = arith.constant 0 : index
    %32 = vector.load %arg2[%c0_46, %c0_47, %c2_48, %c2_49, %c0_50] : memref<1x1x10x10x16xf32, #tpu.memory_space<vmem>>, vector<1x1x8x8x16xf32>
    %33 = vector.shape_cast %32 : vector<1x1x8x8x16xf32> to vector<8x8x16xf32>
    %34 = vector.shape_cast %33 : vector<8x8x16xf32> to vector<64x16xf32>
    %c0_51 = arith.constant 0 : index
    %c128 = arith.constant 128 : index
    %35 = vector.load %arg6[%c0_51, %c128] : memref<64x144xf32, #tpu.memory_space<vmem>>, vector<64x16xf32>
    tpu.vector_store %arg6[%c0_51, %c128], %34 {strides = array<i32>} : memref<64x144xf32, #tpu.memory_space<vmem>>, vector<64x16xf32>,
    %c0_52 = arith.constant 0 : index
    %c0_53 = arith.constant 0 : index
    %36 = vector.load %arg6[%c0_52, %c0_53] : memref<64x144xf32, #tpu.memory_space<vmem>>, vector<64x144xf32>
    %37 = arith.truncf %36 : vector<64x144xf32> to vector<64x144xbf16>
    %c0_54 = arith.constant 0 : index
    %c0_55 = arith.constant 0 : index
    %38 = vector.load %arg3[%c0_54, %c0_55] : memref<144x8xbf16, #tpu.memory_space<vmem>>, vector<144x8xbf16>
    %cst = arith.constant dense<0.000000e+00> : vector<64x8xf32>
    %39 = tpu.matmul %37, %38, %cst {dimension_numbers = #tpu.dot_dimension_numbers<[1], [0], [0], [1], [0, 0, 1, 1], [], []>} : vector<64x144xbf16>, vector<144x8xbf16>, vector<64x8xf32> -> vector<64x8xf32>
    %c0_56 = arith.constant 0 : index
    %c0_57 = arith.constant 0 : index
    %c0_58 = arith.constant 0 : index
    %c0_59 = arith.constant 0 : index
    %40 = vector.load %arg4[%c0_56, %c0_57, %c0_58, %c0_59] : memref<1x1x64x8xf32, #tpu.memory_space<vmem>>, vector<1x1x64x8xf32>
    %41 = vector.shape_cast %40 : vector<1x1x64x8xf32> to vector<64x8xf32>
    %42 = arith.addf %39, %41 : vector<64x8xf32>
    %c0_60 = arith.constant 0 : index
    %c0_61 = arith.constant 0 : index
    %c0_62 = arith.constant 0 : index
    %c0_63 = arith.constant 0 : index
    %43 = vector.load %arg5[%c0_60, %c0_61, %c0_62, %c0_63] : memref<1x1x64x8xf32, #tpu.memory_space<vmem>>, vector<1x1x64x8xf32>
    %44 = vector.shape_cast %43 : vector<1x1x64x8xf32> to vector<64x8xf32>
    %45 = vector.shape_cast %42 : vector<64x8xf32> to vector<1x1x64x8xf32>
    tpu.vector_store %arg5[%c0_60, %c0_61, %c0_62, %c0_63], %45 {strides = array<i32>} : memref<1x1x64x8xf32, #tpu.memory_space<vmem>>, vector<1x1x64x8xf32>,
    return
  }
  func.func @transform_0(%arg0: i32, %arg1: i32) -> (i32, i32, i32, i32, i32) {
    %c0_i32 = arith.constant 0 : i32
    %c0_i32_0 = arith.constant 0 : i32
    %c0_i32_1 = arith.constant 0 : i32
    %c0_i32_2 = arith.constant 0 : i32
    return %arg0, %arg1, %c0_i32, %c0_i32_0, %c0_i32_1 : i32, i32, i32, i32, i32
  }
  func.func @transform_1(%arg0: i32, %arg1: i32) -> (i32, i32) {
    %c0_i32 = arith.constant 0 : i32
    %c0_i32_0 = arith.constant 0 : i32
    %c0_i32_1 = arith.constant 0 : i32
    return %c0_i32, %c0_i32_0 : i32, i32
  }
  func.func @transform_2(%arg0: i32, %arg1: i32) -> (i32, i32, i32, i32) {
    %c0_i32 = arith.constant 0 : i32
    %c0_i32_0 = arith.constant 0 : i32
    %c0_i32_1 = arith.constant 0 : i32
    return %arg0, %arg1, %c0_i32, %c0_i32_0 : i32, i32, i32, i32
  }
  func.func @transform_3(%arg0: i32, %arg1: i32) -> (i32, i32, i32, i32) {
    %c0_i32 = arith.constant 0 : i32
    %c0_i32_0 = arith.constant 0 : i32
    %c0_i32_1 = arith.constant 0 : i32
    return %arg0, %arg1, %c0_i32, %c0_i32_0 : i32, i32, i32, i32
  }
}

</mosaic_0001>

<llo_original>
// kernel: mf_unit_pallas.3
$region0: #{mf_unit_pallas.3}
  #allocation0 [shape = 'u32[]', space=smem, size = 0x4, offset = 0x4, fixed_abs, tag = 'smem constant byte address 0x4 - core index']
  #allocation1 [shape = 'u32[144,128]{1,0:T(1,128)}', space=vmem, size = 0x12000, scoped, tag = 'internal scratch']
  %s0 = inlined_call_operand.vmem [shape: f32[512,8], index: 0, kind: input, shape index: {}]
  %s1 = inlined_call_operand.vmem [shape: f32[1,8], index: 1, kind: input, shape index: {}]
  %s2 = inlined_call_operand.vmem [shape: f32[1,8], index: 2, kind: input, shape index: {}]
  %s3 = inlined_call_operand.vmem [shape: bf16[8,4], index: 3, kind: input, shape index: {}]
  %s4 = inlined_call_operand.vmem [shape: f32[1,4], index: 4, kind: input, shape index: {}]
  %s5 = inlined_call_operand.vmem [shape: f32[1,4], index: 5, kind: input, shape index: {}]
  %s6 = inlined_call_operand.vmem [shape: bf16[4,8], index: 6, kind: input, shape index: {}]
  %s7 = inlined_call_operand.vmem [shape: f32[1,8], index: 7, kind: input, shape index: {}]
  %s8 = inlined_call_operand.vmem [shape: f32[1,8], index: 8, kind: input, shape index: {}]
  %s9 = inlined_call_operand.vmem [shape: f32[512,8], index: 9, kind: output, shape index: {}]
  %s10 = sld [smem:[#allocation0]]
  $region69: #{mf_unit_pallas.3} parent=0
    _
  %s12 = ssub.s32 1, %s10
  %s13 = scalar_select 0, %s12, %s10
  loop: start=0, step=1, limit=4
  $region2: #{mf_unit_pallas.3} parent=0 // loop_pre_header
    _
  $region3: #{mf_unit_pallas.3} parent=0 // loop_header
    %s15 = sphi 0, %s19
    %p16 = scmp.ge.s32.totalorder %s15, 4
    %s25 = sphi 0, %s27
    %s28 = sphi 0, %s25
    %s29 = sphi 0, %s28
    %s45 = sphi 0, %s29
    %s49 = sphi 0, %s49
    %s51 = sphi 0, %s49
    %s52 = sphi 0, %s51
    %s66 = sphi 0, %s52
    %s70 = sphi 0, %s70
    %s72 = sphi 0, %s70
    %s73 = sphi 0, %s72
    %s87 = sphi 0, %s73
    %s91 = sphi 0, %s91
    %s93 = sphi 0, %s91
    %s94 = sphi 0, %s93
    %s108 = sphi 0, %s94
    %s112 = sphi 0, %s112
    %s114 = sphi 0, %s112
    %s115 = sphi 0, %s114
    %s129 = sphi 0, %s115
    %s133 = sphi 0, %s133
    %s135 = sphi 0, %s133
    %s136 = sphi 0, %s135
    %s150 = sphi 0, %s136
    %s154 = sphi 0, %s154
    %s156 = sphi 0, %s154
    %s157 = sphi 0, %s156
    %s171 = sphi 0, %s157
    %s175 = sphi 0, %s175
    %s177 = sphi 0, %s175
    %s178 = sphi 0, %s177
    %s192 = sphi 0, %s178
    %s196 = sphi 0, %s196
    %s198 = sphi 0, %s196
    %s199 = sphi 0, %s198
    %s213 = sphi 0, %s199
    %s219 = sphi 0, %s221
    %s222 = sphi 0, %s219
    %s223 = sphi 0, %s222
    %s239 = sphi 0, %s223
  $region4: #{mf_unit_pallas.3} parent=0 // loop_header_branch
    %18 = sbr.rel (%p16) target = $region8
  $region5: #{mf_unit_pallas.3} parent=0 // loop_body
    %s20 = ssub.s32 %s15, 1
    %s21 = ssub.s32 %s15, 2
    %s22 = sadd.s32 %s15, 1
    %s23 = ssub.s32 %s15, %s22
    %p24 = scmp.eq.s32.totalorder %s23, 0
    %s26 = sadd.s32 %s25, 1
    %s27 = scalar_select %p24, %s25, %s26
    %p30 = pneg %p24
    %p31 = scmp.eq.s32.totalorder %s15, 1
    %p32 = por %p30, %p31
    %p33 = scmp.ne.s32.totalorder %s25, %s28
    %p34 = scmp.eq.s32.totalorder %s15, 0
    %p35 = por %p33, %p34
    %p36 = scmp.ne.s32.totalorder %s25, %s28
    %p37 = scmp.eq.s32.totalorder %s20, 1
    %p38 = por %p36, %p37
    %p39 = scmp.ne.s32.totalorder %s28, %s29
    %p40 = scmp.eq.s32.totalorder %s20, 0
    %p41 = por %p39, %p40
    %p42 = scmp.ne.s32.totalorder %s28, %s29
    %p43 = scmp.eq.s32.totalorder %s21, 1
    %p44 = por %p42, %p43
    %p46 = scmp.ne.s32.totalorder %s29, %s45
    %p47 = scmp.eq.s32.totalorder %s21, 0
    %p48 = por %p46, %p47
    %s50 = sadd.s32 %s49, 1
    %p53 = scmp.eq.s32.totalorder %s15, 1
    %p54 = scmp.ne.s32.totalorder %s49, %s51
    %p55 = scmp.eq.s32.totalorder %s15, 0
    %p56 = por %p54, %p55
    %p57 = scmp.ne.s32.totalorder %s49, %s51
    %p58 = scmp.eq.s32.totalorder %s20, 1
    %p59 = por %p57, %p58
    %p60 = scmp.ne.s32.totalorder %s51, %s52
    %p61 = scmp.eq.s32.totalorder %s20, 0
    %p62 = por %p60, %p61
    %p63 = scmp.ne.s32.totalorder %s51, %s52
    %p64 = scmp.eq.s32.totalorder %s21, 1
    %p65 = por %p63, %p64
    %p67 = scmp.ne.s32.totalorder %s52, %s66
    %p68 = scmp.eq.s32.totalorder %s21, 0
    %p69 = por %p67, %p68
    %s71 = sadd.s32 %s70, 1
    %p74 = scmp.eq.s32.totalorder %s15, 1
    %p75 = scmp.ne.s32.totalorder %s70, %s72
    %p76 = scmp.eq.s32.totalorder %s15, 0
    %p77 = por %p75, %p76
    %p78 = scmp.ne.s32.totalorder %s70, %s72
    %p79 = scmp.eq.s32.totalorder %s20, 1
    %p80 = por %p78, %p79
    %p81 = scmp.ne.s32.totalorder %s72, %s73
    %p82 = scmp.eq.s32.totalorder %s20, 0
    %p83 = por %p81, %p82
    %p84 = scmp.ne.s32.totalorder %s72, %s73
    %p85 = scmp.eq.s32.totalorder %s21, 1
    %p86 = por %p84, %p85
    %p88 = scmp.ne.s32.totalorder %s73, %s87
    %p89 = scmp.eq.s32.totalorder %s21, 0
    %p90 = por %p88, %p89
    %s92 = sadd.s32 %s91, 1
    %p95 = scmp.eq.s32.totalorder %s15, 1
    %p96 = scmp.ne.s32.totalorder %s91, %s93
    %p97 = scmp.eq.s32.totalorder %s15, 0
    %p98 = por %p96, %p97
    %p99 = scmp.ne.s32.totalorder %s91, %s93
    %p100 = scmp.eq.s32.totalorder %s20, 1
    %p101 = por %p99, %p100
    %p102 = scmp.ne.s32.totalorder %s93, %s94
    %p103 = scmp.eq.s32.totalorder %s20, 0
    %p104 = por %p102, %p103
    %p105 = scmp.ne.s32.totalorder %s93, %s94
    %p106 = scmp.eq.s32.totalorder %s21, 1
    %p107 = por %p105, %p106
    %p109 = scmp.ne.s32.totalorder %s94, %s108
    %p110 = scmp.eq.s32.totalorder %s21, 0
    %p111 = por %p109, %p110
    %s113 = sadd.s32 %s112, 1
    %p116 = scmp.eq.s32.totalorder %s15, 1
    %p117 = scmp.ne.s32.totalorder %s112, %s114
    %p118 = scmp.eq.s32.totalorder %s15, 0
    %p119 = por %p117, %p118
    %p120 = scmp.ne.s32.totalorder %s112, %s114
    %p121 = scmp.eq.s32.totalorder %s20, 1
    %p122 = por %p120, %p121
    %p123 = scmp.ne.s32.totalorder %s114, %s115
    %p124 = scmp.eq.s32.totalorder %s20, 0
    %p125 = por %p123, %p124
    %p126 = scmp.ne.s32.totalorder %s114, %s115
    %p127 = scmp.eq.s32.totalorder %s21, 1
    %p128 = por %p126, %p127
    %p130 = scmp.ne.s32.totalorder %s115, %s129
    %p131 = scmp.eq.s32.totalorder %s21, 0
    %p132 = por %p130, %p131
    %s134 = sadd.s32 %s133, 1
    %p137 = scmp.eq.s32.totalorder %s15, 1
    %p138 = scmp.ne.s32.totalorder %s133, %s135
    %p139 = scmp.eq.s32.totalorder %s15, 0
    %p140 = por %p138, %p139
    %p141 = scmp.ne.s32.totalorder %s133, %s135
    %p142 = scmp.eq.s32.totalorder %s20, 1
    %p143 = por %p141, %p142
    %p144 = scmp.ne.s32.totalorder %s135, %s136
    %p145 = scmp.eq.s32.totalorder %s20, 0
    %p146 = por %p144, %p145
    %p147 = scmp.ne.s32.totalorder %s135, %s136
    %p148 = scmp.eq.s32.totalorder %s21, 1
    %p149 = por %p147, %p148
    %p151 = scmp.ne.s32.totalorder %s136, %s150
    %p152 = scmp.eq.s32.totalorder %s21, 0
    %p153 = por %p151, %p152
    %s155 = sadd.s32 %s154, 1
    %p158 = scmp.eq.s32.totalorder %s15, 1
    %p159 = scmp.ne.s32.totalorder %s154, %s156
    %p160 = scmp.eq.s32.totalorder %s15, 0
    %p161 = por %p159, %p160
    %p162 = scmp.ne.s32.totalorder %s154, %s156
    %p163 = scmp.eq.s32.totalorder %s20, 1
    %p164 = por %p162, %p163
    %p165 = scmp.ne.s32.totalorder %s156, %s157
    %p166 = scmp.eq.s32.totalorder %s20, 0
    %p167 = por %p165, %p166
    %p168 = scmp.ne.s32.totalorder %s156, %s157
    %p169 = scmp.eq.s32.totalorder %s21, 1
    %p170 = por %p168, %p169
    %p172 = scmp.ne.s32.totalorder %s157, %s171
    %p173 = scmp.eq.s32.totalorder %s21, 0
    %p174 = por %p172, %p173
    %s176 = sadd.s32 %s175, 1
    %p179 = scmp.eq.s32.totalorder %s15, 1
    %p180 = scmp.ne.s32.totalorder %s175, %s177
    %p181 = scmp.eq.s32.totalorder %s15, 0
    %p182 = por %p180, %p181
    %p183 = scmp.ne.s32.totalorder %s175, %s177
    %p184 = scmp.eq.s32.totalorder %s20, 1
    %p185 = por %p183, %p184
    %p186 = scmp.ne.s32.totalorder %s177, %s178
    %p187 = scmp.eq.s32.totalorder %s20, 0
    %p188 = por %p186, %p187
    %p189 = scmp.ne.s32.totalorder %s177, %s178
    %p190 = scmp.eq.s32.totalorder %s21, 1
    %p191 = por %p189, %p190
    %p193 = scmp.ne.s32.totalorder %s178, %s192
    %p194 = scmp.eq.s32.totalorder %s21, 0
    %p195 = por %p193, %p194
    %s197 = sadd.s32 %s196, 1
    %p200 = scmp.eq.s32.totalorder %s15, 1
    %p201 = scmp.ne.s32.totalorder %s196, %s198
    %p202 = scmp.eq.s32.totalorder %s15, 0
    %p203 = por %p201, %p202
    %p204 = scmp.ne.s32.totalorder %s196, %s198
    %p205 = scmp.eq.s32.totalorder %s20, 1
    %p206 = por %p204, %p205
    %p207 = scmp.ne.s32.totalorder %s198, %s199
    %p208 = scmp.eq.s32.totalorder %s20, 0
    %p209 = por %p207, %p208
    %p210 = scmp.ne.s32.totalorder %s198, %s199
    %p211 = scmp.eq.s32.totalorder %s21, 1
    %p212 = por %p210, %p211
    %p214 = scmp.ne.s32.totalorder %s199, %s213
    %p215 = scmp.eq.s32.totalorder %s21, 0
    %p216 = por %p214, %p215
    %s217 = ssub.s32 %s15, %s22
    %p218 = scmp.eq.s32.totalorder %s217, 0
    %s220 = sadd.s32 %s219, 1
    %s221 = scalar_select %p218, %s219, %s220
    %p224 = pneg %p218
    %p225 = scmp.eq.s32.totalorder %s15, 1
    %p226 = por %p224, %p225
    %p227 = scmp.ne.s32.totalorder %s219, %s222
    %p228 = scmp.eq.s32.totalorder %s15, 0
    %p229 = por %p227, %p228
    %p230 = scmp.ne.s32.totalorder %s219, %s222
    %p231 = scmp.eq.s32.totalorder %s20, 1
    %p232 = por %p230, %p231
    %p233 = scmp.ne.s32.totalorder %s222, %s223
    %p234 = scmp.eq.s32.totalorder %s20, 0
    %p235 = por %p233, %p234
    %p236 = scmp.ne.s32.totalorder %s222, %s223
    %p237 = scmp.eq.s32.totalorder %s21, 1
    %p238 = por %p236, %p237
    %p240 = scmp.ne.s32.totalorder %s223, %s239
    %p241 = scmp.eq.s32.totalorder %s21, 0
    %p242 = por %p240, %p241
    %p243 = scmp.le.s32.totalorder 1, %s15
    %p244 = scmp.lt.s32.totalorder %s15, 3
    %p245 = pnand %p243, %p244
    %p246 = pneg %p245
    // Predicated region
    $region9: #{mf_unit_pallas.3} parent=5 // pred_check
      _
    $region10: #{mf_unit_pallas.3} parent=5 // pred_check_branch
      %248 = sbr.rel (%p245) target = $region12
    $region11: #{mf_unit_pallas.3} parent=5 // pred_region
      %s249 = ssub.s32 %s15, 1
      // Predicated region
      $region13: #{mf_unit_pallas.3} parent=11 // pred_check
        %p250 = pneg %p62
      $region14: #{mf_unit_pallas.3} parent=11 // pred_check_branch
        %252 = sbr.rel (%p250) target = $region16
      $region15: #{mf_unit_pallas.3} parent=11 // pred_region
        _
      $region16: #{mf_unit_pallas.3} parent=11 // pred_fallthru
        _
      // Predicated region
      $region17: #{mf_unit_pallas.3} parent=11 // pred_check
        %p253 = pneg %p83
      $region18: #{mf_unit_pallas.3} parent=11 // pred_check_branch
        %255 = sbr.rel (%p253) target = $region20
      $region19: #{mf_unit_pallas.3} parent=11 // pred_region
        _
      $region20: #{mf_unit_pallas.3} parent=11 // pred_fallthru
        _
      // Predicated region
      $region21: #{mf_unit_pallas.3} parent=11 // pred_check
        %p256 = pneg %p104
      $region22: #{mf_unit_pallas.3} parent=11 // pred_check_branch
        %258 = sbr.rel (%p256) target = $region24
      $region23: #{mf_unit_pallas.3} parent=11 // pred_region
        _
      $region24: #{mf_unit_pallas.3} parent=11 // pred_fallthru
        _
      // Predicated region
      $region25: #{mf_unit_pallas.3} parent=11 // pred_check
        %p259 = pneg %p125
      $region26: #{mf_unit_pallas.3} parent=11 // pred_check_branch
        %261 = sbr.rel (%p259) target = $region28
      $region27: #{mf_unit_pallas.3} parent=11 // pred_region
        _
      $region28: #{mf_unit_pallas.3} parent=11 // pred_fallthru
        _
      // Predicated region
      $region29: #{mf_unit_pallas.3} parent=11 // pred_check
        %p262 = pneg %p146
      $region30: #{mf_unit_pallas.3} parent=11 // pred_check_branch
        %264 = sbr.rel (%p262) target = $region32
      $region31: #{mf_unit_pallas.3} parent=11 // pred_region
        _
      $region32: #{mf_unit_pallas.3} parent=11 // pred_fallthru
        _
      // Predicated region
      $region33: #{mf_unit_pallas.3} parent=11 // pred_check
        %p265 = pneg %p167
      $region34: #{mf_unit_pallas.3} parent=11 // pred_check_branch
        %267 = sbr.rel (%p265) target = $region36
      $region35: #{mf_unit_pallas.3} parent=11 // pred_region
        _
      $region36: #{mf_unit_pallas.3} parent=11 // pred_fallthru
        _
      // Predicated region
      $region37: #{mf_unit_pallas.3} parent=11 // pred_check
        %p268 = pneg %p188
      $region38: #{mf_unit_pallas.3} parent=11 // pred_check_branch
        %270 = sbr.rel (%p268) target = $region40
      $region39: #{mf_unit_pallas.3} parent=11 // pred_region
        _
      $region40: #{mf_unit_pallas.3} parent=11 // pred_fallthru
        _
      // Predicated region
      $region41: #{mf_unit_pallas.3} parent=11 // pred_check
        %p271 = pneg %p209
      $region42: #{mf_unit_pallas.3} parent=11 // pred_check_branch
        %273 = sbr.rel (%p271) target = $region44
      $region43: #{mf_unit_pallas.3} parent=11 // pred_region
        _
      $region44: #{mf_unit_pallas.3} parent=11 // pred_fallthru
        _
    $region12: #{mf_unit_pallas.3} parent=5 // pred_fallthru
      _
    %p274 = scmp.lt.s32.totalorder %s15, 2
    // Predicated region
    $region45: #{mf_unit_pallas.3} parent=5 // pred_check
      %p275 = pneg %p274
    $region46: #{mf_unit_pallas.3} parent=5 // pred_check_branch
      %277 = sbr.rel (%p275) target = $region48
    $region47: #{mf_unit_pallas.3} parent=5 // pred_region
      // Predicated region
      $region49: #{mf_unit_pallas.3} parent=47 // pred_check
        %p278 = pneg %p35
      $region50: #{mf_unit_pallas.3} parent=47 // pred_check_branch
        %280 = sbr.rel (%p278) target = $region52
      $region51: #{mf_unit_pallas.3} parent=47 // pred_region
        %s281 = smul.u32 32, %s15
        %p282 = scmp.lt.s32.totalorder %s281, 63
        %s283 = scalar_select %p282, %s281, 63
        %s284 = smul.addr %s283, 8
        %s285 = scalar_lea.vmem %s0, %s284
        %s286 = smul.u32 32, %s15
      $region52: #{mf_unit_pallas.3} parent=47 // pred_fallthru
        _
    $region48: #{mf_unit_pallas.3} parent=5 // pred_fallthru
      _
    %p287 = scmp.le.s32.totalorder 1, %s15
    %p288 = scmp.lt.s32.totalorder %s15, 3
    %p289 = pnand %p287, %p288
    %p290 = pneg %p289
    // Predicated region
    $region53: #{mf_unit_pallas.3} parent=5 // pred_check
      _
    $region54: #{mf_unit_pallas.3} parent=5 // pred_check_branch
      %292 = sbr.rel (%p289) target = $region56
    $region55: #{mf_unit_pallas.3} parent=5 // pred_region
      %s293 = ssub.s32 %s15, 1
      %s294 = smul.u32 32, %s20
      %p295 = scmp.lt.s32.totalorder %s294, 63
      %s296 = scalar_select %p295, %s294, 63
      %s297 = smul.addr %s296, 8
      %s298 = scalar_lea.vmem %s0, %s297
      %p299 = pneg %p41
      %p300 = pneg %p38
      %p301 = pneg %p62
      %p302 = pneg %p59
      %p303 = pneg %p83
      %p304 = pneg %p80
      %p305 = pneg %p104
      %p306 = pneg %p101
      %p307 = pneg %p125
      %p308 = pneg %p122
      %p309 = pneg %p146
      %p310 = pneg %p143
      %p311 = pneg %p167
      %p312 = pneg %p164
      %p313 = pneg %p188
      %p314 = pneg %p185
      %p315 = pneg %p209
      %p316 = pneg %p206
      %p317 = pneg %p235
      %p318 = pneg %p232
      %s319 = smul.u32 32, %s20
      %p320 = scmp.lt.s32.totalorder %s319, 63
      %s321 = scalar_select %p320, %s319, 63
      %s322 = smul.addr %s321, 8
      %s323 = scalar_lea.vmem %s9, %s322
      %s324 = smul.u32 32, %s20
      %p325 = scmp.lt.s32.totalorder %s324, 63
      %s326 = scalar_select %p325, %s324, 63
      %s327 = smul.addr %s326, 8
      %s328 = scalar_lea.vmem %s0, %s327
      %s329 = smul.u32 32, %s20
      %s330 = smul.u32 32, %s20
      %p331 = scmp.lt.s32.totalorder %s330, 63
      %s332 = scalar_select %p331, %s330, 63
      %s333 = smul.addr %s332, 8
      %s334 = scalar_lea.vmem %s9, %s333
      %s335 = smul.u32 32, %s20
      %v337 = vld [vmem:[%s328] sm:$0xff]
      %v338 = vld [vmem:[%s328 + $0x8] sm:$0xff]
      %v339 = vld [vmem:[%s328 + $0x10] sm:$0xff]
      %v340 = vld [vmem:[%s328 + $0x18] sm:$0xff]
      %v341 = vld [vmem:[%s328 + $0x20] sm:$0xff]
      %v342 = vld [vmem:[%s328 + $0x28] sm:$0xff]
      %v343 = vld [vmem:[%s328 + $0x30] sm:$0xff]
      %v344 = vld [vmem:[%s328 + $0x38] sm:$0xff]
      %v345 = vld [vmem:[%s328 + $0x40] sm:$0xff]
      %v346 = vld [vmem:[%s328 + $0x48] sm:$0xff]
      %v347 = vld [vmem:[%s328 + $0x50] sm:$0xff]
      %v348 = vld [vmem:[%s328 + $0x58] sm:$0xff]
      %v349 = vld [vmem:[%s328 + $0x60] sm:$0xff]
      %v350 = vld [vmem:[%s328 + $0x68] sm:$0xff]
      %v351 = vld [vmem:[%s328 + $0x70] sm:$0xff]
      %v352 = vld [vmem:[%s328 + $0x78] sm:$0xff]
      %v353 = vld [vmem:[%s328 + $0x80] sm:$0xff]
      %v354 = vld [vmem:[%s328 + $0x88] sm:$0xff]
      %v355 = vld [vmem:[%s328 + $0x90] sm:$0xff]
      %v356 = vld [vmem:[%s328 + $0x98] sm:$0xff]
      %v357 = vld [vmem:[%s328 + $0xa0] sm:$0xff]
      %v358 = vld [vmem:[%s328 + $0xa8] sm:$0xff]
      %v359 = vld [vmem:[%s328 + $0xb0] sm:$0xff]
      %v360 = vld [vmem:[%s328 + $0xb8] sm:$0xff]
      %v361 = vld [vmem:[%s328 + $0xc0] sm:$0xff]
      %v362 = vld [vmem:[%s328 + $0xc8] sm:$0xff]
      %v363 = vld [vmem:[%s328 + $0xd0] sm:$0xff]
      %v364 = vld [vmem:[%s328 + $0xd8] sm:$0xff]
      %v365 = vld [vmem:[%s328 + $0xe0] sm:$0xff]
      %v366 = vld [vmem:[%s328 + $0xe8] sm:$0xff]
      %v367 = vld [vmem:[%s328 + $0xf0] sm:$0xff]
      %v368 = vld [vmem:[%s328 + $0xf8] sm:$0xff]
      %v369 = vld [vmem:[%s1] sm:$0x1]
      %v371 = vlaneseq
      %v372 = vshrl.u32 %v371, 7
      %v373 = vsub.s32 0, %v372
      %v374 = vrot.slane %v369, %v373
      %v376 = vmul.f32 %v337, %v374
      %v377 = vmul.f32 %v338, %v374
      %v378 = vmul.f32 %v339, %v374
      %v379 = vmul.f32 %v340, %v374
      %v380 = vmul.f32 %v341, %v374
      %v381 = vmul.f32 %v342, %v374
      %v382 = vmul.f32 %v343, %v374
      %v383 = vmul.f32 %v344, %v374
      %v384 = vmul.f32 %v345, %v374
      %v385 = vmul.f32 %v346, %v374
      %v386 = vmul.f32 %v347, %v374
      %v387 = vmul.f32 %v348, %v374
      %v388 = vmul.f32 %v349, %v374
      %v389 = vmul.f32 %v350, %v374
      %v390 = vmul.f32 %v351, %v374
      %v391 = vmul.f32 %v352, %v374
      %v392 = vmul.f32 %v353, %v374
      %v393 = vmul.f32 %v354, %v374
      %v394 = vmul.f32 %v355, %v374
      %v395 = vmul.f32 %v356, %v374
      %v396 = vmul.f32 %v357, %v374
      %v397 = vmul.f32 %v358, %v374
      %v398 = vmul.f32 %v359, %v374
      %v399 = vmul.f32 %v360, %v374
      %v400 = vmul.f32 %v361, %v374
      %v401 = vmul.f32 %v362, %v374
      %v402 = vmul.f32 %v363, %v374
      %v403 = vmul.f32 %v364, %v374
      %v404 = vmul.f32 %v365, %v374
      %v405 = vmul.f32 %v366, %v374
      %v406 = vmul.f32 %v367, %v374
      %v407 = vmul.f32 %v368, %v374
      %v408 = vld [vmem:[%s2] sm:$0x1]
      %v410 = vlaneseq
      %v411 = vshrl.u32 %v410, 7
      %v412 = vsub.s32 0, %v411
      %v413 = vrot.slane %v408, %v412
      %v415 = vadd.f32 %v376, %v413
      %v416 = vadd.f32 %v377, %v413
      %v417 = vadd.f32 %v378, %v413
      %v418 = vadd.f32 %v379, %v413
      %v419 = vadd.f32 %v380, %v413
      %v420 = vadd.f32 %v381, %v413
      %v421 = vadd.f32 %v382, %v413
      %v422 = vadd.f32 %v383, %v413
      %v423 = vadd.f32 %v384, %v413
      %v424 = vadd.f32 %v385, %v413
      %v425 = vadd.f32 %v386, %v413
      %v426 = vadd.f32 %v387, %v413
      %v427 = vadd.f32 %v388, %v413
      %v428 = vadd.f32 %v389, %v413
      %v429 = vadd.f32 %v390, %v413
      %v430 = vadd.f32 %v391, %v413
      %v431 = vadd.f32 %v392, %v413
      %v432 = vadd.f32 %v393, %v413
      %v433 = vadd.f32 %v394, %v413
      %v434 = vadd.f32 %v395, %v413
      %v435 = vadd.f32 %v396, %v413
      %v436 = vadd.f32 %v397, %v413
      %v437 = vadd.f32 %v398, %v413
      %v438 = vadd.f32 %v399, %v413
      %v439 = vadd.f32 %v400, %v413
      %v440 = vadd.f32 %v401, %v413
      %v441 = vadd.f32 %v402, %v413
      %v442 = vadd.f32 %v403, %v413
      %v443 = vadd.f32 %v404, %v413
      %v444 = vadd.f32 %v405, %v413
      %v445 = vadd.f32 %v406, %v413
      %v446 = vadd.f32 %v407, %v413
      %v447 = vmax.f32 %v415, 0.0
      %v448 = vmax.f32 %v416, 0.0
      %v449 = vmax.f32 %v417, 0.0
      %v450 = vmax.f32 %v418, 0.0
      %v451 = vmax.f32 %v419, 0.0
      %v452 = vmax.f32 %v420, 0.0
      %v453 = vmax.f32 %v421, 0.0
      %v454 = vmax.f32 %v422, 0.0
      %v455 = vmax.f32 %v423, 0.0
      %v456 = vmax.f32 %v424, 0.0
      %v457 = vmax.f32 %v425, 0.0
      %v458 = vmax.f32 %v426, 0.0
      %v459 = vmax.f32 %v427, 0.0
      %v460 = vmax.f32 %v428, 0.0
      %v461 = vmax.f32 %v429, 0.0
      %v462 = vmax.f32 %v430, 0.0
      %v463 = vmax.f32 %v431, 0.0
      %v464 = vmax.f32 %v432, 0.0
      %v465 = vmax.f32 %v433, 0.0
      %v466 = vmax.f32 %v434, 0.0
      %v467 = vmax.f32 %v435, 0.0
      %v468 = vmax.f32 %v436, 0.0
      %v469 = vmax.f32 %v437, 0.0
      %v470 = vmax.f32 %v438, 0.0
      %v471 = vmax.f32 %v439, 0.0
      %v472 = vmax.f32 %v440, 0.0
      %v473 = vmax.f32 %v441, 0.0
      %v474 = vmax.f32 %v442, 0.0
      %v475 = vmax.f32 %v443, 0.0
      %v476 = vmax.f32 %v444, 0.0
      %v477 = vmax.f32 %v445, 0.0
      %v478 = vmax.f32 %v446, 0.0
      %v479 = vpack.c.bf16 %v448, %v447
      %v480 = vpack.c.bf16 %v450, %v449
      %v481 = vpack.c.bf16 %v452, %v451
      %v482 = vpack.c.bf16 %v454, %v453
      %v483 = vpack.c.bf16 %v456, %v455
      %v484 = vpack.c.bf16 %v458, %v457
      %v485 = vpack.c.bf16 %v460, %v459
      %v486 = vpack.c.bf16 %v462, %v461
      %v487 = vpack.c.bf16 %v464, %v463
      %v488 = vpack.c.bf16 %v466, %v465
      %v489 = vpack.c.bf16 %v468, %v467
      %v490 = vpack.c.bf16 %v470, %v469
      %v491 = vpack.c.bf16 %v472, %v471
      %v492 = vpack.c.bf16 %v474, %v473
      %v493 = vpack.c.bf16 %v476, %v475
      %v494 = vpack.c.bf16 %v478, %v477
      %v495 = vld [vmem:[%s3] sm:$0xf]
      %vm496 = vcmask 64512
      %v498 = vsel %vm496, %v479, 0
      %v501 = vsel %vm496, %v480, 0
      %v504 = vsel %vm496, %v481, 0
      %v507 = vsel %vm496, %v482, 0
      %v510 = vsel %vm496, %v483, 0
      %v513 = vsel %vm496, %v484, 0
      %v516 = vsel %vm496, %v485, 0
      %v519 = vsel %vm496, %v486, 0
      %v522 = vsel %vm496, %v487, 0
      %v525 = vsel %vm496, %v488, 0
      %v528 = vsel %vm496, %v489, 0
      %v531 = vsel %vm496, %v490, 0
      %v534 = vsel %vm496, %v491, 0
      %v537 = vsel %vm496, %v492, 0
      %v540 = vsel %vm496, %v493, 0
      %v543 = vsel %vm496, %v494, 0
      %vm545 = vcmask 1043456
      %v547 = vsel %vm545, %v495, 0
      %549 = vmatprep.subr.bf16.mxu0 0
      %550 = vmatpush1.bf16.msra.mxu0 %v547
      %551 = vmatprep.subr.bf16.mxu0 0
      %552 = vmatpush1.bf16.msra.mxu0 0
      %553 = vmatprep.subr.bf16.mxu0 0
      %554 = vmatpush1.bf16.msra.mxu0 0
      %555 = vmatprep.subr.bf16.mxu0 0
      %556 = vmatpush1.bf16.msra.mxu0 0
      %557 = vmatprep.subr.bf16.mxu0 0
      %558 = vmatpush1.bf16.msra.mxu0 0
      %559 = vmatprep.subr.bf16.mxu0 0
      %560 = vmatpush1.bf16.msra.mxu0 0
      %561 = vmatprep.subr.bf16.mxu0 0
      %562 = vmatpush1.bf16.msra.mxu0 0
      %563 = vmatprep.subr.bf16.mxu0 0
      %564 = vmatpush1.bf16.msra.mxu0 0
      %565 = vmatprep.subr.bf16.mxu0 0
      %566 = vmatpush1.bf16.msra.mxu0 0
      %567 = vmatprep.subr.bf16.mxu0 0
      %568 = vmatpush1.bf16.msra.mxu0 0
      %569 = vmatprep.subr.bf16.mxu0 0
      %570 = vmatpush1.bf16.msra.mxu0 0
      %571 = vmatprep.subr.bf16.mxu0 0
      %572 = vmatpush1.bf16.msra.mxu0 0
      %573 = vmatprep.subr.bf16.mxu0 0
      %574 = vmatpush1.bf16.msra.mxu0 0
      %575 = vmatprep.subr.bf16.mxu0 0
      %576 = vmatpush1.bf16.msra.mxu0 0
      %577 = vmatprep.subr.bf16.mxu0 0
      %578 = vmatpush1.bf16.msra.mxu0 0
      %579 = vmatprep.subr.bf16.mxu0 0
      %580 = vmatpush1.bf16.msra.mxu0 0
      %581 = vmatprep.mubr.bf16.mxu0 0
      %582 = vmatmul.mubr.bf16.gmra.mrb[0].mxu0 %v498
      %v583 = vpop.f32.mrb[0].mxu0
      %v584 = vadd.f32 0.0, %v583
      %v585 = vpop.f32.mrb[0].mxu0
      %v586 = vpop.f32.mrb[0].mxu0
      %v587 = vadd.f32 0.0, %v586
      %v588 = vpop.f32.mrb[0].mxu0
      %589 = vmatprep.mubr.bf16.mxu0 0
      %590 = vmatmul.mubr.bf16.gmra.mrb[0].mxu0 %v501
      %v591 = vpop.f32.mrb[0].mxu0
      %v592 = vadd.f32 0.0, %v591
      %v593 = vpop.f32.mrb[0].mxu0
      %v594 = vpop.f32.mrb[0].mxu0
      %v595 = vadd.f32 0.0, %v594
      %v596 = vpop.f32.mrb[0].mxu0
      %597 = vmatprep.mubr.bf16.mxu0 0
      %598 = vmatmul.mubr.bf16.gmra.mrb[0].mxu0 %v504
      %v599 = vpop.f32.mrb[0].mxu0
      %v600 = vadd.f32 0.0, %v599
      %v601 = vpop.f32.mrb[0].mxu0
      %v602 = vpop.f32.mrb[0].mxu0
      %v603 = vadd.f32 0.0, %v602
      %v604 = vpop.f32.mrb[0].mxu0
      %605 = vmatprep.mubr.bf16.mxu0 0
      %606 = vmatmul.mubr.bf16.gmra.mrb[0].mxu0 %v507
      %v607 = vpop.f32.mrb[0].mxu0
      %v608 = vadd.f32 0.0, %v607
      %v609 = vpop.f32.mrb[0].mxu0
      %v610 = vpop.f32.mrb[0].mxu0
      %v611 = vadd.f32 0.0, %v610
      %v612 = vpop.f32.mrb[0].mxu0
      %613 = vmatprep.mubr.bf16.mxu0 0
      %614 = vmatmul.mubr.bf16.gmra.mrb[0].mxu0 %v510
      %v615 = vpop.f32.mrb[0].mxu0
      %v616 = vadd.f32 0.0, %v615
      %v617 = vpop.f32.mrb[0].mxu0
      %v618 = vpop.f32.mrb[0].mxu0
      %v619 = vadd.f32 0.0, %v618
      %v620 = vpop.f32.mrb[0].mxu0
      %621 = vmatprep.mubr.bf16.mxu0 0
      %622 = vmatmul.mubr.bf16.gmra.mrb[0].mxu0 %v513
      %v623 = vpop.f32.mrb[0].mxu0
      %v624 = vadd.f32 0.0, %v623
      %v625 = vpop.f32.mrb[0].mxu0
      %v626 = vpop.f32.mrb[0].mxu0
      %v627 = vadd.f32 0.0, %v626
      %v628 = vpop.f32.mrb[0].mxu0
      %629 = vmatprep.mubr.bf16.mxu0 0
      %630 = vmatmul.mubr.bf16.gmra.mrb[0].mxu0 %v516
      %v631 = vpop.f32.mrb[0].mxu0
      %v632 = vadd.f32 0.0, %v631
      %v633 = vpop.f32.mrb[0].mxu0
      %v634 = vpop.f32.mrb[0].mxu0
      %v635 = vadd.f32 0.0, %v634
      %v636 = vpop.f32.mrb[0].mxu0
      %637 = vmatprep.mubr.bf16.mxu0 0
      %638 = vmatmul.mubr.bf16.gmra.mrb[0].mxu0 %v519
      %v639 = vpop.f32.mrb[0].mxu0
      %v640 = vadd.f32 0.0, %v639
      %v641 = vpop.f32.mrb[0].mxu0
      %v642 = vpop.f32.mrb[0].mxu0
      %v643 = vadd.f32 0.0, %v642
      %v644 = vpop.f32.mrb[0].mxu0
      %645 = vmatprep.mubr.bf16.mxu0 0
      %646 = vmatmul.mubr.bf16.gmra.mrb[0].mxu0 %v522
      %v647 = vpop.f32.mrb[0].mxu0
      %v648 = vadd.f32 0.0, %v647
      %v649 = vpop.f32.mrb[0].mxu0
      %v650 = vpop.f32.mrb[0].mxu0
      %v651 = vadd.f32 0.0, %v650
      %v652 = vpop.f32.mrb[0].mxu0
      %653 = vmatprep.mubr.bf16.mxu0 0
      %654 = vmatmul.mubr.bf16.gmra.mrb[0].mxu0 %v525
      %v655 = vpop.f32.mrb[0].mxu0
      %v656 = vadd.f32 0.0, %v655
      %v657 = vpop.f32.mrb[0].mxu0
      %v658 = vpop.f32.mrb[0].mxu0
      %v659 = vadd.f32 0.0, %v658
      %v660 = vpop.f32.mrb[0].mxu0
      %661 = vmatprep.mubr.bf16.mxu0 0
      %662 = vmatmul.mubr.bf16.gmra.mrb[0].mxu0 %v528
      %v663 = vpop.f32.mrb[0].mxu0
      %v664 = vadd.f32 0.0, %v663
      %v665 = vpop.f32.mrb[0].mxu0
      %v666 = vpop.f32.mrb[0].mxu0
      %v667 = vadd.f32 0.0, %v666
      %v668 = vpop.f32.mrb[0].mxu0
      %669 = vmatprep.mubr.bf16.mxu0 0
      %670 = vmatmul.mubr.bf16.gmra.mrb[0].mxu0 %v531
      %v671 = vpop.f32.mrb[0].mxu0
      %v672 = vadd.f32 0.0, %v671
      %v673 = vpop.f32.mrb[0].mxu0
      %v674 = vpop.f32.mrb[0].mxu0
      %v675 = vadd.f32 0.0, %v674
      %v676 = vpop.f32.mrb[0].mxu0
      %677 = vmatprep.mubr.bf16.mxu0 0
      %678 = vmatmul.mubr.bf16.gmra.mrb[0].mxu0 %v534
      %v679 = vpop.f32.mrb[0].mxu0
      %v680 = vadd.f32 0.0, %v679
      %v681 = vpop.f32.mrb[0].mxu0
      %v682 = vpop.f32.mrb[0].mxu0
      %v683 = vadd.f32 0.0, %v682
      %v684 = vpop.f32.mrb[0].mxu0
      %685 = vmatprep.mubr.bf16.mxu0 0
      %686 = vmatmul.mubr.bf16.gmra.mrb[0].mxu0 %v537
      %v687 = vpop.f32.mrb[0].mxu0
      %v688 = vadd.f32 0.0, %v687
      %v689 = vpop.f32.mrb[0].mxu0
      %v690 = vpop.f32.mrb[0].mxu0
      %v691 = vadd.f32 0.0, %v690
      %v692 = vpop.f32.mrb[0].mxu0
      %693 = vmatprep.mubr.bf16.mxu0 0
      %694 = vmatmul.mubr.bf16.gmra.mrb[0].mxu0 %v540
      %v695 = vpop.f32.mrb[0].mxu0
      %v696 = vadd.f32 0.0, %v695
      %v697 = vpop.f32.mrb[0].mxu0
      %v698 = vpop.f32.mrb[0].mxu0
      %v699 = vadd.f32 0.0, %v698
      %v700 = vpop.f32.mrb[0].mxu0
      %701 = vmatprep.mubr.bf16.mxu0 0
      %702 = vmatmul.mubr.bf16.gmra.mrb[0].mxu0 %v543
      %v703 = vpop.f32.mrb[0].mxu0
      %v704 = vadd.f32 0.0, %v703
      %v705 = vpop.f32.mrb[0].mxu0
      %v706 = vpop.f32.mrb[0].mxu0
      %v707 = vadd.f32 0.0, %v706
      %v708 = vpop.f32.mrb[0].mxu0
      %709 = vdwg.mxu0
      %v710 = vld [vmem:[%s4] sm:$0x1]
      %v712 = vlaneseq
      %v713 = vshrl.u32 %v712, 7
      %v714 = vsub.s32 0, %v713
      %v715 = vrot.slane %v710, %v714
      %v717 = vmul.f32 %v584, %v715
      %v718 = vmul.f32 %v587, %v715
      %v719 = vmul.f32 %v592, %v715
      %v720 = vmul.f32 %v595, %v715
      %v721 = vmul.f32 %v600, %v715
      %v722 = vmul.f32 %v603, %v715
      %v723 = vmul.f32 %v608, %v715
      %v724 = vmul.f32 %v611, %v715
      %v725 = vmul.f32 %v616, %v715
      %v726 = vmul.f32 %v619, %v715
      %v727 = vmul.f32 %v624, %v715
      %v728 = vmul.f32 %v627, %v715
      %v729 = vmul.f32 %v632, %v715
      %v730 = vmul.f32 %v635, %v715
      %v731 = vmul.f32 %v640, %v715
      %v732 = vmul.f32 %v643, %v715
      %v733 = vmul.f32 %v648, %v715
      %v734 = vmul.f32 %v651, %v715
      %v735 = vmul.f32 %v656, %v715
      %v736 = vmul.f32 %v659, %v715
      %v737 = vmul.f32 %v664, %v715
      %v738 = vmul.f32 %v667, %v715
      %v739 = vmul.f32 %v672, %v715
      %v740 = vmul.f32 %v675, %v715
      %v741 = vmul.f32 %v680, %v715
      %v742 = vmul.f32 %v683, %v715
      %v743 = vmul.f32 %v688, %v715
      %v744 = vmul.f32 %v691, %v715
      %v745 = vmul.f32 %v696, %v715
      %v746 = vmul.f32 %v699, %v715
      %v747 = vmul.f32 %v704, %v715
      %v748 = vmul.f32 %v707, %v715
      %v749 = vld [vmem:[%s5] sm:$0x1]
      %v751 = vlaneseq
      %v752 = vshrl.u32 %v751, 7
      %v753 = vsub.s32 0, %v752
      %v754 = vrot.slane %v749, %v753
      %v756 = vadd.f32 %v717, %v754
      %v757 = vadd.f32 %v718, %v754
      %v758 = vadd.f32 %v719, %v754
      %v759 = vadd.f32 %v720, %v754
      %v760 = vadd.f32 %v721, %v754
      %v761 = vadd.f32 %v722, %v754
      %v762 = vadd.f32 %v723, %v754
      %v763 = vadd.f32 %v724, %v754
      %v764 = vadd.f32 %v725, %v754
      %v765 = vadd.f32 %v726, %v754
      %v766 = vadd.f32 %v727, %v754
      %v767 = vadd.f32 %v728, %v754
      %v768 = vadd.f32 %v729, %v754
      %v769 = vadd.f32 %v730, %v754
      %v770 = vadd.f32 %v731, %v754
      %v771 = vadd.f32 %v732, %v754
      %v772 = vadd.f32 %v733, %v754
      %v773 = vadd.f32 %v734, %v754
      %v774 = vadd.f32 %v735, %v754
      %v775 = vadd.f32 %v736, %v754
      %v776 = vadd.f32 %v737, %v754
      %v777 = vadd.f32 %v738, %v754
      %v778 = vadd.f32 %v739, %v754
      %v779 = vadd.f32 %v740, %v754
      %v780 = vadd.f32 %v741, %v754
      %v781 = vadd.f32 %v742, %v754
      %v782 = vadd.f32 %v743, %v754
      %v783 = vadd.f32 %v744, %v754
      %v784 = vadd.f32 %v745, %v754
      %v785 = vadd.f32 %v746, %v754
      %v786 = vadd.f32 %v747, %v754
      %v787 = vadd.f32 %v748, %v754
      %v788 = vmax.f32 %v756, 0.0
      %v789 = vmax.f32 %v757, 0.0
      %v790 = vmax.f32 %v758, 0.0
      %v791 = vmax.f32 %v759, 0.0
      %v792 = vmax.f32 %v760, 0.0
      %v793 = vmax.f32 %v761, 0.0
      %v794 = vmax.f32 %v762, 0.0
      %v795 = vmax.f32 %v763, 0.0
      %v796 = vmax.f32 %v764, 0.0
      %v797 = vmax.f32 %v765, 0.0
      %v798 = vmax.f32 %v766, 0.0
      %v799 = vmax.f32 %v767, 0.0
      %v800 = vmax.f32 %v768, 0.0
      %v801 = vmax.f32 %v769, 0.0
      %v802 = vmax.f32 %v770, 0.0
      %v803 = vmax.f32 %v771, 0.0
      %v804 = vmax.f32 %v772, 0.0
      %v805 = vmax.f32 %v773, 0.0
      %v806 = vmax.f32 %v774, 0.0
      %v807 = vmax.f32 %v775, 0.0
      %v808 = vmax.f32 %v776, 0.0
      %v809 = vmax.f32 %v777, 0.0
      %v810 = vmax.f32 %v778, 0.0
      %v811 = vmax.f32 %v779, 0.0
      %v812 = vmax.f32 %v780, 0.0
      %v813 = vmax.f32 %v781, 0.0
      %v814 = vmax.f32 %v782, 0.0
      %v815 = vmax.f32 %v783, 0.0
      %v816 = vmax.f32 %v784, 0.0
      %v817 = vmax.f32 %v785, 0.0
      %v818 = vmax.f32 %v786, 0.0
      %v819 = vmax.f32 %v787, 0.0
      %v820 = vpack.c.bf16 %v789, %v788
      %v821 = vpack.c.bf16 %v791, %v790
      %v822 = vpack.c.bf16 %v793, %v792
      %v823 = vpack.c.bf16 %v795, %v794
      %v824 = vpack.c.bf16 %v797, %v796
      %v825 = vpack.c.bf16 %v799, %v798
      %v826 = vpack.c.bf16 %v801, %v800
      %v827 = vpack.c.bf16 %v803, %v802
      %v828 = vpack.c.bf16 %v805, %v804
      %v829 = vpack.c.bf16 %v807, %v806
      %v830 = vpack.c.bf16 %v809, %v808
      %v831 = vpack.c.bf16 %v811, %v810
      %v832 = vpack.c.bf16 %v813, %v812
      %v833 = vpack.c.bf16 %v815, %v814
      %v834 = vpack.c.bf16 %v817, %v816
      %v835 = vpack.c.bf16 %v819, %v818
      %v836 = vld [vmem:[%s6] sm:$0x3]
      %vm837 = vcmask 31744
      %v839 = vsel %vm837, %v820, 0
      %v842 = vsel %vm837, %v821, 0
      %v845 = vsel %vm837, %v822, 0
      %v848 = vsel %vm837, %v823, 0
      %v851 = vsel %vm837, %v824, 0
      %v854 = vsel %vm837, %v825, 0
      %v857 = vsel %vm837, %v826, 0
      %v860 = vsel %vm837, %v827, 0
      %v863 = vsel %vm837, %v828, 0
      %v866 = vsel %vm837, %v829, 0
      %v869 = vsel %vm837, %v830, 0
      %v872 = vsel %vm837, %v831, 0
      %v875 = vsel %vm837, %v832, 0
      %v878 = vsel %vm837, %v833, 0
      %v881 = vsel %vm837, %v834, 0
      %v884 = vsel %vm837, %v835, 0
      %vm886 = vcmask 1041408
      %v888 = vsel %vm886, %v836, 0
      %890 = vmatprep.subr.bf16.mxu0 0
      %891 = vmatpush1.bf16.msra.mxu0 %v888
      %892 = vmatprep.subr.bf16.mxu0 0
      %893 = vmatpush1.bf16.msra.mxu0 0
      %894 = vmatprep.subr.bf16.mxu0 0
      %895 = vmatpush1.bf16.msra.mxu0 0
      %896 = vmatprep.subr.bf16.mxu0 0
      %897 = vmatpush1.bf16.msra.mxu0 0
      %898 = vmatprep.subr.bf16.mxu0 0
      %899 = vmatpush1.bf16.msra.mxu0 0
      %900 = vmatprep.subr.bf16.mxu0 0
      %901 = vmatpush1.bf16.msra.mxu0 0
      %902 = vmatprep.subr.bf16.mxu0 0
      %903 = vmatpush1.bf16.msra.mxu0 0
      %904 = vmatprep.subr.bf16.mxu0 0
      %905 = vmatpush1.bf16.msra.mxu0 0
      %906 = vmatprep.subr.bf16.mxu0 0
      %907 = vmatpush1.bf16.msra.mxu0 0
      %908 = vmatprep.subr.bf16.mxu0 0
      %909 = vmatpush1.bf16.msra.mxu0 0
      %910 = vmatprep.subr.bf16.mxu0 0
      %911 = vmatpush1.bf16.msra.mxu0 0
      %912 = vmatprep.subr.bf16.mxu0 0
      %913 = vmatpush1.bf16.msra.mxu0 0
      %914 = vmatprep.subr.bf16.mxu0 0
      %915 = vmatpush1.bf16.msra.mxu0 0
      %916 = vmatprep.subr.bf16.mxu0 0
      %917 = vmatpush1.bf16.msra.mxu0 0
      %918 = vmatprep.subr.bf16.mxu0 0
      %919 = vmatpush1.bf16.msra.mxu0 0
      %920 = vmatprep.subr.bf16.mxu0 0
      %921 = vmatpush1.bf16.msra.mxu0 0
      %922 = vmatprep.mubr.bf16.mxu0 0
      %923 = vmatmul.mubr.bf16.gmra.mrb[0].mxu0 %v839
      %v924 = vpop.f32.mrb[0].mxu0
      %v925 = vadd.f32 0.0, %v924
      %v926 = vpop.f32.mrb[0].mxu0
      %v927 = vpop.f32.mrb[0].mxu0
      %v928 = vadd.f32 0.0, %v927
      %v929 = vpop.f32.mrb[0].mxu0
      %930 = vmatprep.mubr.bf16.mxu0 0
      %931 = vmatmul.mubr.bf16.gmra.mrb[0].mxu0 %v842
      %v932 = vpop.f32.mrb[0].mxu0
      %v933 = vadd.f32 0.0, %v932
      %v934 = vpop.f32.mrb[0].mxu0
      %v935 = vpop.f32.mrb[0].mxu0
      %v936 = vadd.f32 0.0, %v935
      %v937 = vpop.f32.mrb[0].mxu0
      %938 = vmatprep.mubr.bf16.mxu0 0
      %939 = vmatmul.mubr.bf16.gmra.mrb[0].mxu0 %v845
      %v940 = vpop.f32.mrb[0].mxu0
      %v941 = vadd.f32 0.0, %v940
      %v942 = vpop.f32.mrb[0].mxu0
      %v943 = vpop.f32.mrb[0].mxu0
      %v944 = vadd.f32 0.0, %v943
      %v945 = vpop.f32.mrb[0].mxu0
      %946 = vmatprep.mubr.bf16.mxu0 0
      %947 = vmatmul.mubr.bf16.gmra.mrb[0].mxu0 %v848
      %v948 = vpop.f32.mrb[0].mxu0
      %v949 = vadd.f32 0.0, %v948
      %v950 = vpop.f32.mrb[0].mxu0
      %v951 = vpop.f32.mrb[0].mxu0
      %v952 = vadd.f32 0.0, %v951
      %v953 = vpop.f32.mrb[0].mxu0
      %954 = vmatprep.mubr.bf16.mxu0 0
      %955 = vmatmul.mubr.bf16.gmra.mrb[0].mxu0 %v851
      %v956 = vpop.f32.mrb[0].mxu0
      %v957 = vadd.f32 0.0, %v956
      %v958 = vpop.f32.mrb[0].mxu0
      %v959 = vpop.f32.mrb[0].mxu0
      %v960 = vadd.f32 0.0, %v959
      %v961 = vpop.f32.mrb[0].mxu0
      %962 = vmatprep.mubr.bf16.mxu0 0
      %963 = vmatmul.mubr.bf16.gmra.mrb[0].mxu0 %v854
      %v964 = vpop.f32.mrb[0].mxu0
      %v965 = vadd.f32 0.0, %v964
      %v966 = vpop.f32.mrb[0].mxu0
      %v967 = vpop.f32.mrb[0].mxu0
      %v968 = vadd.f32 0.0, %v967
      %v969 = vpop.f32.mrb[0].mxu0
      %970 = vmatprep.mubr.bf16.mxu0 0
      %971 = vmatmul.mubr.bf16.gmra.mrb[0].mxu0 %v857
      %v972 = vpop.f32.mrb[0].mxu0
      %v973 = vadd.f32 0.0, %v972
      %v974 = vpop.f32.mrb[0].mxu0
      %v975 = vpop.f32.mrb[0].mxu0
      %v976 = vadd.f32 0.0, %v975
      %v977 = vpop.f32.mrb[0].mxu0
      %978 = vmatprep.mubr.bf16.mxu0 0
      %979 = vmatmul.mubr.bf16.gmra.mrb[0].mxu0 %v860
      %v980 = vpop.f32.mrb[0].mxu0
      %v981 = vadd.f32 0.0, %v980
      %v982 = vpop.f32.mrb[0].mxu0
      %v983 = vpop.f32.mrb[0].mxu0
      %v984 = vadd.f32 0.0, %v983
      %v985 = vpop.f32.mrb[0].mxu0
      %986 = vmatprep.mubr.bf16.mxu0 0
      %987 = vmatmul.mubr.bf16.gmra.mrb[0].mxu0 %v863
      %v988 = vpop.f32.mrb[0].mxu0
      %v989 = vadd.f32 0.0, %v988
      %v990 = vpop.f32.mrb[0].mxu0
      %v991 = vpop.f32.mrb[0].mxu0
      %v992 = vadd.f32 0.0, %v991
      %v993 = vpop.f32.mrb[0].mxu0
      %994 = vmatprep.mubr.bf16.mxu0 0
      %995 = vmatmul.mubr.bf16.gmra.mrb[0].mxu0 %v866
      %v996 = vpop.f32.mrb[0].mxu0
      %v997 = vadd.f32 0.0, %v996
      %v998 = vpop.f32.mrb[0].mxu0
      %v999 = vpop.f32.mrb[0].mxu0
      %v1000 = vadd.f32 0.0, %v999
      %v1001 = vpop.f32.mrb[0].mxu0
      %1002 = vmatprep.mubr.bf16.mxu0 0
      %1003 = vmatmul.mubr.bf16.gmra.mrb[0].mxu0 %v869
      %v1004 = vpop.f32.mrb[0].mxu0
      %v1005 = vadd.f32 0.0, %v1004
      %v1006 = vpop.f32.mrb[0].mxu0
      %v1007 = vpop.f32.mrb[0].mxu0
      %v1008 = vadd.f32 0.0, %v1007
      %v1009 = vpop.f32.mrb[0].mxu0
      %1010 = vmatprep.mubr.bf16.mxu0 0
      %1011 = vmatmul.mubr.bf16.gmra.mrb[0].mxu0 %v872
      %v1012 = vpop.f32.mrb[0].mxu0
      %v1013 = vadd.f32 0.0, %v1012
      %v1014 = vpop.f32.mrb[0].mxu0
      %v1015 = vpop.f32.mrb[0].mxu0
      %v1016 = vadd.f32 0.0, %v1015
      %v1017 = vpop.f32.mrb[0].mxu0
      %1018 = vmatprep.mubr.bf16.mxu0 0
      %1019 = vmatmul.mubr.bf16.gmra.mrb[0].mxu0 %v875
      %v1020 = vpop.f32.mrb[0].mxu0
      %v1021 = vadd.f32 0.0, %v1020
      %v1022 = vpop.f32.mrb[0].mxu0
      %v1023 = vpop.f32.mrb[0].mxu0
      %v1024 = vadd.f32 0.0, %v1023
      %v1025 = vpop.f32.mrb[0].mxu0
      %1026 = vmatprep.mubr.bf16.mxu0 0
      %1027 = vmatmul.mubr.bf16.gmra.mrb[0].mxu0 %v878
      %v1028 = vpop.f32.mrb[0].mxu0
      %v1029 = vadd.f32 0.0, %v1028
      %v1030 = vpop.f32.mrb[0].mxu0
      %v1031 = vpop.f32.mrb[0].mxu0
      %v1032 = vadd.f32 0.0, %v1031
      %v1033 = vpop.f32.mrb[0].mxu0
      %1034 = vmatprep.mubr.bf16.mxu0 0
      %1035 = vmatmul.mubr.bf16.gmra.mrb[0].mxu0 %v881
      %v1036 = vpop.f32.mrb[0].mxu0
      %v1037 = vadd.f32 0.0, %v1036
      %v1038 = vpop.f32.mrb[0].mxu0
      %v1039 = vpop.f32.mrb[0].mxu0
      %v1040 = vadd.f32 0.0, %v1039
      %v1041 = vpop.f32.mrb[0].mxu0
      %1042 = vmatprep.mubr.bf16.mxu0 0
      %1043 = vmatmul.mubr.bf16.gmra.mrb[0].mxu0 %v884
      %v1044 = vpop.f32.mrb[0].mxu0
      %v1045 = vadd.f32 0.0, %v1044
      %v1046 = vpop.f32.mrb[0].mxu0
      %v1047 = vpop.f32.mrb[0].mxu0
      %v1048 = vadd.f32 0.0, %v1047
      %v1049 = vpop.f32.mrb[0].mxu0
      %1050 = vdwg.mxu0
      %v1051 = vadd.f32 %v337, %v925
      %v1052 = vadd.f32 %v338, %v928
      %v1053 = vadd.f32 %v339, %v933
      %v1054 = vadd.f32 %v340, %v936
      %v1055 = vadd.f32 %v341, %v941
      %v1056 = vadd.f32 %v342, %v944
      %v1057 = vadd.f32 %v343, %v949
      %v1058 = vadd.f32 %v344, %v952
      %v1059 = vadd.f32 %v345, %v957
      %v1060 = vadd.f32 %v346, %v960
      %v1061 = vadd.f32 %v347, %v965
      %v1062 = vadd.f32 %v348, %v968
      %v1063 = vadd.f32 %v349, %v973
      %v1064 = vadd.f32 %v350, %v976
      %v1065 = vadd.f32 %v351, %v981
      %v1066 = vadd.f32 %v352, %v984
      %v1067 = vadd.f32 %v353, %v989
      %v1068 = vadd.f32 %v354, %v992
      %v1069 = vadd.f32 %v355, %v997
      %v1070 = vadd.f32 %v356, %v1000
      %v1071 = vadd.f32 %v357, %v1005
      %v1072 = vadd.f32 %v358, %v1008
      %v1073 = vadd.f32 %v359, %v1013
      %v1074 = vadd.f32 %v360, %v1016
      %v1075 = vadd.f32 %v361, %v1021
      %v1076 = vadd.f32 %v362, %v1024
      %v1077 = vadd.f32 %v363, %v1029
      %v1078 = vadd.f32 %v364, %v1032
      %v1079 = vadd.f32 %v365, %v1037
      %v1080 = vadd.f32 %v366, %v1040
      %v1081 = vadd.f32 %v367, %v1045
      %v1082 = vadd.f32 %v368, %v1048
      %v1083 = vld [vmem:[%s7] sm:$0x1]
      %v1085 = vlaneseq
      %v1086 = vshrl.u32 %v1085, 7
      %v1087 = vsub.s32 0, %v1086
      %v1088 = vrot.slane %v1083, %v1087
      %v1090 = vmul.f32 %v1051, %v1088
      %v1091 = vmul.f32 %v1052, %v1088
      %v1092 = vmul.f32 %v1053, %v1088
      %v1093 = vmul.f32 %v1054, %v1088
      %v1094 = vmul.f32 %v1055, %v1088
      %v1095 = vmul.f32 %v1056, %v1088
      %v1096 = vmul.f32 %v1057, %v1088
      %v1097 = vmul.f32 %v1058, %v1088
      %v1098 = vmul.f32 %v1059, %v1088
      %v1099 = vmul.f32 %v1060, %v1088
      %v1100 = vmul.f32 %v1061, %v1088
      %v1101 = vmul.f32 %v1062, %v1088
      %v1102 = vmul.f32 %v1063, %v1088
      %v1103 = vmul.f32 %v1064, %v1088
      %v1104 = vmul.f32 %v1065, %v1088
      %v1105 = vmul.f32 %v1066, %v1088
      %v1106 = vmul.f32 %v1067, %v1088
      %v1107 = vmul.f32 %v1068, %v1088
      %v1108 = vmul.f32 %v1069, %v1088
      %v1109 = vmul.f32 %v1070, %v1088
      %v1110 = vmul.f32 %v1071, %v1088
      %v1111 = vmul.f32 %v1072, %v1088
      %v1112 = vmul.f32 %v1073, %v1088
      %v1113 = vmul.f32 %v1074, %v1088
      %v1114 = vmul.f32 %v1075, %v1088
      %v1115 = vmul.f32 %v1076, %v1088
      %v1116 = vmul.f32 %v1077, %v1088
      %v1117 = vmul.f32 %v1078, %v1088
      %v1118 = vmul.f32 %v1079, %v1088
      %v1119 = vmul.f32 %v1080, %v1088
      %v1120 = vmul.f32 %v1081, %v1088
      %v1121 = vmul.f32 %v1082, %v1088
      %v1122 = vld [vmem:[%s8] sm:$0x1]
      %v1124 = vlaneseq
      %v1125 = vshrl.u32 %v1124, 7
      %v1126 = vsub.s32 0, %v1125
      %v1127 = vrot.slane %v1122, %v1126
      %v1129 = vadd.f32 %v1090, %v1127
      %v1130 = vadd.f32 %v1091, %v1127
      %v1131 = vadd.f32 %v1092, %v1127
      %v1132 = vadd.f32 %v1093, %v1127
      %v1133 = vadd.f32 %v1094, %v1127
      %v1134 = vadd.f32 %v1095, %v1127
      %v1135 = vadd.f32 %v1096, %v1127
      %v1136 = vadd.f32 %v1097, %v1127
      %v1137 = vadd.f32 %v1098, %v1127
      %v1138 = vadd.f32 %v1099, %v1127
      %v1139 = vadd.f32 %v1100, %v1127
      %v1140 = vadd.f32 %v1101, %v1127
      %v1141 = vadd.f32 %v1102, %v1127
      %v1142 = vadd.f32 %v1103, %v1127
      %v1143 = vadd.f32 %v1104, %v1127
      %v1144 = vadd.f32 %v1105, %v1127
      %v1145 = vadd.f32 %v1106, %v1127
      %v1146 = vadd.f32 %v1107, %v1127
      %v1147 = vadd.f32 %v1108, %v1127
      %v1148 = vadd.f32 %v1109, %v1127
      %v1149 = vadd.f32 %v1110, %v1127
      %v1150 = vadd.f32 %v1111, %v1127
      %v1151 = vadd.f32 %v1112, %v1127
      %v1152 = vadd.f32 %v1113, %v1127
      %v1153 = vadd.f32 %v1114, %v1127
      %v1154 = vadd.f32 %v1115, %v1127
      %v1155 = vadd.f32 %v1116, %v1127
      %v1156 = vadd.f32 %v1117, %v1127
      %v1157 = vadd.f32 %v1118, %v1127
      %v1158 = vadd.f32 %v1119, %v1127
      %v1159 = vadd.f32 %v1120, %v1127
      %v1160 = vadd.f32 %v1121, %v1127
      %v1161 = vmax.f32 %v1129, 0.0
      %v1162 = vmax.f32 %v1130, 0.0
      %v1163 = vmax.f32 %v1131, 0.0
      %v1164 = vmax.f32 %v1132, 0.0
      %v1165 = vmax.f32 %v1133, 0.0
      %v1166 = vmax.f32 %v1134, 0.0
      %v1167 = vmax.f32 %v1135, 0.0
      %v1168 = vmax.f32 %v1136, 0.0
      %v1169 = vmax.f32 %v1137, 0.0
      %v1170 = vmax.f32 %v1138, 0.0
      %v1171 = vmax.f32 %v1139, 0.0
      %v1172 = vmax.f32 %v1140, 0.0
      %v1173 = vmax.f32 %v1141, 0.0
      %v1174 = vmax.f32 %v1142, 0.0
      %v1175 = vmax.f32 %v1143, 0.0
      %v1176 = vmax.f32 %v1144, 0.0
      %v1177 = vmax.f32 %v1145, 0.0
      %v1178 = vmax.f32 %v1146, 0.0
      %v1179 = vmax.f32 %v1147, 0.0
      %v1180 = vmax.f32 %v1148, 0.0
      %v1181 = vmax.f32 %v1149, 0.0
      %v1182 = vmax.f32 %v1150, 0.0
      %v1183 = vmax.f32 %v1151, 0.0
      %v1184 = vmax.f32 %v1152, 0.0
      %v1185 = vmax.f32 %v1153, 0.0
      %v1186 = vmax.f32 %v1154, 0.0
      %v1187 = vmax.f32 %v1155, 0.0
      %v1188 = vmax.f32 %v1156, 0.0
      %v1189 = vmax.f32 %v1157, 0.0
      %v1190 = vmax.f32 %v1158, 0.0
      %v1191 = vmax.f32 %v1159, 0.0
      %v1192 = vmax.f32 %v1160, 0.0
      %1193 = vst.msk [vmem:[%s334] sm:$0xff] %vm496, %v1161
      %1194 = vst.msk [vmem:[%s334 + $0x8] sm:$0xff] %vm496, %v1162
      %1195 = vst.msk [vmem:[%s334 + $0x10] sm:$0xff] %vm496, %v1163
      %1196 = vst.msk [vmem:[%s334 + $0x18] sm:$0xff] %vm496, %v1164
      %1197 = vst.msk [vmem:[%s334 + $0x20] sm:$0xff] %vm496, %v1165
      %1198 = vst.msk [vmem:[%s334 + $0x28] sm:$0xff] %vm496, %v1166
      %1199 = vst.msk [vmem:[%s334 + $0x30] sm:$0xff] %vm496, %v1167
      %1200 = vst.msk [vmem:[%s334 + $0x38] sm:$0xff] %vm496, %v1168
      %1201 = vst.msk [vmem:[%s334 + $0x40] sm:$0xff] %vm496, %v1169
      %1202 = vst.msk [vmem:[%s334 + $0x48] sm:$0xff] %vm496, %v1170
      %1203 = vst.msk [vmem:[%s334 + $0x50] sm:$0xff] %vm496, %v1171
      %1204 = vst.msk [vmem:[%s334 + $0x58] sm:$0xff] %vm496, %v1172
      %1205 = vst.msk [vmem:[%s334 + $0x60] sm:$0xff] %vm496, %v1173
      %1206 = vst.msk [vmem:[%s334 + $0x68] sm:$0xff] %vm496, %v1174
      %1207 = vst.msk [vmem:[%s334 + $0x70] sm:$0xff] %vm496, %v1175
      %1208 = vst.msk [vmem:[%s334 + $0x78] sm:$0xff] %vm496, %v1176
      %1209 = vst.msk [vmem:[%s334 + $0x80] sm:$0xff] %vm496, %v1177
      %1210 = vst.msk [vmem:[%s334 + $0x88] sm:$0xff] %vm496, %v1178
      %1211 = vst.msk [vmem:[%s334 + $0x90] sm:$0xff] %vm496, %v1179
      %1212 = vst.msk [vmem:[%s334 + $0x98] sm:$0xff] %vm496, %v1180
      %1213 = vst.msk [vmem:[%s334 + $0xa0] sm:$0xff] %vm496, %v1181
      %1214 = vst.msk [vmem:[%s334 + $0xa8] sm:$0xff] %vm496, %v1182
      %1215 = vst.msk [vmem:[%s334 + $0xb0] sm:$0xff] %vm496, %v1183
      %1216 = vst.msk [vmem:[%s334 + $0xb8] sm:$0xff] %vm496, %v1184
      %1217 = vst.msk [vmem:[%s334 + $0xc0] sm:$0xff] %vm496, %v1185
      %1218 = vst.msk [vmem:[%s334 + $0xc8] sm:$0xff] %vm496, %v1186
      %1219 = vst.msk [vmem:[%s334 + $0xd0] sm:$0xff] %vm496, %v1187
      %1220 = vst.msk [vmem:[%s334 + $0xd8] sm:$0xff] %vm496, %v1188
      %1221 = vst.msk [vmem:[%s334 + $0xe0] sm:$0xff] %vm496, %v1189
      %1222 = vst.msk [vmem:[%s334 + $0xe8] sm:$0xff] %vm496, %v1190
      %1223 = vst.msk [vmem:[%s334 + $0xf0] sm:$0xff] %vm496, %v1191
      %1224 = vst.msk [vmem:[%s334 + $0xf8] sm:$0xff] %vm496, %v1192
      %s1225 = smul.u32 32, %s20
      %p1226 = scmp.lt.s32.totalorder %s1225, 63
      %s1227 = scalar_select %p1226, %s1225, 63
      %s1228 = smul.addr %s1227, 8
      %s1229 = scalar_lea.vmem %s9, %s1228
      // Predicated region
      $region57: #{mf_unit_pallas.3} parent=55 // pred_check
        %p1230 = pneg %p232
      $region58: #{mf_unit_pallas.3} parent=55 // pred_check_branch
        %1232 = sbr.rel (%p1230) target = $region60
      $region59: #{mf_unit_pallas.3} parent=55 // pred_region
        %s1233 = smul.u32 32, %s20
      $region60: #{mf_unit_pallas.3} parent=55 // pred_fallthru
        _
    $region56: #{mf_unit_pallas.3} parent=5 // pred_fallthru
      _
    %p1234 = scmp.le.s32.totalorder 2, %s15
    // Predicated region
    $region61: #{mf_unit_pallas.3} parent=5 // pred_check
      %p1235 = pneg %p1234
    $region62: #{mf_unit_pallas.3} parent=5 // pred_check_branch
      %1237 = sbr.rel (%p1235) target = $region64
    $region63: #{mf_unit_pallas.3} parent=5 // pred_region
      %s1238 = ssub.s32 %s15, 2
      // Predicated region
      $region65: #{mf_unit_pallas.3} parent=63 // pred_check
        %p1239 = pneg %p238
      $region66: #{mf_unit_pallas.3} parent=63 // pred_check_branch
        %1241 = sbr.rel (%p1239) target = $region68
      $region67: #{mf_unit_pallas.3} parent=63 // pred_region
        %s1242 = smul.u32 32, %s21
        %p1243 = scmp.lt.s32.totalorder %s1242, 63
        %s1244 = scalar_select %p1243, %s1242, 63
        %s1245 = smul.addr %s1244, 8
        %s1246 = scalar_lea.vmem %s9, %s1245
      $region68: #{mf_unit_pallas.3} parent=63 // pred_fallthru
        _
    $region64: #{mf_unit_pallas.3} parent=5 // pred_fallthru
      _
  $region6: #{mf_unit_pallas.3} parent=0 // loop_footer
    %s19 = sadd.s32 1, %s15
  $region7: #{mf_unit_pallas.3} parent=0 // loop_footer_branch
    %14 = sbr.rel target = $region3
  $region8: #{mf_unit_pallas.3} parent=0 // loop_exit
    _

// kernel: mf_unit_pallas.5
$region0: #{mf_unit_pallas.5}
  #allocation0 [shape = 'u32[]', space=smem, size = 0x4, offset = 0x4, fixed_abs, tag = 'smem constant byte address 0x4 - core index']
  #allocation1 [shape = 'u32[144,128]{1,0:T(1,128)}', space=vmem, size = 0x12000, scoped, tag = 'internal scratch']
  #allocation2 [shape = 'f32[64,144]{1,0:T(8,128)}', space=vmem, size = 0x10000, scoped, tag = 'scratch operand']
  %s0 = inlined_call_operand.vmem [shape: f32[2,4,10,10,16], index: 0, kind: input, shape index: {}]
  %s1 = inlined_call_operand.vmem [shape: bf16[144,8], index: 1, kind: input, shape index: {}]
  %s2 = inlined_call_operand.vmem [shape: f32[2,4,64,8], index: 2, kind: input, shape index: {}]
  %s3 = inlined_call_operand.vmem [shape: f32[2,4,64,8], index: 3, kind: output, shape index: {}]
  %s4 = sld [smem:[#allocation0]]
  $region45: #{mf_unit_pallas.5} parent=0
    _
  %s6 = ssub.s32 1, %s4
  %s7 = scalar_select 0, %s6, %s4
  loop: start=0, step=1, limit=10
  $region2: #{mf_unit_pallas.5} parent=0 // loop_pre_header
    _
  $region3: #{mf_unit_pallas.5} parent=0 // loop_header
    %s9 = sphi 0, %s13
    %p10 = scmp.ge.s32.totalorder %s9, 10
    %s16 = sphi 0, %s28
    %s17 = sphi 0, %s24
    %s18 = sphi 0, %s16
    %s19 = sphi 0, %s17
    %s20 = sphi 0, %s18
    %s21 = sphi 0, %s19
    %s33 = sphi 0, %s35
    %s36 = sphi 0, %s33
    %s37 = sphi 0, %s36
    %s53 = sphi 0, %s37
    %s57 = sphi 0, %s57
    %s59 = sphi 0, %s57
    %s60 = sphi 0, %s59
    %s74 = sphi 0, %s60
    %s82 = sphi 0, %s84
    %s85 = sphi 0, %s82
    %s86 = sphi 0, %s85
    %s102 = sphi 0, %s86
    %s110 = sphi 0, %s112
    %s113 = sphi 0, %s110
    %s114 = sphi 0, %s113
    %s130 = sphi 0, %s114
  $region4: #{mf_unit_pallas.5} parent=0 // loop_header_branch
    %12 = sbr.rel (%p10) target = $region8
  $region5: #{mf_unit_pallas.5} parent=0 // loop_body
    %s14 = ssub.s32 %s9, 1
    %s15 = ssub.s32 %s9, 2
    %s22 = sadd.s32 1, %s17
    %p23 = scmp.ge.s32.totalorder %s22, 4
    %s24 = scalar_select %p23, 0, %s22
    %s25 = sadd.s32 1, %s16
    %s26 = scalar_select %p23, %s25, %s16
    %p27 = scmp.ge.s32.totalorder %s26, 2
    %s28 = scalar_select %p27, 0, %s26
    %s29 = ssub.s32 %s16, %s28
    %s30 = ssub.s32 %s17, %s24
    %s31 = sor.u32 %s29, %s30
    %p32 = scmp.eq.s32.totalorder %s31, 0
    %s34 = sadd.s32 %s33, 1
    %s35 = scalar_select %p32, %s33, %s34
    %p38 = pneg %p32
    %p39 = scmp.eq.s32.totalorder %s9, 7
    %p40 = por %p38, %p39
    %p41 = scmp.ne.s32.totalorder %s33, %s36
    %p42 = scmp.eq.s32.totalorder %s9, 0
    %p43 = por %p41, %p42
    %p44 = scmp.ne.s32.totalorder %s33, %s36
    %p45 = scmp.eq.s32.totalorder %s14, 7
    %p46 = por %p44, %p45
    %p47 = scmp.ne.s32.totalorder %s36, %s37
    %p48 = scmp.eq.s32.totalorder %s14, 0
    %p49 = por %p47, %p48
    %p50 = scmp.ne.s32.totalorder %s36, %s37
    %p51 = scmp.eq.s32.totalorder %s15, 7
    %p52 = por %p50, %p51
    %p54 = scmp.ne.s32.totalorder %s37, %s53
    %p55 = scmp.eq.s32.totalorder %s15, 0
    %p56 = por %p54, %p55
    %s58 = sadd.s32 %s57, 1
    %p61 = scmp.eq.s32.totalorder %s9, 7
    %p62 = scmp.ne.s32.totalorder %s57, %s59
    %p63 = scmp.eq.s32.totalorder %s9, 0
    %p64 = por %p62, %p63
    %p65 = scmp.ne.s32.totalorder %s57, %s59
    %p66 = scmp.eq.s32.totalorder %s14, 7
    %p67 = por %p65, %p66
    %p68 = scmp.ne.s32.totalorder %s59, %s60
    %p69 = scmp.eq.s32.totalorder %s14, 0
    %p70 = por %p68, %p69
    %p71 = scmp.ne.s32.totalorder %s59, %s60
    %p72 = scmp.eq.s32.totalorder %s15, 7
    %p73 = por %p71, %p72
    %p75 = scmp.ne.s32.totalorder %s60, %s74
    %p76 = scmp.eq.s32.totalorder %s15, 0
    %p77 = por %p75, %p76
    %s78 = ssub.s32 %s16, %s28
    %s79 = ssub.s32 %s17, %s24
    %s80 = sor.u32 %s78, %s79
    %p81 = scmp.eq.s32.totalorder %s80, 0
    %s83 = sadd.s32 %s82, 1
    %s84 = scalar_select %p81, %s82, %s83
    %p87 = pneg %p81
    %p88 = scmp.eq.s32.totalorder %s9, 7
    %p89 = por %p87, %p88
    %p90 = scmp.ne.s32.totalorder %s82, %s85
    %p91 = scmp.eq.s32.totalorder %s9, 0
    %p92 = por %p90, %p91
    %p93 = scmp.ne.s32.totalorder %s82, %s85
    %p94 = scmp.eq.s32.totalorder %s14, 7
    %p95 = por %p93, %p94
    %p96 = scmp.ne.s32.totalorder %s85, %s86
    %p97 = scmp.eq.s32.totalorder %s14, 0
    %p98 = por %p96, %p97
    %p99 = scmp.ne.s32.totalorder %s85, %s86
    %p100 = scmp.eq.s32.totalorder %s15, 7
    %p101 = por %p99, %p100
    %p103 = scmp.ne.s32.totalorder %s86, %s102
    %p104 = scmp.eq.s32.totalorder %s15, 0
    %p105 = por %p103, %p104
    %s106 = ssub.s32 %s16, %s28
    %s107 = ssub.s32 %s17, %s24
    %s108 = sor.u32 %s106, %s107
    %p109 = scmp.eq.s32.totalorder %s108, 0
    %s111 = sadd.s32 %s110, 1
    %s112 = scalar_select %p109, %s110, %s111
    %p115 = pneg %p109
    %p116 = scmp.eq.s32.totalorder %s9, 7
    %p117 = por %p115, %p116
    %p118 = scmp.ne.s32.totalorder %s110, %s113
    %p119 = scmp.eq.s32.totalorder %s9, 0
    %p120 = por %p118, %p119
    %p121 = scmp.ne.s32.totalorder %s110, %s113
    %p122 = scmp.eq.s32.totalorder %s14, 7
    %p123 = por %p121, %p122
    %p124 = scmp.ne.s32.totalorder %s113, %s114
    %p125 = scmp.eq.s32.totalorder %s14, 0
    %p126 = por %p124, %p125
    %p127 = scmp.ne.s32.totalorder %s113, %s114
    %p128 = scmp.eq.s32.totalorder %s15, 7
    %p129 = por %p127, %p128
    %p131 = scmp.ne.s32.totalorder %s114, %s130
    %p132 = scmp.eq.s32.totalorder %s15, 0
    %p133 = por %p131, %p132
    %p134 = scmp.le.s32.totalorder 1, %s9
    %p135 = scmp.lt.s32.totalorder %s9, 9
    %p136 = pnand %p134, %p135
    %p137 = pneg %p136
    // Predicated region
    $region9: #{mf_unit_pallas.5} parent=5 // pred_check
      _
    $region10: #{mf_unit_pallas.5} parent=5 // pred_check_branch
      %139 = sbr.rel (%p136) target = $region12
    $region11: #{mf_unit_pallas.5} parent=5 // pred_region
      %s140 = ssub.s32 %s9, 1
      // Predicated region
      $region13: #{mf_unit_pallas.5} parent=11 // pred_check
        %p141 = pneg %p70
      $region14: #{mf_unit_pallas.5} parent=11 // pred_check_branch
        %143 = sbr.rel (%p141) target = $region16
      $region15: #{mf_unit_pallas.5} parent=11 // pred_region
        _
      $region16: #{mf_unit_pallas.5} parent=11 // pred_fallthru
        _
    $region12: #{mf_unit_pallas.5} parent=5 // pred_fallthru
      _
    %p144 = scmp.lt.s32.totalorder %s9, 8
    // Predicated region
    $region17: #{mf_unit_pallas.5} parent=5 // pred_check
      %p145 = pneg %p144
    $region18: #{mf_unit_pallas.5} parent=5 // pred_check_branch
      %147 = sbr.rel (%p145) target = $region20
    $region19: #{mf_unit_pallas.5} parent=5 // pred_region
      // Predicated region
      $region21: #{mf_unit_pallas.5} parent=19 // pred_check
        %p148 = pneg %p43
      $region22: #{mf_unit_pallas.5} parent=19 // pred_check_branch
        %150 = sbr.rel (%p148) target = $region24
      $region23: #{mf_unit_pallas.5} parent=19 // pred_region
        %p151 = scmp.lt.s32.totalorder %s16, 1
        %s152 = scalar_select %p151, %s16, 1
        %p153 = scmp.lt.s32.totalorder %s17, 3
        %s154 = scalar_select %p153, %s17, 3
        %s155 = smul.addr %s154, 20
        %s156 = smul.addr %s152, 80
        %s157 = sadd.s32 %s155, %s156
        %s158 = smul.addr %s157, 8
        %s159 = scalar_lea.vmem %s0, %s158
      $region24: #{mf_unit_pallas.5} parent=19 // pred_fallthru
        _
      // Predicated region
      $region25: #{mf_unit_pallas.5} parent=19 // pred_check
        %p160 = pneg %p92
      $region26: #{mf_unit_pallas.5} parent=19 // pred_check_branch
        %162 = sbr.rel (%p160) target = $region28
      $region27: #{mf_unit_pallas.5} parent=19 // pred_region
        %p163 = scmp.lt.s32.totalorder %s16, 1
        %s164 = scalar_select %p163, %s16, 1
        %p165 = scmp.lt.s32.totalorder %s17, 3
        %s166 = scalar_select %p165, %s17, 3
        %s167 = smul.addr %s166, 8
        %s168 = smul.addr %s164, 32
        %s169 = sadd.s32 %s167, %s168
        %s170 = smul.addr %s169, 8
        %s171 = scalar_lea.vmem %s2, %s170
      $region28: #{mf_unit_pallas.5} parent=19 // pred_fallthru
        _
    $region20: #{mf_unit_pallas.5} parent=5 // pred_fallthru
      _
    %p172 = scmp.le.s32.totalorder 1, %s9
    %p173 = scmp.lt.s32.totalorder %s9, 9
    %p174 = pnand %p172, %p173
    %p175 = pneg %p174
    // Predicated region
    $region29: #{mf_unit_pallas.5} parent=5 // pred_check
      _
    $region30: #{mf_unit_pallas.5} parent=5 // pred_check_branch
      %177 = sbr.rel (%p174) target = $region32
    $region31: #{mf_unit_pallas.5} parent=5 // pred_region
      %s178 = ssub.s32 %s9, 1
      %p179 = scmp.lt.s32.totalorder %s18, 1
      %s180 = scalar_select %p179, %s18, 1
      %p181 = scmp.lt.s32.totalorder %s19, 3
      %s182 = scalar_select %p181, %s19, 3
      %s183 = smul.addr %s182, 20
      %s184 = smul.addr %s180, 80
      %s185 = sadd.s32 %s183, %s184
      %s186 = smul.addr %s185, 8
      %s187 = scalar_lea.vmem %s0, %s186
      %p188 = pneg %p49
      %p189 = pneg %p46
      %p190 = pneg %p70
      %p191 = pneg %p67
      %p192 = scmp.lt.s32.totalorder %s18, 1
      %s193 = scalar_select %p192, %s18, 1
      %p194 = scmp.lt.s32.totalorder %s19, 3
      %s195 = scalar_select %p194, %s19, 3
      %s196 = smul.addr %s195, 8
      %s197 = smul.addr %s193, 32
      %s198 = sadd.s32 %s196, %s197
      %s199 = smul.addr %s198, 8
      %s200 = scalar_lea.vmem %s2, %s199
      %p201 = pneg %p98
      %p202 = pneg %p95
      %p203 = pneg %p126
      %p204 = pneg %p123
      %p205 = scmp.lt.s32.totalorder %s18, 1
      %s206 = scalar_select %p205, %s18, 1
      %p207 = scmp.lt.s32.totalorder %s19, 3
      %s208 = scalar_select %p207, %s19, 3
      %s209 = smul.addr %s208, 8
      %s210 = smul.addr %s206, 32
      %s211 = sadd.s32 %s209, %s210
      %s212 = smul.addr %s211, 8
      %s213 = scalar_lea.vmem %s3, %s212
      %p214 = scmp.lt.s32.totalorder %s18, 1
      %s215 = scalar_select %p214, %s18, 1
      %p216 = scmp.lt.s32.totalorder %s19, 3
      %s217 = scalar_select %p216, %s19, 3
      %s218 = smul.addr %s217, 20
      %s219 = smul.addr %s215, 80
      %s220 = sadd.s32 %s218, %s219
      %s221 = smul.addr %s220, 8
      %s222 = scalar_lea.vmem %s0, %s221
      %p223 = scmp.lt.s32.totalorder %s18, 1
      %s224 = scalar_select %p223, %s18, 1
      %p225 = scmp.lt.s32.totalorder %s19, 3
      %s226 = scalar_select %p225, %s19, 3
      %s227 = smul.addr %s226, 8
      %s228 = smul.addr %s224, 32
      %s229 = sadd.s32 %s227, %s228
      %s230 = smul.addr %s229, 8
      %s231 = scalar_lea.vmem %s2, %s230
      %p232 = scmp.lt.s32.totalorder %s18, 1
      %s233 = scalar_select %p232, %s18, 1
      %p234 = scmp.lt.s32.totalorder %s19, 3
      %s235 = scalar_select %p234, %s19, 3
      %s236 = smul.addr %s235, 8
      %s237 = smul.addr %s233, 32
      %s238 = sadd.s32 %s236, %s237
      %s239 = smul.addr %s238, 8
      %s240 = scalar_lea.vmem %s3, %s239
      %v242 = vld [vmem:[%s222] sm:$0xff]
      %v243 = vld [vmem:[%s222 + $0x10] sm:$0xff]
      %v244 = vld [vmem:[%s222 + $0x20] sm:$0xff]
      %v245 = vld [vmem:[%s222 + $0x30] sm:$0xff]
      %v246 = vld [vmem:[%s222 + $0x40] sm:$0xff]
      %v247 = vld [vmem:[%s222 + $0x50] sm:$0xff]
      %v248 = vld [vmem:[%s222 + $0x60] sm:$0xff]
      %v249 = vld [vmem:[%s222 + $0x70] sm:$0xff]
      %vm250 = vcmask 130048
      %251 = vst.msk [vmem:[#allocation2] sm:$0xff] %vm250, %v242
      %252 = vst.msk [vmem:[#allocation2 + $0x10] sm:$0xff] %vm250, %v243
      %253 = vst.msk [vmem:[#allocation2 + $0x20] sm:$0xff] %vm250, %v244
      %254 = vst.msk [vmem:[#allocation2 + $0x30] sm:$0xff] %vm250, %v245
      %255 = vst.msk [vmem:[#allocation2 + $0x40] sm:$0xff] %vm250, %v246
      %256 = vst.msk [vmem:[#allocation2 + $0x50] sm:$0xff] %vm250, %v247
      %257 = vst.msk [vmem:[#allocation2 + $0x60] sm:$0xff] %vm250, %v248
      %258 = vst.msk [vmem:[#allocation2 + $0x70] sm:$0xff] %vm250, %v249
      %v259 = vld [vmem:[%s222 + $0x1] sm:$0xff]
      %v260 = vld [vmem:[%s222 + $0x11] sm:$0xff]
      %v261 = vld [vmem:[%s222 + $0x21] sm:$0xff]
      %v262 = vld [vmem:[%s222 + $0x31] sm:$0xff]
      %v263 = vld [vmem:[%s222 + $0x41] sm:$0xff]
      %v264 = vld [vmem:[%s222 + $0x51] sm:$0xff]
      %v265 = vld [vmem:[%s222 + $0x61] sm:$0xff]
      %v266 = vld [vmem:[%s222 + $0x71] sm:$0xff]
      %275 = vrot.lane.b32.xlu0 %v259, 16
      %v276 = vpop.permute.xlu0 %275
      %277 = vrot.lane.b32.xlu0 %v260, 16
      %v278 = vpop.permute.xlu0 %277
      %279 = vrot.lane.b32.xlu0 %v261, 16
      %v280 = vpop.permute.xlu0 %279
      %281 = vrot.lane.b32.xlu0 %v262, 16
      %v282 = vpop.permute.xlu0 %281
      %283 = vrot.lane.b32.xlu0 %v263, 16
      %v284 = vpop.permute.xlu0 %283
      %285 = vrot.lane.b32.xlu0 %v264, 16
      %v286 = vpop.permute.xlu0 %285
      %287 = vrot.lane.b32.xlu0 %v265, 16
      %v288 = vpop.permute.xlu0 %287
      %289 = vrot.lane.b32.xlu0 %v266, 16
      %v290 = vpop.permute.xlu0 %289
      %vm299 = vcmask 261248
      %300 = vst.msk [vmem:[#allocation2] sm:$0xff] %vm299, %v276
      %301 = vst.msk [vmem:[#allocation2 + $0x10] sm:$0xff] %vm299, %v278
      %302 = vst.msk [vmem:[#allocation2 + $0x20] sm:$0xff] %vm299, %v280
      %303 = vst.msk [vmem:[#allocation2 + $0x30] sm:$0xff] %vm299, %v282
      %304 = vst.msk [vmem:[#allocation2 + $0x40] sm:$0xff] %vm299, %v284
      %305 = vst.msk [vmem:[#allocation2 + $0x50] sm:$0xff] %vm299, %v286
      %306 = vst.msk [vmem:[#allocation2 + $0x60] sm:$0xff] %vm299, %v288
      %307 = vst.msk [vmem:[#allocation2 + $0x70] sm:$0xff] %vm299, %v290
      %v308 = vld [vmem:[%s222 + $0x2] sm:$0xff]
      %v309 = vld [vmem:[%s222 + $0x12] sm:$0xff]
      %v310 = vld [vmem:[%s222 + $0x22] sm:$0xff]
      %v311 = vld [vmem:[%s222 + $0x32] sm:$0xff]
      %v312 = vld [vmem:[%s222 + $0x42] sm:$0xff]
      %v313 = vld [vmem:[%s222 + $0x52] sm:$0xff]
      %v314 = vld [vmem:[%s222 + $0x62] sm:$0xff]
      %v315 = vld [vmem:[%s222 + $0x72] sm:$0xff]
      %324 = vrot.lane.b32.xlu0 %v308, 32
      %v325 = vpop.permute.xlu0 %324
      %326 = vrot.lane.b32.xlu0 %v309, 32
      %v327 = vpop.permute.xlu0 %326
      %328 = vrot.lane.b32.xlu0 %v310, 32
      %v329 = vpop.permute.xlu0 %328
      %330 = vrot.lane.b32.xlu0 %v311, 32
      %v331 = vpop.permute.xlu0 %330
      %332 = vrot.lane.b32.xlu0 %v312, 32
      %v333 = vpop.permute.xlu0 %332
      %334 = vrot.lane.b32.xlu0 %v313, 32
      %v335 = vpop.permute.xlu0 %334
      %336 = vrot.lane.b32.xlu0 %v314, 32
      %v337 = vpop.permute.xlu0 %336
      %338 = vrot.lane.b32.xlu0 %v315, 32
      %v339 = vpop.permute.xlu0 %338
      %vm348 = vcmask 392448
      %349 = vst.msk [vmem:[#allocation2] sm:$0xff] %vm348, %v325
      %350 = vst.msk [vmem:[#allocation2 + $0x10] sm:$0xff] %vm348, %v327
      %351 = vst.msk [vmem:[#allocation2 + $0x20] sm:$0xff] %vm348, %v329
      %352 = vst.msk [vmem:[#allocation2 + $0x30] sm:$0xff] %vm348, %v331
      %353 = vst.msk [vmem:[#allocation2 + $0x40] sm:$0xff] %vm348, %v333
      %354 = vst.msk [vmem:[#allocation2 + $0x50] sm:$0xff] %vm348, %v335
      %355 = vst.msk [vmem:[#allocation2 + $0x60] sm:$0xff] %vm348, %v337
      %356 = vst.msk [vmem:[#allocation2 + $0x70] sm:$0xff] %vm348, %v339
      %s357 = scalar_lea.vmem %s222, 16
      %v358 = vld [vmem:[%s357] sm:$0xff]
      %v359 = vld [vmem:[%s357 + $0x10] sm:$0xff]
      %v360 = vld [vmem:[%s357 + $0x20] sm:$0xff]
      %v361 = vld [vmem:[%s357 + $0x30] sm:$0xff]
      %v362 = vld [vmem:[%s357 + $0x40] sm:$0xff]
      %v363 = vld [vmem:[%s357 + $0x50] sm:$0xff]
      %v364 = vld [vmem:[%s357 + $0x60] sm:$0xff]
      %v365 = vld [vmem:[%s357 + $0x70] sm:$0xff]
      %374 = vrot.lane.b32.xlu0 %v358, 48
      %v375 = vpop.permute.xlu0 %374
      %376 = vrot.lane.b32.xlu0 %v359, 48
      %v377 = vpop.permute.xlu0 %376
      %378 = vrot.lane.b32.xlu0 %v360, 48
      %v379 = vpop.permute.xlu0 %378
      %380 = vrot.lane.b32.xlu0 %v361, 48
      %v381 = vpop.permute.xlu0 %380
      %382 = vrot.lane.b32.xlu0 %v362, 48
      %v383 = vpop.permute.xlu0 %382
      %384 = vrot.lane.b32.xlu0 %v363, 48
      %v385 = vpop.permute.xlu0 %384
      %386 = vrot.lane.b32.xlu0 %v364, 48
      %v387 = vpop.permute.xlu0 %386
      %388 = vrot.lane.b32.xlu0 %v365, 48
      %v389 = vpop.permute.xlu0 %388
      %vm398 = vcmask 523648
      %399 = vst.msk [vmem:[#allocation2] sm:$0xff] %vm398, %v375
      %400 = vst.msk [vmem:[#allocation2 + $0x10] sm:$0xff] %vm398, %v377
      %401 = vst.msk [vmem:[#allocation2 + $0x20] sm:$0xff] %vm398, %v379
      %402 = vst.msk [vmem:[#allocation2 + $0x30] sm:$0xff] %vm398, %v381
      %403 = vst.msk [vmem:[#allocation2 + $0x40] sm:$0xff] %vm398, %v383
      %404 = vst.msk [vmem:[#allocation2 + $0x50] sm:$0xff] %vm398, %v385
      %405 = vst.msk [vmem:[#allocation2 + $0x60] sm:$0xff] %vm398, %v387
      %406 = vst.msk [vmem:[#allocation2 + $0x70] sm:$0xff] %vm398, %v389
      %v407 = vld [vmem:[%s357 + $0x1] sm:$0xff]
      %v408 = vld [vmem:[%s357 + $0x11] sm:$0xff]
      %v409 = vld [vmem:[%s357 + $0x21] sm:$0xff]
      %v410 = vld [vmem:[%s357 + $0x31] sm:$0xff]
      %v411 = vld [vmem:[%s357 + $0x41] sm:$0xff]
      %v412 = vld [vmem:[%s357 + $0x51] sm:$0xff]
      %v413 = vld [vmem:[%s357 + $0x61] sm:$0xff]
      %v414 = vld [vmem:[%s357 + $0x71] sm:$0xff]
      %423 = vrot.lane.b32.xlu0 %v407, 64
      %v424 = vpop.permute.xlu0 %423
      %425 = vrot.lane.b32.xlu0 %v408, 64
      %v426 = vpop.permute.xlu0 %425
      %427 = vrot.lane.b32.xlu0 %v409, 64
      %v428 = vpop.permute.xlu0 %427
      %429 = vrot.lane.b32.xlu0 %v410, 64
      %v430 = vpop.permute.xlu0 %429
      %431 = vrot.lane.b32.xlu0 %v411, 64
      %v432 = vpop.permute.xlu0 %431
      %433 = vrot.lane.b32.xlu0 %v412, 64
      %v434 = vpop.permute.xlu0 %433
      %435 = vrot.lane.b32.xlu0 %v413, 64
      %v436 = vpop.permute.xlu0 %435
      %437 = vrot.lane.b32.xlu0 %v414, 64
      %v438 = vpop.permute.xlu0 %437
      %vm447 = vcmask 654848
      %448 = vst.msk [vmem:[#allocation2] sm:$0xff] %vm447, %v424
      %449 = vst.msk [vmem:[#allocation2 + $0x10] sm:$0xff] %vm447, %v426
      %450 = vst.msk [vmem:[#allocation2 + $0x20] sm:$0xff] %vm447, %v428
      %451 = vst.msk [vmem:[#allocation2 + $0x30] sm:$0xff] %vm447, %v430
      %452 = vst.msk [vmem:[#allocation2 + $0x40] sm:$0xff] %vm447, %v432
      %453 = vst.msk [vmem:[#allocation2 + $0x50] sm:$0xff] %vm447, %v434
      %454 = vst.msk [vmem:[#allocation2 + $0x60] sm:$0xff] %vm447, %v436
      %455 = vst.msk [vmem:[#allocation2 + $0x70] sm:$0xff] %vm447, %v438
      %v456 = vld [vmem:[%s357 + $0x2] sm:$0xff]
      %v457 = vld [vmem:[%s357 + $0x12] sm:$0xff]
      %v458 = vld [vmem:[%s357 + $0x22] sm:$0xff]
      %v459 = vld [vmem:[%s357 + $0x32] sm:$0xff]
      %v460 = vld [vmem:[%s357 + $0x42] sm:$0xff]
      %v461 = vld [vmem:[%s357 + $0x52] sm:$0xff]
      %v462 = vld [vmem:[%s357 + $0x62] sm:$0xff]
      %v463 = vld [vmem:[%s357 + $0x72] sm:$0xff]
      %472 = vrot.lane.b32.xlu0 %v456, 80
      %v473 = vpop.permute.xlu0 %472
      %474 = vrot.lane.b32.xlu0 %v457, 80
      %v475 = vpop.permute.xlu0 %474
      %476 = vrot.lane.b32.xlu0 %v458, 80
      %v477 = vpop.permute.xlu0 %476
      %478 = vrot.lane.b32.xlu0 %v459, 80
      %v479 = vpop.permute.xlu0 %478
      %480 = vrot.lane.b32.xlu0 %v460, 80
      %v481 = vpop.permute.xlu0 %480
      %482 = vrot.lane.b32.xlu0 %v461, 80
      %v483 = vpop.permute.xlu0 %482
      %484 = vrot.lane.b32.xlu0 %v462, 80
      %v485 = vpop.permute.xlu0 %484
      %486 = vrot.lane.b32.xlu0 %v463, 80
      %v487 = vpop.permute.xlu0 %486
      %vm496 = vcmask 786048
      %497 = vst.msk [vmem:[#allocation2] sm:$0xff] %vm496, %v473
      %498 = vst.msk [vmem:[#allocation2 + $0x10] sm:$0xff] %vm496, %v475
      %499 = vst.msk [vmem:[#allocation2 + $0x20] sm:$0xff] %vm496, %v477
      %500 = vst.msk [vmem:[#allocation2 + $0x30] sm:$0xff] %vm496, %v479
      %501 = vst.msk [vmem:[#allocation2 + $0x40] sm:$0xff] %vm496, %v481
      %502 = vst.msk [vmem:[#allocation2 + $0x50] sm:$0xff] %vm496, %v483
      %503 = vst.msk [vmem:[#allocation2 + $0x60] sm:$0xff] %vm496, %v485
      %504 = vst.msk [vmem:[#allocation2 + $0x70] sm:$0xff] %vm496, %v487
      %s505 = scalar_lea.vmem %s222, 32
      %v506 = vld [vmem:[%s505] sm:$0xff]
      %v507 = vld [vmem:[%s505 + $0x10] sm:$0xff]
      %v508 = vld [vmem:[%s505 + $0x20] sm:$0xff]
      %v509 = vld [vmem:[%s505 + $0x30] sm:$0xff]
      %v510 = vld [vmem:[%s505 + $0x40] sm:$0xff]
      %v511 = vld [vmem:[%s505 + $0x50] sm:$0xff]
      %v512 = vld [vmem:[%s505 + $0x60] sm:$0xff]
      %v513 = vld [vmem:[%s505 + $0x70] sm:$0xff]
      %522 = vrot.lane.b32.xlu0 %v506, 96
      %v523 = vpop.permute.xlu0 %522
      %524 = vrot.lane.b32.xlu0 %v507, 96
      %v525 = vpop.permute.xlu0 %524
      %526 = vrot.lane.b32.xlu0 %v508, 96
      %v527 = vpop.permute.xlu0 %526
      %528 = vrot.lane.b32.xlu0 %v509, 96
      %v529 = vpop.permute.xlu0 %528
      %530 = vrot.lane.b32.xlu0 %v510, 96
      %v531 = vpop.permute.xlu0 %530
      %532 = vrot.lane.b32.xlu0 %v511, 96
      %v533 = vpop.permute.xlu0 %532
      %534 = vrot.lane.b32.xlu0 %v512, 96
      %v535 = vpop.permute.xlu0 %534
      %536 = vrot.lane.b32.xlu0 %v513, 96
      %v537 = vpop.permute.xlu0 %536
      %vm546 = vcmask 917248
      %547 = vst.msk [vmem:[#allocation2] sm:$0xff] %vm546, %v523
      %548 = vst.msk [vmem:[#allocation2 + $0x10] sm:$0xff] %vm546, %v525
      %549 = vst.msk [vmem:[#allocation2 + $0x20] sm:$0xff] %vm546, %v527
      %550 = vst.msk [vmem:[#allocation2 + $0x30] sm:$0xff] %vm546, %v529
      %551 = vst.msk [vmem:[#allocation2 + $0x40] sm:$0xff] %vm546, %v531
      %552 = vst.msk [vmem:[#allocation2 + $0x50] sm:$0xff] %vm546, %v533
      %553 = vst.msk [vmem:[#allocation2 + $0x60] sm:$0xff] %vm546, %v535
      %554 = vst.msk [vmem:[#allocation2 + $0x70] sm:$0xff] %vm546, %v537
      %v555 = vld [vmem:[%s505 + $0x1] sm:$0xff]
      %v556 = vld [vmem:[%s505 + $0x11] sm:$0xff]
      %v557 = vld [vmem:[%s505 + $0x21] sm:$0xff]
      %v558 = vld [vmem:[%s505 + $0x31] sm:$0xff]
      %v559 = vld [vmem:[%s505 + $0x41] sm:$0xff]
      %v560 = vld [vmem:[%s505 + $0x51] sm:$0xff]
      %v561 = vld [vmem:[%s505 + $0x61] sm:$0xff]
      %v562 = vld [vmem:[%s505 + $0x71] sm:$0xff]
      %571 = vrot.lane.b32.xlu0 %v555, 112
      %v572 = vpop.permute.xlu0 %571
      %573 = vrot.lane.b32.xlu0 %v556, 112
      %v574 = vpop.permute.xlu0 %573
      %575 = vrot.lane.b32.xlu0 %v557, 112
      %v576 = vpop.permute.xlu0 %575
      %577 = vrot.lane.b32.xlu0 %v558, 112
      %v578 = vpop.permute.xlu0 %577
      %579 = vrot.lane.b32.xlu0 %v559, 112
      %v580 = vpop.permute.xlu0 %579
      %581 = vrot.lane.b32.xlu0 %v560, 112
      %v582 = vpop.permute.xlu0 %581
      %583 = vrot.lane.b32.xlu0 %v561, 112
      %v584 = vpop.permute.xlu0 %583
      %585 = vrot.lane.b32.xlu0 %v562, 112
      %v586 = vpop.permute.xlu0 %585
      %vm595 = vcmask 1048448
      %596 = vst.msk [vmem:[#allocation2] sm:$0xff] %vm595, %v572
      %597 = vst.msk [vmem:[#allocation2 + $0x10] sm:$0xff] %vm595, %v574
      %598 = vst.msk [vmem:[#allocation2 + $0x20] sm:$0xff] %vm595, %v576
      %599 = vst.msk [vmem:[#allocation2 + $0x30] sm:$0xff] %vm595, %v578
      %600 = vst.msk [vmem:[#allocation2 + $0x40] sm:$0xff] %vm595, %v580
      %601 = vst.msk [vmem:[#allocation2 + $0x50] sm:$0xff] %vm595, %v582
      %602 = vst.msk [vmem:[#allocation2 + $0x60] sm:$0xff] %vm595, %v584
      %603 = vst.msk [vmem:[#allocation2 + $0x70] sm:$0xff] %vm595, %v586
      %v604 = vld [vmem:[%s505 + $0x2] sm:$0xff]
      %v605 = vld [vmem:[%s505 + $0x12] sm:$0xff]
      %v606 = vld [vmem:[%s505 + $0x22] sm:$0xff]
      %v607 = vld [vmem:[%s505 + $0x32] sm:$0xff]
      %v608 = vld [vmem:[%s505 + $0x42] sm:$0xff]
      %v609 = vld [vmem:[%s505 + $0x52] sm:$0xff]
      %v610 = vld [vmem:[%s505 + $0x62] sm:$0xff]
      %v611 = vld [vmem:[%s505 + $0x72] sm:$0xff]
      %612 = vst.msk [vmem:[#allocation2 + $0x8] sm:$0xff] %vm250, %v604
      %613 = vst.msk [vmem:[#allocation2 + $0x18] sm:$0xff] %vm250, %v605
      %614 = vst.msk [vmem:[#allocation2 + $0x28] sm:$0xff] %vm250, %v606
      %615 = vst.msk [vmem:[#allocation2 + $0x38] sm:$0xff] %vm250, %v607
      %616 = vst.msk [vmem:[#allocation2 + $0x48] sm:$0xff] %vm250, %v608
      %617 = vst.msk [vmem:[#allocation2 + $0x58] sm:$0xff] %vm250, %v609
      %618 = vst.msk [vmem:[#allocation2 + $0x68] sm:$0xff] %vm250, %v610
      %619 = vst.msk [vmem:[#allocation2 + $0x78] sm:$0xff] %vm250, %v611
      %v620 = vld [vmem:[#allocation2] sm:$0xff]
      %v621 = vld [vmem:[#allocation2 + $0x8] sm:$0xff]
      %v622 = vld [vmem:[#allocation2 + $0x10] sm:$0xff]
      %v623 = vld [vmem:[#allocation2 + $0x18] sm:$0xff]
      %v624 = vld [vmem:[#allocation2 + $0x20] sm:$0xff]
      %v625 = vld [vmem:[#allocation2 + $0x28] sm:$0xff]
      %v626 = vld [vmem:[#allocation2 + $0x30] sm:$0xff]
      %v627 = vld [vmem:[#allocation2 + $0x38] sm:$0xff]
      %v628 = vld [vmem:[#allocation2 + $0x40] sm:$0xff]
      %v629 = vld [vmem:[#allocation2 + $0x48] sm:$0xff]
      %v630 = vld [vmem:[#allocation2 + $0x50] sm:$0xff]
      %v631 = vld [vmem:[#allocation2 + $0x58] sm:$0xff]
      %v632 = vld [vmem:[#allocation2 + $0x60] sm:$0xff]
      %v633 = vld [vmem:[#allocation2 + $0x68] sm:$0xff]
      %v634 = vld [vmem:[#allocation2 + $0x70] sm:$0xff]
      %v635 = vld [vmem:[#allocation2 + $0x78] sm:$0xff]
      %v636 = vpack.c.bf16 %v622, %v620
      %v637 = vpack.c.bf16 %v623, %v621
      %v638 = vpack.c.bf16 %v626, %v624
      %v639 = vpack.c.bf16 %v627, %v625
      %v640 = vpack.c.bf16 %v630, %v628
      %v641 = vpack.c.bf16 %v631, %v629
      %v642 = vpack.c.bf16 %v634, %v632
      %v643 = vpack.c.bf16 %v635, %v633
      %v644 = vld [vmem:[%s1] sm:$0xf]
      %v645 = vld [vmem:[%s1 + $0x4] sm:$0xf]
      %v646 = vld [vmem:[%s1 + $0x8] sm:$0xf]
      %v647 = vld [vmem:[%s1 + $0xc] sm:$0xf]
      %v648 = vld [vmem:[%s1 + $0x10] sm:$0xf]
      %v649 = vld [vmem:[%s1 + $0x14] sm:$0xf]
      %v650 = vld [vmem:[%s1 + $0x18] sm:$0xf]
      %v651 = vld [vmem:[%s1 + $0x1c] sm:$0xf]
      %v652 = vld [vmem:[%s1 + $0x20] sm:$0xf]
      %v653 = vld [vmem:[%s1 + $0x24] sm:$0xf]
      %v654 = vld [vmem:[%s1 + $0x28] sm:$0xf]
      %v655 = vld [vmem:[%s1 + $0x2c] sm:$0xf]
      %v656 = vld [vmem:[%s1 + $0x30] sm:$0xf]
      %v657 = vld [vmem:[%s1 + $0x34] sm:$0xf]
      %v658 = vld [vmem:[%s1 + $0x38] sm:$0xf]
      %v659 = vld [vmem:[%s1 + $0x3c] sm:$0xf]
      %v660 = vld [vmem:[%s1 + $0x40] sm:$0xf]
      %v661 = vld [vmem:[%s1 + $0x44] sm:$0xf]
      %v662 = vld [vmem:[%s231] sm:$0xff]
      %v663 = vld [vmem:[%s231 + $0x8] sm:$0xff]
      %v664 = vld [vmem:[%s231 + $0x10] sm:$0xff]
      %v665 = vld [vmem:[%s231 + $0x18] sm:$0xff]
      %v666 = vld [vmem:[%s231 + $0x20] sm:$0xff]
      %v667 = vld [vmem:[%s231 + $0x28] sm:$0xff]
      %v668 = vld [vmem:[%s231 + $0x30] sm:$0xff]
      %v669 = vld [vmem:[%s231 + $0x38] sm:$0xff]
      %v688 = vunpack.c.l.b16 %v644
      %v689 = vunpack.c.l.b16 %v645
      %v690 = vunpack.c.l.b16 %v646
      %v691 = vunpack.c.l.b16 %v647
      %v692 = vunpack.c.l.b16 %v648
      %v693 = vunpack.c.l.b16 %v649
      %v694 = vunpack.c.l.b16 %v650
      %v695 = vunpack.c.l.b16 %v651
      %v696 = vunpack.c.l.b16 %v652
      %v697 = vunpack.c.l.b16 %v653
      %v698 = vunpack.c.l.b16 %v654
      %v699 = vunpack.c.l.b16 %v655
      %v700 = vunpack.c.l.b16 %v656
      %v701 = vunpack.c.l.b16 %v657
      %v702 = vunpack.c.l.b16 %v658
      %v703 = vunpack.c.l.b16 %v659
      %v704 = vunpack.c.l.b16 %v660
      %v705 = vunpack.c.l.b16 %v661
      %v706 = vpack.c.b16 %v689, %v688
      %v707 = vpack.c.b16 %v691, %v690
      %v708 = vpack.c.b16 %v693, %v692
      %v709 = vpack.c.b16 %v695, %v694
      %v710 = vpack.c.b16 %v697, %v696
      %v711 = vpack.c.b16 %v699, %v698
      %v712 = vpack.c.b16 %v701, %v700
      %v713 = vpack.c.b16 %v703, %v702
      %v714 = vpack.c.b16 %v705, %v704
      %v725 = vsel %vm250, %v637, 0
      %v728 = vsel %vm250, %v639, 0
      %v731 = vsel %vm250, %v641, 0
      %v734 = vsel %vm250, %v643, 0
      %736 = vmatprep.subr.bf16.mxu0 0
      %737 = vmatpush1.bf16.msra.mxu0 %v706
      %738 = vmatprep.subr.bf16.mxu0 0
      %739 = vmatpush1.bf16.msra.mxu0 %v707
      %740 = vmatprep.subr.bf16.mxu0 0
      %741 = vmatpush1.bf16.msra.mxu0 %v708
      %742 = vmatprep.subr.bf16.mxu0 0
      %743 = vmatpush1.bf16.msra.mxu0 %v709
      %744 = vmatprep.subr.bf16.mxu0 0
      %745 = vmatpush1.bf16.msra.mxu0 %v710
      %746 = vmatprep.subr.bf16.mxu0 0
      %747 = vmatpush1.bf16.msra.mxu0 %v711
      %748 = vmatprep.subr.bf16.mxu0 0
      %749 = vmatpush1.bf16.msra.mxu0 %v712
      %750 = vmatprep.subr.bf16.mxu0 0
      %751 = vmatpush1.bf16.msra.mxu0 %v713
      %752 = vmatprep.subr.bf16.mxu0 0
      %753 = vmatpush1.bf16.msra.mxu0 %v714
      %754 = vmatprep.subr.bf16.mxu0 0
      %755 = vmatpush1.bf16.msra.mxu0 0
      %756 = vmatprep.subr.bf16.mxu0 0
      %757 = vmatpush1.bf16.msra.mxu0 0
      %758 = vmatprep.subr.bf16.mxu0 0
      %759 = vmatpush1.bf16.msra.mxu0 0
      %760 = vmatprep.subr.bf16.mxu0 0
      %761 = vmatpush1.bf16.msra.mxu0 0
      %762 = vmatprep.subr.bf16.mxu0 0
      %763 = vmatpush1.bf16.msra.mxu0 0
      %764 = vmatprep.subr.bf16.mxu0 0
      %765 = vmatpush1.bf16.msra.mxu0 0
      %766 = vmatprep.subr.bf16.mxu0 0
      %767 = vmatpush1.bf16.msra.mxu0 0
      %768 = vmatprep.mubr.bf16.mxu0 %v725
      %769 = vmatmul.mubr.bf16.gmra.mrb[0].mxu0 %v636
      %v770 = vpop.f32.mrb[0].mxu0
      %v771 = vadd.f32 %v662, %v770
      %v772 = vpop.f32.mrb[0].mxu0
      %v773 = vpop.f32.mrb[0].mxu0
      %v774 = vadd.f32 %v663, %v773
      %v775 = vpop.f32.mrb[0].mxu0
      %776 = vmatprep.mubr.bf16.mxu0 %v728
      %777 = vmatmul.mubr.bf16.gmra.mrb[0].mxu0 %v638
      %v778 = vpop.f32.mrb[0].mxu0
      %v779 = vadd.f32 %v664, %v778
      %v780 = vpop.f32.mrb[0].mxu0
      %v781 = vpop.f32.mrb[0].mxu0
      %v782 = vadd.f32 %v665, %v781
      %v783 = vpop.f32.mrb[0].mxu0
      %784 = vmatprep.mubr.bf16.mxu0 %v731
      %785 = vmatmul.mubr.bf16.gmra.mrb[0].mxu0 %v640
      %v786 = vpop.f32.mrb[0].mxu0
      %v787 = vadd.f32 %v666, %v786
      %v788 = vpop.f32.mrb[0].mxu0
      %v789 = vpop.f32.mrb[0].mxu0
      %v790 = vadd.f32 %v667, %v789
      %v791 = vpop.f32.mrb[0].mxu0
      %792 = vmatprep.mubr.bf16.mxu0 %v734
      %793 = vmatmul.mubr.bf16.gmra.mrb[0].mxu0 %v642
      %v794 = vpop.f32.mrb[0].mxu0
      %v795 = vadd.f32 %v668, %v794
      %v796 = vpop.f32.mrb[0].mxu0
      %v797 = vpop.f32.mrb[0].mxu0
      %v798 = vadd.f32 %v669, %v797
      %v799 = vpop.f32.mrb[0].mxu0
      %800 = vdwg.mxu0
      %vm801 = vcmask 64512
      %802 = vst.msk [vmem:[%s240] sm:$0xff] %vm801, %v771
      %803 = vst.msk [vmem:[%s240 + $0x8] sm:$0xff] %vm801, %v774
      %804 = vst.msk [vmem:[%s240 + $0x10] sm:$0xff] %vm801, %v779
      %805 = vst.msk [vmem:[%s240 + $0x18] sm:$0xff] %vm801, %v782
      %806 = vst.msk [vmem:[%s240 + $0x20] sm:$0xff] %vm801, %v787
      %807 = vst.msk [vmem:[%s240 + $0x28] sm:$0xff] %vm801, %v790
      %808 = vst.msk [vmem:[%s240 + $0x30] sm:$0xff] %vm801, %v795
      %809 = vst.msk [vmem:[%s240 + $0x38] sm:$0xff] %vm801, %v798
      %p810 = scmp.lt.s32.totalorder %s18, 1
      %s811 = scalar_select %p810, %s18, 1
      %p812 = scmp.lt.s32.totalorder %s19, 3
      %s813 = scalar_select %p812, %s19, 3
      %s814 = smul.addr %s813, 8
      %s815 = smul.addr %s811, 32
      %s816 = sadd.s32 %s814, %s815
      %s817 = smul.addr %s816, 8
      %s818 = scalar_lea.vmem %s3, %s817
      // Predicated region
      $region33: #{mf_unit_pallas.5} parent=31 // pred_check
        %p819 = pneg %p123
      $region34: #{mf_unit_pallas.5} parent=31 // pred_check_branch
        %821 = sbr.rel (%p819) target = $region36
      $region35: #{mf_unit_pallas.5} parent=31 // pred_region
        _
      $region36: #{mf_unit_pallas.5} parent=31 // pred_fallthru
        _
    $region32: #{mf_unit_pallas.5} parent=5 // pred_fallthru
      _
    %p822 = scmp.le.s32.totalorder 2, %s9
    // Predicated region
    $region37: #{mf_unit_pallas.5} parent=5 // pred_check
      %p823 = pneg %p822
    $region38: #{mf_unit_pallas.5} parent=5 // pred_check_branch
      %825 = sbr.rel (%p823) target = $region40
    $region39: #{mf_unit_pallas.5} parent=5 // pred_region
      %s826 = ssub.s32 %s9, 2
      // Predicated region
      $region41: #{mf_unit_pallas.5} parent=39 // pred_check
        %p827 = pneg %p129
      $region42: #{mf_unit_pallas.5} parent=39 // pred_check_branch
        %829 = sbr.rel (%p827) target = $region44
      $region43: #{mf_unit_pallas.5} parent=39 // pred_region
        %p830 = scmp.lt.s32.totalorder %s20, 1
        %s831 = scalar_select %p830, %s20, 1
        %p832 = scmp.lt.s32.totalorder %s21, 3
        %s833 = scalar_select %p832, %s21, 3
        %s834 = smul.addr %s833, 8
        %s835 = smul.addr %s831, 32
        %s836 = sadd.s32 %s834, %s835
        %s837 = smul.addr %s836, 8
        %s838 = scalar_lea.vmem %s3, %s837
      $region44: #{mf_unit_pallas.5} parent=39 // pred_fallthru
        _
    $region40: #{mf_unit_pallas.5} parent=5 // pred_fallthru
      _
  $region6: #{mf_unit_pallas.5} parent=0 // loop_footer
    %s13 = sadd.s32 1, %s9
  $region7: #{mf_unit_pallas.5} parent=0 // loop_footer_branch
    %8 = sbr.rel target = $region3
  $region8: #{mf_unit_pallas.5} parent=0 // loop_exit
    _

// kernel: mf_unit_pallas.4
$region0: #{mf_unit_pallas.4}
  #allocation0 [shape = 'u32[]', space=smem, size = 0x4, offset = 0x4, fixed_abs, tag = 'smem constant byte address 0x4 - core index']
  #allocation1 [shape = 'u32[144,128]{1,0:T(1,128)}', space=vmem, size = 0x12000, scoped, tag = 'internal scratch']
  #allocation2 [shape = 'f32[64,216]{1,0:T(8,128)}', space=vmem, size = 0x10000, scoped, tag = 'scratch operand']
  %s0 = inlined_call_operand.vmem [shape: f32[2,6,10,10,8], index: 0, kind: input, shape index: {}, may-alias: {0,1,2}]
  %s1 = inlined_call_operand.vmem [shape: f32[2,6,10,10,8], index: 1, kind: input, shape index: {}, may-alias: {0,1,2}]
  %s2 = inlined_call_operand.vmem [shape: f32[2,6,10,10,8], index: 2, kind: input, shape index: {}, may-alias: {0,1,2}]
  %s3 = inlined_call_operand.vmem [shape: bf16[216,16], index: 3, kind: input, shape index: {}]
  %s4 = inlined_call_operand.vmem [shape: f32[1,16], index: 4, kind: input, shape index: {}]
  %s5 = inlined_call_operand.vmem [shape: f32[1,16], index: 5, kind: input, shape index: {}]
  %s6 = inlined_call_operand.vmem [shape: f32[2,4,64,16], index: 6, kind: output, shape index: {}]
  %s7 = sld [smem:[#allocation0]]
  $region57: #{mf_unit_pallas.4} parent=0
    _
  %s9 = ssub.s32 1, %s7
  %s10 = scalar_select 0, %s9, %s7
  loop: start=0, step=1, limit=10
  $region2: #{mf_unit_pallas.4} parent=0 // loop_pre_header
    _
  $region3: #{mf_unit_pallas.4} parent=0 // loop_header
    %s12 = sphi 0, %s16
    %p13 = scmp.ge.s32.totalorder %s12, 10
    %s19 = sphi 0, %s31
    %s20 = sphi 0, %s27
    %s21 = sphi 0, %s19
    %s22 = sphi 0, %s20
    %s23 = sphi 0, %s21
    %s24 = sphi 0, %s22
    %s36 = sphi 0, %s38
    %s39 = sphi 0, %s36
    %s40 = sphi 0, %s39
    %s56 = sphi 0, %s40
    %s66 = sphi 0, %s68
    %s69 = sphi 0, %s66
    %s70 = sphi 0, %s69
    %s86 = sphi 0, %s70
    %s96 = sphi 0, %s98
    %s99 = sphi 0, %s96
    %s100 = sphi 0, %s99
    %s116 = sphi 0, %s100
    %s120 = sphi 0, %s120
    %s122 = sphi 0, %s120
    %s123 = sphi 0, %s122
    %s137 = sphi 0, %s123
    %s141 = sphi 0, %s141
    %s143 = sphi 0, %s141
    %s144 = sphi 0, %s143
    %s158 = sphi 0, %s144
    %s162 = sphi 0, %s162
    %s164 = sphi 0, %s162
    %s165 = sphi 0, %s164
    %s179 = sphi 0, %s165
    %s187 = sphi 0, %s189
    %s190 = sphi 0, %s187
    %s191 = sphi 0, %s190
    %s207 = sphi 0, %s191
  $region4: #{mf_unit_pallas.4} parent=0 // loop_header_branch
    %15 = sbr.rel (%p13) target = $region8
  $region5: #{mf_unit_pallas.4} parent=0 // loop_body
    %s17 = ssub.s32 %s12, 1
    %s18 = ssub.s32 %s12, 2
    %s25 = sadd.s32 1, %s20
    %p26 = scmp.ge.s32.totalorder %s25, 4
    %s27 = scalar_select %p26, 0, %s25
    %s28 = sadd.s32 1, %s19
    %s29 = scalar_select %p26, %s28, %s19
    %p30 = scmp.ge.s32.totalorder %s29, 2
    %s31 = scalar_select %p30, 0, %s29
    %s32 = ssub.s32 %s19, %s31
    %s33 = ssub.s32 %s20, %s27
    %s34 = sor.u32 %s32, %s33
    %p35 = scmp.eq.s32.totalorder %s34, 0
    %s37 = sadd.s32 %s36, 1
    %s38 = scalar_select %p35, %s36, %s37
    %p41 = pneg %p35
    %p42 = scmp.eq.s32.totalorder %s12, 7
    %p43 = por %p41, %p42
    %p44 = scmp.ne.s32.totalorder %s36, %s39
    %p45 = scmp.eq.s32.totalorder %s12, 0
    %p46 = por %p44, %p45
    %p47 = scmp.ne.s32.totalorder %s36, %s39
    %p48 = scmp.eq.s32.totalorder %s17, 7
    %p49 = por %p47, %p48
    %p50 = scmp.ne.s32.totalorder %s39, %s40
    %p51 = scmp.eq.s32.totalorder %s17, 0
    %p52 = por %p50, %p51
    %p53 = scmp.ne.s32.totalorder %s39, %s40
    %p54 = scmp.eq.s32.totalorder %s18, 7
    %p55 = por %p53, %p54
    %p57 = scmp.ne.s32.totalorder %s40, %s56
    %p58 = scmp.eq.s32.totalorder %s18, 0
    %p59 = por %p57, %p58
    %s60 = sadd.s32 %s20, 1
    %s61 = sadd.s32 %s27, 1
    %s62 = ssub.s32 %s19, %s31
    %s63 = ssub.s32 %s60, %s61
    %s64 = sor.u32 %s62, %s63
    %p65 = scmp.eq.s32.totalorder %s64, 0
    %s67 = sadd.s32 %s66, 1
    %s68 = scalar_select %p65, %s66, %s67
    %p71 = pneg %p65
    %p72 = scmp.eq.s32.totalorder %s12, 7
    %p73 = por %p71, %p72
    %p74 = scmp.ne.s32.totalorder %s66, %s69
    %p75 = scmp.eq.s32.totalorder %s12, 0
    %p76 = por %p74, %p75
    %p77 = scmp.ne.s32.totalorder %s66, %s69
    %p78 = scmp.eq.s32.totalorder %s17, 7
    %p79 = por %p77, %p78
    %p80 = scmp.ne.s32.totalorder %s69, %s70
    %p81 = scmp.eq.s32.totalorder %s17, 0
    %p82 = por %p80, %p81
    %p83 = scmp.ne.s32.totalorder %s69, %s70
    %p84 = scmp.eq.s32.totalorder %s18, 7
    %p85 = por %p83, %p84
    %p87 = scmp.ne.s32.totalorder %s70, %s86
    %p88 = scmp.eq.s32.totalorder %s18, 0
    %p89 = por %p87, %p88
    %s90 = sadd.s32 %s20, 2
    %s91 = sadd.s32 %s27, 2
    %s92 = ssub.s32 %s19, %s31
    %s93 = ssub.s32 %s90, %s91
    %s94 = sor.u32 %s92, %s93
    %p95 = scmp.eq.s32.totalorder %s94, 0
    %s97 = sadd.s32 %s96, 1
    %s98 = scalar_select %p95, %s96, %s97
    %p101 = pneg %p95
    %p102 = scmp.eq.s32.totalorder %s12, 7
    %p103 = por %p101, %p102
    %p104 = scmp.ne.s32.totalorder %s96, %s99
    %p105 = scmp.eq.s32.totalorder %s12, 0
    %p106 = por %p104, %p105
    %p107 = scmp.ne.s32.totalorder %s96, %s99
    %p108 = scmp.eq.s32.totalorder %s17, 7
    %p109 = por %p107, %p108
    %p110 = scmp.ne.s32.totalorder %s99, %s100
    %p111 = scmp.eq.s32.totalorder %s17, 0
    %p112 = por %p110, %p111
    %p113 = scmp.ne.s32.totalorder %s99, %s100
    %p114 = scmp.eq.s32.totalorder %s18, 7
    %p115 = por %p113, %p114
    %p117 = scmp.ne.s32.totalorder %s100, %s116
    %p118 = scmp.eq.s32.totalorder %s18, 0
    %p119 = por %p117, %p118
    %s121 = sadd.s32 %s120, 1
    %p124 = scmp.eq.s32.totalorder %s12, 7
    %p125 = scmp.ne.s32.totalorder %s120, %s122
    %p126 = scmp.eq.s32.totalorder %s12, 0
    %p127 = por %p125, %p126
    %p128 = scmp.ne.s32.totalorder %s120, %s122
    %p129 = scmp.eq.s32.totalorder %s17, 7
    %p130 = por %p128, %p129
    %p131 = scmp.ne.s32.totalorder %s122, %s123
    %p132 = scmp.eq.s32.totalorder %s17, 0
    %p133 = por %p131, %p132
    %p134 = scmp.ne.s32.totalorder %s122, %s123
    %p135 = scmp.eq.s32.totalorder %s18, 7
    %p136 = por %p134, %p135
    %p138 = scmp.ne.s32.totalorder %s123, %s137
    %p139 = scmp.eq.s32.totalorder %s18, 0
    %p140 = por %p138, %p139
    %s142 = sadd.s32 %s141, 1
    %p145 = scmp.eq.s32.totalorder %s12, 7
    %p146 = scmp.ne.s32.totalorder %s141, %s143
    %p147 = scmp.eq.s32.totalorder %s12, 0
    %p148 = por %p146, %p147
    %p149 = scmp.ne.s32.totalorder %s141, %s143
    %p150 = scmp.eq.s32.totalorder %s17, 7
    %p151 = por %p149, %p150
    %p152 = scmp.ne.s32.totalorder %s143, %s144
    %p153 = scmp.eq.s32.totalorder %s17, 0
    %p154 = por %p152, %p153
    %p155 = scmp.ne.s32.totalorder %s143, %s144
    %p156 = scmp.eq.s32.totalorder %s18, 7
    %p157 = por %p155, %p156
    %p159 = scmp.ne.s32.totalorder %s144, %s158
    %p160 = scmp.eq.s32.totalorder %s18, 0
    %p161 = por %p159, %p160
    %s163 = sadd.s32 %s162, 1
    %p166 = scmp.eq.s32.totalorder %s12, 7
    %p167 = scmp.ne.s32.totalorder %s162, %s164
    %p168 = scmp.eq.s32.totalorder %s12, 0
    %p169 = por %p167, %p168
    %p170 = scmp.ne.s32.totalorder %s162, %s164
    %p171 = scmp.eq.s32.totalorder %s17, 7
    %p172 = por %p170, %p171
    %p173 = scmp.ne.s32.totalorder %s164, %s165
    %p174 = scmp.eq.s32.totalorder %s17, 0
    %p175 = por %p173, %p174
    %p176 = scmp.ne.s32.totalorder %s164, %s165
    %p177 = scmp.eq.s32.totalorder %s18, 7
    %p178 = por %p176, %p177
    %p180 = scmp.ne.s32.totalorder %s165, %s179
    %p181 = scmp.eq.s32.totalorder %s18, 0
    %p182 = por %p180, %p181
    %s183 = ssub.s32 %s19, %s31
    %s184 = ssub.s32 %s20, %s27
    %s185 = sor.u32 %s183, %s184
    %p186 = scmp.eq.s32.totalorder %s185, 0
    %s188 = sadd.s32 %s187, 1
    %s189 = scalar_select %p186, %s187, %s188
    %p192 = pneg %p186
    %p193 = scmp.eq.s32.totalorder %s12, 7
    %p194 = por %p192, %p193
    %p195 = scmp.ne.s32.totalorder %s187, %s190
    %p196 = scmp.eq.s32.totalorder %s12, 0
    %p197 = por %p195, %p196
    %p198 = scmp.ne.s32.totalorder %s187, %s190
    %p199 = scmp.eq.s32.totalorder %s17, 7
    %p200 = por %p198, %p199
    %p201 = scmp.ne.s32.totalorder %s190, %s191
    %p202 = scmp.eq.s32.totalorder %s17, 0
    %p203 = por %p201, %p202
    %p204 = scmp.ne.s32.totalorder %s190, %s191
    %p205 = scmp.eq.s32.totalorder %s18, 7
    %p206 = por %p204, %p205
    %p208 = scmp.ne.s32.totalorder %s191, %s207
    %p209 = scmp.eq.s32.totalorder %s18, 0
    %p210 = por %p208, %p209
    %p211 = scmp.le.s32.totalorder 1, %s12
    %p212 = scmp.lt.s32.totalorder %s12, 9
    %p213 = pnand %p211, %p212
    %p214 = pneg %p213
    // Predicated region
    $region9: #{mf_unit_pallas.4} parent=5 // pred_check
      _
    $region10: #{mf_unit_pallas.4} parent=5 // pred_check_branch
      %216 = sbr.rel (%p213) target = $region12
    $region11: #{mf_unit_pallas.4} parent=5 // pred_region
      %s217 = ssub.s32 %s12, 1
      // Predicated region
      $region13: #{mf_unit_pallas.4} parent=11 // pred_check
        %p218 = pneg %p133
      $region14: #{mf_unit_pallas.4} parent=11 // pred_check_branch
        %220 = sbr.rel (%p218) target = $region16
      $region15: #{mf_unit_pallas.4} parent=11 // pred_region
        _
      $region16: #{mf_unit_pallas.4} parent=11 // pred_fallthru
        _
      // Predicated region
      $region17: #{mf_unit_pallas.4} parent=11 // pred_check
        %p221 = pneg %p154
      $region18: #{mf_unit_pallas.4} parent=11 // pred_check_branch
        %223 = sbr.rel (%p221) target = $region20
      $region19: #{mf_unit_pallas.4} parent=11 // pred_region
        _
      $region20: #{mf_unit_pallas.4} parent=11 // pred_fallthru
        _
      // Predicated region
      $region21: #{mf_unit_pallas.4} parent=11 // pred_check
        %p224 = pneg %p175
      $region22: #{mf_unit_pallas.4} parent=11 // pred_check_branch
        %226 = sbr.rel (%p224) target = $region24
      $region23: #{mf_unit_pallas.4} parent=11 // pred_region
        _
      $region24: #{mf_unit_pallas.4} parent=11 // pred_fallthru
        _
    $region12: #{mf_unit_pallas.4} parent=5 // pred_fallthru
      _
    %p227 = scmp.lt.s32.totalorder %s12, 8
    // Predicated region
    $region25: #{mf_unit_pallas.4} parent=5 // pred_check
      %p228 = pneg %p227
    $region26: #{mf_unit_pallas.4} parent=5 // pred_check_branch
      %230 = sbr.rel (%p228) target = $region28
    $region27: #{mf_unit_pallas.4} parent=5 // pred_region
      // Predicated region
      $region29: #{mf_unit_pallas.4} parent=27 // pred_check
        %p231 = pneg %p46
      $region30: #{mf_unit_pallas.4} parent=27 // pred_check_branch
        %233 = sbr.rel (%p231) target = $region32
      $region31: #{mf_unit_pallas.4} parent=27 // pred_region
        %p234 = scmp.lt.s32.totalorder %s19, 1
        %s235 = scalar_select %p234, %s19, 1
        %p236 = scmp.lt.s32.totalorder %s20, 5
        %s237 = scalar_select %p236, %s20, 5
        %s238 = smul.addr %s237, 20
        %s239 = smul.addr %s235, 120
        %s240 = sadd.s32 %s238, %s239
        %s241 = smul.addr %s240, 8
        %s242 = scalar_lea.vmem %s0, %s241
      $region32: #{mf_unit_pallas.4} parent=27 // pred_fallthru
        _
      // Predicated region
      $region33: #{mf_unit_pallas.4} parent=27 // pred_check
        %p243 = pneg %p76
      $region34: #{mf_unit_pallas.4} parent=27 // pred_check_branch
        %245 = sbr.rel (%p243) target = $region36
      $region35: #{mf_unit_pallas.4} parent=27 // pred_region
        %s246 = sadd.s32 %s20, 1
        %p247 = scmp.lt.s32.totalorder %s19, 1
        %s248 = scalar_select %p247, %s19, 1
        %p249 = scmp.lt.s32.totalorder %s246, 5
        %s250 = scalar_select %p249, %s246, 5
        %s251 = smul.addr %s250, 20
        %s252 = smul.addr %s248, 120
        %s253 = sadd.s32 %s251, %s252
        %s254 = smul.addr %s253, 8
        %s255 = scalar_lea.vmem %s1, %s254
        %s256 = sadd.s32 %s20, 1
      $region36: #{mf_unit_pallas.4} parent=27 // pred_fallthru
        _
      // Predicated region
      $region37: #{mf_unit_pallas.4} parent=27 // pred_check
        %p257 = pneg %p106
      $region38: #{mf_unit_pallas.4} parent=27 // pred_check_branch
        %259 = sbr.rel (%p257) target = $region40
      $region39: #{mf_unit_pallas.4} parent=27 // pred_region
        %s260 = sadd.s32 %s20, 2
        %p261 = scmp.lt.s32.totalorder %s19, 1
        %s262 = scalar_select %p261, %s19, 1
        %p263 = scmp.lt.s32.totalorder %s260, 5
        %s264 = scalar_select %p263, %s260, 5
        %s265 = smul.addr %s264, 20
        %s266 = smul.addr %s262, 120
        %s267 = sadd.s32 %s265, %s266
        %s268 = smul.addr %s267, 8
        %s269 = scalar_lea.vmem %s2, %s268
        %s270 = sadd.s32 %s20, 2
      $region40: #{mf_unit_pallas.4} parent=27 // pred_fallthru
        _
    $region28: #{mf_unit_pallas.4} parent=5 // pred_fallthru
      _
    %p271 = scmp.le.s32.totalorder 1, %s12
    %p272 = scmp.lt.s32.totalorder %s12, 9
    %p273 = pnand %p271, %p272
    %p274 = pneg %p273
    // Predicated region
    $region41: #{mf_unit_pallas.4} parent=5 // pred_check
      _
    $region42: #{mf_unit_pallas.4} parent=5 // pred_check_branch
      %276 = sbr.rel (%p273) target = $region44
    $region43: #{mf_unit_pallas.4} parent=5 // pred_region
      %s277 = ssub.s32 %s12, 1
      %p278 = scmp.lt.s32.totalorder %s21, 1
      %s279 = scalar_select %p278, %s21, 1
      %p280 = scmp.lt.s32.totalorder %s22, 5
      %s281 = scalar_select %p280, %s22, 5
      %s282 = smul.addr %s281, 20
      %s283 = smul.addr %s279, 120
      %s284 = sadd.s32 %s282, %s283
      %s285 = smul.addr %s284, 8
      %s286 = scalar_lea.vmem %s0, %s285
      %p287 = pneg %p52
      %p288 = pneg %p49
      %s289 = sadd.s32 %s22, 1
      %p290 = scmp.lt.s32.totalorder %s21, 1
      %s291 = scalar_select %p290, %s21, 1
      %p292 = scmp.lt.s32.totalorder %s289, 5
      %s293 = scalar_select %p292, %s289, 5
      %s294 = smul.addr %s293, 20
      %s295 = smul.addr %s291, 120
      %s296 = sadd.s32 %s294, %s295
      %s297 = smul.addr %s296, 8
      %s298 = scalar_lea.vmem %s1, %s297
      %p299 = pneg %p82
      %p300 = pneg %p79
      %s301 = sadd.s32 %s22, 2
      %p302 = scmp.lt.s32.totalorder %s21, 1
      %s303 = scalar_select %p302, %s21, 1
      %p304 = scmp.lt.s32.totalorder %s301, 5
      %s305 = scalar_select %p304, %s301, 5
      %s306 = smul.addr %s305, 20
      %s307 = smul.addr %s303, 120
      %s308 = sadd.s32 %s306, %s307
      %s309 = smul.addr %s308, 8
      %s310 = scalar_lea.vmem %s2, %s309
      %p311 = pneg %p112
      %p312 = pneg %p109
      %p313 = pneg %p133
      %p314 = pneg %p130
      %p315 = pneg %p154
      %p316 = pneg %p151
      %p317 = pneg %p175
      %p318 = pneg %p172
      %p319 = pneg %p203
      %p320 = pneg %p200
      %p321 = scmp.lt.s32.totalorder %s21, 1
      %s322 = scalar_select %p321, %s21, 1
      %p323 = scmp.lt.s32.totalorder %s22, 3
      %s324 = scalar_select %p323, %s22, 3
      %s325 = smul.addr %s324, 8
      %s326 = smul.addr %s322, 32
      %s327 = sadd.s32 %s325, %s326
      %s328 = smul.addr %s327, 8
      %s329 = scalar_lea.vmem %s6, %s328
      %p330 = scmp.lt.s32.totalorder %s21, 1
      %s331 = scalar_select %p330, %s21, 1
      %p332 = scmp.lt.s32.totalorder %s22, 5
      %s333 = scalar_select %p332, %s22, 5
      %s334 = smul.addr %s333, 20
      %s335 = smul.addr %s331, 120
      %s336 = sadd.s32 %s334, %s335
      %s337 = smul.addr %s336, 8
      %s338 = scalar_lea.vmem %s0, %s337
      %s339 = sadd.s32 %s22, 1
      %p340 = scmp.lt.s32.totalorder %s21, 1
      %s341 = scalar_select %p340, %s21, 1
      %p342 = scmp.lt.s32.totalorder %s339, 5
      %s343 = scalar_select %p342, %s339, 5
      %s344 = smul.addr %s343, 20
      %s345 = smul.addr %s341, 120
      %s346 = sadd.s32 %s344, %s345
      %s347 = smul.addr %s346, 8
      %s348 = scalar_lea.vmem %s1, %s347
      %s349 = sadd.s32 %s22, 1
      %s350 = sadd.s32 %s22, 2
      %p351 = scmp.lt.s32.totalorder %s21, 1
      %s352 = scalar_select %p351, %s21, 1
      %p353 = scmp.lt.s32.totalorder %s350, 5
      %s354 = scalar_select %p353, %s350, 5
      %s355 = smul.addr %s354, 20
      %s356 = smul.addr %s352, 120
      %s357 = sadd.s32 %s355, %s356
      %s358 = smul.addr %s357, 8
      %s359 = scalar_lea.vmem %s2, %s358
      %s360 = sadd.s32 %s22, 2
      %p361 = scmp.lt.s32.totalorder %s21, 1
      %s362 = scalar_select %p361, %s21, 1
      %p363 = scmp.lt.s32.totalorder %s22, 3
      %s364 = scalar_select %p363, %s22, 3
      %s365 = smul.addr %s364, 8
      %s366 = smul.addr %s362, 32
      %s367 = sadd.s32 %s365, %s366
      %s368 = smul.addr %s367, 8
      %s369 = scalar_lea.vmem %s6, %s368
      %v371 = vld [vmem:[%s338] sm:$0xff]
      %v372 = vld [vmem:[%s338 + $0x10] sm:$0xff]
      %v373 = vld [vmem:[%s338 + $0x20] sm:$0xff]
      %v374 = vld [vmem:[%s338 + $0x30] sm:$0xff]
      %v375 = vld [vmem:[%s338 + $0x40] sm:$0xff]
      %v376 = vld [vmem:[%s338 + $0x50] sm:$0xff]
      %v377 = vld [vmem:[%s338 + $0x60] sm:$0xff]
      %v378 = vld [vmem:[%s338 + $0x70] sm:$0xff]
      %vm379 = vcmask 64512
      %380 = vst.msk [vmem:[#allocation2] sm:$0xff] %vm379, %v371
      %381 = vst.msk [vmem:[#allocation2 + $0x10] sm:$0xff] %vm379, %v372
      %382 = vst.msk [vmem:[#allocation2 + $0x20] sm:$0xff] %vm379, %v373
      %383 = vst.msk [vmem:[#allocation2 + $0x30] sm:$0xff] %vm379, %v374
      %384 = vst.msk [vmem:[#allocation2 + $0x40] sm:$0xff] %vm379, %v375
      %385 = vst.msk [vmem:[#allocation2 + $0x50] sm:$0xff] %vm379, %v376
      %386 = vst.msk [vmem:[#allocation2 + $0x60] sm:$0xff] %vm379, %v377
      %387 = vst.msk [vmem:[#allocation2 + $0x70] sm:$0xff] %vm379, %v378
      %v388 = vld [vmem:[%s338 + $0x1] sm:$0xff]
      %v389 = vld [vmem:[%s338 + $0x11] sm:$0xff]
      %v390 = vld [vmem:[%s338 + $0x21] sm:$0xff]
      %v391 = vld [vmem:[%s338 + $0x31] sm:$0xff]
      %v392 = vld [vmem:[%s338 + $0x41] sm:$0xff]
      %v393 = vld [vmem:[%s338 + $0x51] sm:$0xff]
      %v394 = vld [vmem:[%s338 + $0x61] sm:$0xff]
      %v395 = vld [vmem:[%s338 + $0x71] sm:$0xff]
      %404 = vrot.lane.b32.xlu0 %v388, 8
      %v405 = vpop.permute.xlu0 %404
      %406 = vrot.lane.b32.xlu0 %v389, 8
      %v407 = vpop.permute.xlu0 %406
      %408 = vrot.lane.b32.xlu0 %v390, 8
      %v409 = vpop.permute.xlu0 %408
      %410 = vrot.lane.b32.xlu0 %v391, 8
      %v411 = vpop.permute.xlu0 %410
      %412 = vrot.lane.b32.xlu0 %v392, 8
      %v413 = vpop.permute.xlu0 %412
      %414 = vrot.lane.b32.xlu0 %v393, 8
      %v415 = vpop.permute.xlu0 %414
      %416 = vrot.lane.b32.xlu0 %v394, 8
      %v417 = vpop.permute.xlu0 %416
      %418 = vrot.lane.b32.xlu0 %v395, 8
      %v419 = vpop.permute.xlu0 %418
      %vm428 = vcmask 130112
      %429 = vst.msk [vmem:[#allocation2] sm:$0xff] %vm428, %v405
      %430 = vst.msk [vmem:[#allocation2 + $0x10] sm:$0xff] %vm428, %v407
      %431 = vst.msk [vmem:[#allocation2 + $0x20] sm:$0xff] %vm428, %v409
      %432 = vst.msk [vmem:[#allocation2 + $0x30] sm:$0xff] %vm428, %v411
      %433 = vst.msk [vmem:[#allocation2 + $0x40] sm:$0xff] %vm428, %v413
      %434 = vst.msk [vmem:[#allocation2 + $0x50] sm:$0xff] %vm428, %v415
      %435 = vst.msk [vmem:[#allocation2 + $0x60] sm:$0xff] %vm428, %v417
      %436 = vst.msk [vmem:[#allocation2 + $0x70] sm:$0xff] %vm428, %v419
      %v437 = vld [vmem:[%s338 + $0x2] sm:$0xff]
      %v438 = vld [vmem:[%s338 + $0x12] sm:$0xff]
      %v439 = vld [vmem:[%s338 + $0x22] sm:$0xff]
      %v440 = vld [vmem:[%s338 + $0x32] sm:$0xff]
      %v441 = vld [vmem:[%s338 + $0x42] sm:$0xff]
      %v442 = vld [vmem:[%s338 + $0x52] sm:$0xff]
      %v443 = vld [vmem:[%s338 + $0x62] sm:$0xff]
      %v444 = vld [vmem:[%s338 + $0x72] sm:$0xff]
      %453 = vrot.lane.b32.xlu0 %v437, 16
      %v454 = vpop.permute.xlu0 %453
      %455 = vrot.lane.b32.xlu0 %v438, 16
      %v456 = vpop.permute.xlu0 %455
      %457 = vrot.lane.b32.xlu0 %v439, 16
      %v458 = vpop.permute.xlu0 %457
      %459 = vrot.lane.b32.xlu0 %v440, 16
      %v460 = vpop.permute.xlu0 %459
      %461 = vrot.lane.b32.xlu0 %v441, 16
      %v462 = vpop.permute.xlu0 %461
      %463 = vrot.lane.b32.xlu0 %v442, 16
      %v464 = vpop.permute.xlu0 %463
      %465 = vrot.lane.b32.xlu0 %v443, 16
      %v466 = vpop.permute.xlu0 %465
      %467 = vrot.lane.b32.xlu0 %v444, 16
      %v468 = vpop.permute.xlu0 %467
      %vm477 = vcmask 195712
      %478 = vst.msk [vmem:[#allocation2] sm:$0xff] %vm477, %v454
      %479 = vst.msk [vmem:[#allocation2 + $0x10] sm:$0xff] %vm477, %v456
      %480 = vst.msk [vmem:[#allocation2 + $0x20] sm:$0xff] %vm477, %v458
      %481 = vst.msk [vmem:[#allocation2 + $0x30] sm:$0xff] %vm477, %v460
      %482 = vst.msk [vmem:[#allocation2 + $0x40] sm:$0xff] %vm477, %v462
      %483 = vst.msk [vmem:[#allocation2 + $0x50] sm:$0xff] %vm477, %v464
      %484 = vst.msk [vmem:[#allocation2 + $0x60] sm:$0xff] %vm477, %v466
      %485 = vst.msk [vmem:[#allocation2 + $0x70] sm:$0xff] %vm477, %v468
      %s486 = scalar_lea.vmem %s338, 16
      %v487 = vld [vmem:[%s486] sm:$0xff]
      %v488 = vld [vmem:[%s486 + $0x10] sm:$0xff]
      %v489 = vld [vmem:[%s486 + $0x20] sm:$0xff]
      %v490 = vld [vmem:[%s486 + $0x30] sm:$0xff]
      %v491 = vld [vmem:[%s486 + $0x40] sm:$0xff]
      %v492 = vld [vmem:[%s486 + $0x50] sm:$0xff]
      %v493 = vld [vmem:[%s486 + $0x60] sm:$0xff]
      %v494 = vld [vmem:[%s486 + $0x70] sm:$0xff]
      %503 = vrot.lane.b32.xlu0 %v487, 24
      %v504 = vpop.permute.xlu0 %503
      %505 = vrot.lane.b32.xlu0 %v488, 24
      %v506 = vpop.permute.xlu0 %505
      %507 = vrot.lane.b32.xlu0 %v489, 24
      %v508 = vpop.permute.xlu0 %507
      %509 = vrot.lane.b32.xlu0 %v490, 24
      %v510 = vpop.permute.xlu0 %509
      %511 = vrot.lane.b32.xlu0 %v491, 24
      %v512 = vpop.permute.xlu0 %511
      %513 = vrot.lane.b32.xlu0 %v492, 24
      %v514 = vpop.permute.xlu0 %513
      %515 = vrot.lane.b32.xlu0 %v493, 24
      %v516 = vpop.permute.xlu0 %515
      %517 = vrot.lane.b32.xlu0 %v494, 24
      %v518 = vpop.permute.xlu0 %517
      %vm527 = vcmask 261312
      %528 = vst.msk [vmem:[#allocation2] sm:$0xff] %vm527, %v504
      %529 = vst.msk [vmem:[#allocation2 + $0x10] sm:$0xff] %vm527, %v506
      %530 = vst.msk [vmem:[#allocation2 + $0x20] sm:$0xff] %vm527, %v508
      %531 = vst.msk [vmem:[#allocation2 + $0x30] sm:$0xff] %vm527, %v510
      %532 = vst.msk [vmem:[#allocation2 + $0x40] sm:$0xff] %vm527, %v512
      %533 = vst.msk [vmem:[#allocation2 + $0x50] sm:$0xff] %vm527, %v514
      %534 = vst.msk [vmem:[#allocation2 + $0x60] sm:$0xff] %vm527, %v516
      %535 = vst.msk [vmem:[#allocation2 + $0x70] sm:$0xff] %vm527, %v518
      %v536 = vld [vmem:[%s486 + $0x1] sm:$0xff]
      %v537 = vld [vmem:[%s486 + $0x11] sm:$0xff]
      %v538 = vld [vmem:[%s486 + $0x21] sm:$0xff]
      %v539 = vld [vmem:[%s486 + $0x31] sm:$0xff]
      %v540 = vld [vmem:[%s486 + $0x41] sm:$0xff]
      %v541 = vld [vmem:[%s486 + $0x51] sm:$0xff]
      %v542 = vld [vmem:[%s486 + $0x61] sm:$0xff]
      %v543 = vld [vmem:[%s486 + $0x71] sm:$0xff]
      %552 = vrot.lane.b32.xlu0 %v536, 32
      %v553 = vpop.permute.xlu0 %552
      %554 = vrot.lane.b32.xlu0 %v537, 32
      %v555 = vpop.permute.xlu0 %554
      %556 = vrot.lane.b32.xlu0 %v538, 32
      %v557 = vpop.permute.xlu0 %556
      %558 = vrot.lane.b32.xlu0 %v539, 32
      %v559 = vpop.permute.xlu0 %558
      %560 = vrot.lane.b32.xlu0 %v540, 32
      %v561 = vpop.permute.xlu0 %560
      %562 = vrot.lane.b32.xlu0 %v541, 32
      %v563 = vpop.permute.xlu0 %562
      %564 = vrot.lane.b32.xlu0 %v542, 32
      %v565 = vpop.permute.xlu0 %564
      %566 = vrot.lane.b32.xlu0 %v543, 32
      %v567 = vpop.permute.xlu0 %566
      %vm576 = vcmask 326912
      %577 = vst.msk [vmem:[#allocation2] sm:$0xff] %vm576, %v553
      %578 = vst.msk [vmem:[#allocation2 + $0x10] sm:$0xff] %vm576, %v555
      %579 = vst.msk [vmem:[#allocation2 + $0x20] sm:$0xff] %vm576, %v557
      %580 = vst.msk [vmem:[#allocation2 + $0x30] sm:$0xff] %vm576, %v559
      %581 = vst.msk [vmem:[#allocation2 + $0x40] sm:$0xff] %vm576, %v561
      %582 = vst.msk [vmem:[#allocation2 + $0x50] sm:$0xff] %vm576, %v563
      %583 = vst.msk [vmem:[#allocation2 + $0x60] sm:$0xff] %vm576, %v565
      %584 = vst.msk [vmem:[#allocation2 + $0x70] sm:$0xff] %vm576, %v567
      %v585 = vld [vmem:[%s486 + $0x2] sm:$0xff]
      %v586 = vld [vmem:[%s486 + $0x12] sm:$0xff]
      %v587 = vld [vmem:[%s486 + $0x22] sm:$0xff]
      %v588 = vld [vmem:[%s486 + $0x32] sm:$0xff]
      %v589 = vld [vmem:[%s486 + $0x42] sm:$0xff]
      %v590 = vld [vmem:[%s486 + $0x52] sm:$0xff]
      %v591 = vld [vmem:[%s486 + $0x62] sm:$0xff]
      %v592 = vld [vmem:[%s486 + $0x72] sm:$0xff]
      %601 = vrot.lane.b32.xlu0 %v585, 40
      %v602 = vpop.permute.xlu0 %601
      %603 = vrot.lane.b32.xlu0 %v586, 40
      %v604 = vpop.permute.xlu0 %603
      %605 = vrot.lane.b32.xlu0 %v587, 40
      %v606 = vpop.permute.xlu0 %605
      %607 = vrot.lane.b32.xlu0 %v588, 40
      %v608 = vpop.permute.xlu0 %607
      %609 = vrot.lane.b32.xlu0 %v589, 40
      %v610 = vpop.permute.xlu0 %609
      %611 = vrot.lane.b32.xlu0 %v590, 40
      %v612 = vpop.permute.xlu0 %611
      %613 = vrot.lane.b32.xlu0 %v591, 40
      %v614 = vpop.permute.xlu0 %613
      %615 = vrot.lane.b32.xlu0 %v592, 40
      %v616 = vpop.permute.xlu0 %615
      %vm625 = vcmask 392512
      %626 = vst.msk [vmem:[#allocation2] sm:$0xff] %vm625, %v602
      %627 = vst.msk [vmem:[#allocation2 + $0x10] sm:$0xff] %vm625, %v604
      %628 = vst.msk [vmem:[#allocation2 + $0x20] sm:$0xff] %vm625, %v606
      %629 = vst.msk [vmem:[#allocation2 + $0x30] sm:$0xff] %vm625, %v608
      %630 = vst.msk [vmem:[#allocation2 + $0x40] sm:$0xff] %vm625, %v610
      %631 = vst.msk [vmem:[#allocation2 + $0x50] sm:$0xff] %vm625, %v612
      %632 = vst.msk [vmem:[#allocation2 + $0x60] sm:$0xff] %vm625, %v614
      %633 = vst.msk [vmem:[#allocation2 + $0x70] sm:$0xff] %vm625, %v616
      %s634 = scalar_lea.vmem %s338, 32
      %v635 = vld [vmem:[%s634] sm:$0xff]
      %v636 = vld [vmem:[%s634 + $0x10] sm:$0xff]
      %v637 = vld [vmem:[%s634 + $0x20] sm:$0xff]
      %v638 = vld [vmem:[%s634 + $0x30] sm:$0xff]
      %v639 = vld [vmem:[%s634 + $0x40] sm:$0xff]
      %v640 = vld [vmem:[%s634 + $0x50] sm:$0xff]
      %v641 = vld [vmem:[%s634 + $0x60] sm:$0xff]
      %v642 = vld [vmem:[%s634 + $0x70] sm:$0xff]
      %651 = vrot.lane.b32.xlu0 %v635, 48
      %v652 = vpop.permute.xlu0 %651
      %653 = vrot.lane.b32.xlu0 %v636, 48
      %v654 = vpop.permute.xlu0 %653
      %655 = vrot.lane.b32.xlu0 %v637, 48
      %v656 = vpop.permute.xlu0 %655
      %657 = vrot.lane.b32.xlu0 %v638, 48
      %v658 = vpop.permute.xlu0 %657
      %659 = vrot.lane.b32.xlu0 %v639, 48
      %v660 = vpop.permute.xlu0 %659
      %661 = vrot.lane.b32.xlu0 %v640, 48
      %v662 = vpop.permute.xlu0 %661
      %663 = vrot.lane.b32.xlu0 %v641, 48
      %v664 = vpop.permute.xlu0 %663
      %665 = vrot.lane.b32.xlu0 %v642, 48
      %v666 = vpop.permute.xlu0 %665
      %vm675 = vcmask 458112
      %676 = vst.msk [vmem:[#allocation2] sm:$0xff] %vm675, %v652
      %677 = vst.msk [vmem:[#allocation2 + $0x10] sm:$0xff] %vm675, %v654
      %678 = vst.msk [vmem:[#allocation2 + $0x20] sm:$0xff] %vm675, %v656
      %679 = vst.msk [vmem:[#allocation2 + $0x30] sm:$0xff] %vm675, %v658
      %680 = vst.msk [vmem:[#allocation2 + $0x40] sm:$0xff] %vm675, %v660
      %681 = vst.msk [vmem:[#allocation2 + $0x50] sm:$0xff] %vm675, %v662
      %682 = vst.msk [vmem:[#allocation2 + $0x60] sm:$0xff] %vm675, %v664
      %683 = vst.msk [vmem:[#allocation2 + $0x70] sm:$0xff] %vm675, %v666
      %v684 = vld [vmem:[%s634 + $0x1] sm:$0xff]
      %v685 = vld [vmem:[%s634 + $0x11] sm:$0xff]
      %v686 = vld [vmem:[%s634 + $0x21] sm:$0xff]
      %v687 = vld [vmem:[%s634 + $0x31] sm:$0xff]
      %v688 = vld [vmem:[%s634 + $0x41] sm:$0xff]
      %v689 = vld [vmem:[%s634 + $0x51] sm:$0xff]
      %v690 = vld [vmem:[%s634 + $0x61] sm:$0xff]
      %v691 = vld [vmem:[%s634 + $0x71] sm:$0xff]
      %700 = vrot.lane.b32.xlu0 %v684, 56
      %v701 = vpop.permute.xlu0 %700
      %702 = vrot.lane.b32.xlu0 %v685, 56
      %v703 = vpop.permute.xlu0 %702
      %704 = vrot.lane.b32.xlu0 %v686, 56
      %v705 = vpop.permute.xlu0 %704
      %706 = vrot.lane.b32.xlu0 %v687, 56
      %v707 = vpop.permute.xlu0 %706
      %708 = vrot.lane.b32.xlu0 %v688, 56
      %v709 = vpop.permute.xlu0 %708
      %710 = vrot.lane.b32.xlu0 %v689, 56
      %v711 = vpop.permute.xlu0 %710
      %712 = vrot.lane.b32.xlu0 %v690, 56
      %v713 = vpop.permute.xlu0 %712
      %714 = vrot.lane.b32.xlu0 %v691, 56
      %v715 = vpop.permute.xlu0 %714
      %vm724 = vcmask 523712
      %725 = vst.msk [vmem:[#allocation2] sm:$0xff] %vm724, %v701
      %726 = vst.msk [vmem:[#allocation2 + $0x10] sm:$0xff] %vm724, %v703
      %727 = vst.msk [vmem:[#allocation2 + $0x20] sm:$0xff] %vm724, %v705
      %728 = vst.msk [vmem:[#allocation2 + $0x30] sm:$0xff] %vm724, %v707
      %729 = vst.msk [vmem:[#allocation2 + $0x40] sm:$0xff] %vm724, %v709
      %730 = vst.msk [vmem:[#allocation2 + $0x50] sm:$0xff] %vm724, %v711
      %731 = vst.msk [vmem:[#allocation2 + $0x60] sm:$0xff] %vm724, %v713
      %732 = vst.msk [vmem:[#allocation2 + $0x70] sm:$0xff] %vm724, %v715
      %v733 = vld [vmem:[%s634 + $0x2] sm:$0xff]
      %v734 = vld [vmem:[%s634 + $0x12] sm:$0xff]
      %v735 = vld [vmem:[%s634 + $0x22] sm:$0xff]
      %v736 = vld [vmem:[%s634 + $0x32] sm:$0xff]
      %v737 = vld [vmem:[%s634 + $0x42] sm:$0xff]
      %v738 = vld [vmem:[%s634 + $0x52] sm:$0xff]
      %v739 = vld [vmem:[%s634 + $0x62] sm:$0xff]
      %v740 = vld [vmem:[%s634 + $0x72] sm:$0xff]
      %749 = vrot.lane.b32.xlu0 %v733, 64
      %v750 = vpop.permute.xlu0 %749
      %751 = vrot.lane.b32.xlu0 %v734, 64
      %v752 = vpop.permute.xlu0 %751
      %753 = vrot.lane.b32.xlu0 %v735, 64
      %v754 = vpop.permute.xlu0 %753
      %755 = vrot.lane.b32.xlu0 %v736, 64
      %v756 = vpop.permute.xlu0 %755
      %757 = vrot.lane.b32.xlu0 %v737, 64
      %v758 = vpop.permute.xlu0 %757
      %759 = vrot.lane.b32.xlu0 %v738, 64
      %v760 = vpop.permute.xlu0 %759
      %761 = vrot.lane.b32.xlu0 %v739, 64
      %v762 = vpop.permute.xlu0 %761
      %763 = vrot.lane.b32.xlu0 %v740, 64
      %v764 = vpop.permute.xlu0 %763
      %vm773 = vcmask 589312
      %774 = vst.msk [vmem:[#allocation2] sm:$0xff] %vm773, %v750
      %775 = vst.msk [vmem:[#allocation2 + $0x10] sm:$0xff] %vm773, %v752
      %776 = vst.msk [vmem:[#allocation2 + $0x20] sm:$0xff] %vm773, %v754
      %777 = vst.msk [vmem:[#allocation2 + $0x30] sm:$0xff] %vm773, %v756
      %778 = vst.msk [vmem:[#allocation2 + $0x40] sm:$0xff] %vm773, %v758
      %779 = vst.msk [vmem:[#allocation2 + $0x50] sm:$0xff] %vm773, %v760
      %780 = vst.msk [vmem:[#allocation2 + $0x60] sm:$0xff] %vm773, %v762
      %781 = vst.msk [vmem:[#allocation2 + $0x70] sm:$0xff] %vm773, %v764
      %v782 = vld [vmem:[%s348] sm:$0xff]
      %v783 = vld [vmem:[%s348 + $0x10] sm:$0xff]
      %v784 = vld [vmem:[%s348 + $0x20] sm:$0xff]
      %v785 = vld [vmem:[%s348 + $0x30] sm:$0xff]
      %v786 = vld [vmem:[%s348 + $0x40] sm:$0xff]
      %v787 = vld [vmem:[%s348 + $0x50] sm:$0xff]
      %v788 = vld [vmem:[%s348 + $0x60] sm:$0xff]
      %v789 = vld [vmem:[%s348 + $0x70] sm:$0xff]
      %798 = vrot.lane.b32.xlu0 %v782, 72
      %v799 = vpop.permute.xlu0 %798
      %800 = vrot.lane.b32.xlu0 %v783, 72
      %v801 = vpop.permute.xlu0 %800
      %802 = vrot.lane.b32.xlu0 %v784, 72
      %v803 = vpop.permute.xlu0 %802
      %804 = vrot.lane.b32.xlu0 %v785, 72
      %v805 = vpop.permute.xlu0 %804
      %806 = vrot.lane.b32.xlu0 %v786, 72
      %v807 = vpop.permute.xlu0 %806
      %808 = vrot.lane.b32.xlu0 %v787, 72
      %v809 = vpop.permute.xlu0 %808
      %810 = vrot.lane.b32.xlu0 %v788, 72
      %v811 = vpop.permute.xlu0 %810
      %812 = vrot.lane.b32.xlu0 %v789, 72
      %v813 = vpop.permute.xlu0 %812
      %vm822 = vcmask 654912
      %823 = vst.msk [vmem:[#allocation2] sm:$0xff] %vm822, %v799
      %824 = vst.msk [vmem:[#allocation2 + $0x10] sm:$0xff] %vm822, %v801
      %825 = vst.msk [vmem:[#allocation2 + $0x20] sm:$0xff] %vm822, %v803
      %826 = vst.msk [vmem:[#allocation2 + $0x30] sm:$0xff] %vm822, %v805
      %827 = vst.msk [vmem:[#allocation2 + $0x40] sm:$0xff] %vm822, %v807
      %828 = vst.msk [vmem:[#allocation2 + $0x50] sm:$0xff] %vm822, %v809
      %829 = vst.msk [vmem:[#allocation2 + $0x60] sm:$0xff] %vm822, %v811
      %830 = vst.msk [vmem:[#allocation2 + $0x70] sm:$0xff] %vm822, %v813
      %v831 = vld [vmem:[%s348 + $0x1] sm:$0xff]
      %v832 = vld [vmem:[%s348 + $0x11] sm:$0xff]
      %v833 = vld [vmem:[%s348 + $0x21] sm:$0xff]
      %v834 = vld [vmem:[%s348 + $0x31] sm:$0xff]
      %v835 = vld [vmem:[%s348 + $0x41] sm:$0xff]
      %v836 = vld [vmem:[%s348 + $0x51] sm:$0xff]
      %v837 = vld [vmem:[%s348 + $0x61] sm:$0xff]
      %v838 = vld [vmem:[%s348 + $0x71] sm:$0xff]
      %847 = vrot.lane.b32.xlu0 %v831, 80
      %v848 = vpop.permute.xlu0 %847
      %849 = vrot.lane.b32.xlu0 %v832, 80
      %v850 = vpop.permute.xlu0 %849
      %851 = vrot.lane.b32.xlu0 %v833, 80
      %v852 = vpop.permute.xlu0 %851
      %853 = vrot.lane.b32.xlu0 %v834, 80
      %v854 = vpop.permute.xlu0 %853
      %855 = vrot.lane.b32.xlu0 %v835, 80
      %v856 = vpop.permute.xlu0 %855
      %857 = vrot.lane.b32.xlu0 %v836, 80
      %v858 = vpop.permute.xlu0 %857
      %859 = vrot.lane.b32.xlu0 %v837, 80
      %v860 = vpop.permute.xlu0 %859
      %861 = vrot.lane.b32.xlu0 %v838, 80
      %v862 = vpop.permute.xlu0 %861
      %vm871 = vcmask 720512
      %872 = vst.msk [vmem:[#allocation2] sm:$0xff] %vm871, %v848
      %873 = vst.msk [vmem:[#allocation2 + $0x10] sm:$0xff] %vm871, %v850
      %874 = vst.msk [vmem:[#allocation2 + $0x20] sm:$0xff] %vm871, %v852
      %875 = vst.msk [vmem:[#allocation2 + $0x30] sm:$0xff] %vm871, %v854
      %876 = vst.msk [vmem:[#allocation2 + $0x40] sm:$0xff] %vm871, %v856
      %877 = vst.msk [vmem:[#allocation2 + $0x50] sm:$0xff] %vm871, %v858
      %878 = vst.msk [vmem:[#allocation2 + $0x60] sm:$0xff] %vm871, %v860
      %879 = vst.msk [vmem:[#allocation2 + $0x70] sm:$0xff] %vm871, %v862
      %v880 = vld [vmem:[%s348 + $0x2] sm:$0xff]
      %v881 = vld [vmem:[%s348 + $0x12] sm:$0xff]
      %v882 = vld [vmem:[%s348 + $0x22] sm:$0xff]
      %v883 = vld [vmem:[%s348 + $0x32] sm:$0xff]
      %v884 = vld [vmem:[%s348 + $0x42] sm:$0xff]
      %v885 = vld [vmem:[%s348 + $0x52] sm:$0xff]
      %v886 = vld [vmem:[%s348 + $0x62] sm:$0xff]
      %v887 = vld [vmem:[%s348 + $0x72] sm:$0xff]
      %896 = vrot.lane.b32.xlu0 %v880, 88
      %v897 = vpop.permute.xlu0 %896
      %898 = vrot.lane.b32.xlu0 %v881, 88
      %v899 = vpop.permute.xlu0 %898
      %900 = vrot.lane.b32.xlu0 %v882, 88
      %v901 = vpop.permute.xlu0 %900
      %902 = vrot.lane.b32.xlu0 %v883, 88
      %v903 = vpop.permute.xlu0 %902
      %904 = vrot.lane.b32.xlu0 %v884, 88
      %v905 = vpop.permute.xlu0 %904
      %906 = vrot.lane.b32.xlu0 %v885, 88
      %v907 = vpop.permute.xlu0 %906
      %908 = vrot.lane.b32.xlu0 %v886, 88
      %v909 = vpop.permute.xlu0 %908
      %910 = vrot.lane.b32.xlu0 %v887, 88
      %v911 = vpop.permute.xlu0 %910
      %vm920 = vcmask 786112
      %921 = vst.msk [vmem:[#allocation2] sm:$0xff] %vm920, %v897
      %922 = vst.msk [vmem:[#allocation2 + $0x10] sm:$0xff] %vm920, %v899
      %923 = vst.msk [vmem:[#allocation2 + $0x20] sm:$0xff] %vm920, %v901
      %924 = vst.msk [vmem:[#allocation2 + $0x30] sm:$0xff] %vm920, %v903
      %925 = vst.msk [vmem:[#allocation2 + $0x40] sm:$0xff] %vm920, %v905
      %926 = vst.msk [vmem:[#allocation2 + $0x50] sm:$0xff] %vm920, %v907
      %927 = vst.msk [vmem:[#allocation2 + $0x60] sm:$0xff] %vm920, %v909
      %928 = vst.msk [vmem:[#allocation2 + $0x70] sm:$0xff] %vm920, %v911
      %s929 = scalar_lea.vmem %s348, 16
      %v930 = vld [vmem:[%s929] sm:$0xff]
      %v931 = vld [vmem:[%s929 + $0x10] sm:$0xff]
      %v932 = vld [vmem:[%s929 + $0x20] sm:$0xff]
      %v933 = vld [vmem:[%s929 + $0x30] sm:$0xff]
      %v934 = vld [vmem:[%s929 + $0x40] sm:$0xff]
      %v935 = vld [vmem:[%s929 + $0x50] sm:$0xff]
      %v936 = vld [vmem:[%s929 + $0x60] sm:$0xff]
      %v937 = vld [vmem:[%s929 + $0x70] sm:$0xff]
      %946 = vrot.lane.b32.xlu0 %v930, 96
      %v947 = vpop.permute.xlu0 %946
      %948 = vrot.lane.b32.xlu0 %v931, 96
      %v949 = vpop.permute.xlu0 %948
      %950 = vrot.lane.b32.xlu0 %v932, 96
      %v951 = vpop.permute.xlu0 %950
      %952 = vrot.lane.b32.xlu0 %v933, 96
      %v953 = vpop.permute.xlu0 %952
      %954 = vrot.lane.b32.xlu0 %v934, 96
      %v955 = vpop.permute.xlu0 %954
      %956 = vrot.lane.b32.xlu0 %v935, 96
      %v957 = vpop.permute.xlu0 %956
      %958 = vrot.lane.b32.xlu0 %v936, 96
      %v959 = vpop.permute.xlu0 %958
      %960 = vrot.lane.b32.xlu0 %v937, 96
      %v961 = vpop.permute.xlu0 %960
      %vm970 = vcmask 851712
      %971 = vst.msk [vmem:[#allocation2] sm:$0xff] %vm970, %v947
      %972 = vst.msk [vmem:[#allocation2 + $0x10] sm:$0xff] %vm970, %v949
      %973 = vst.msk [vmem:[#allocation2 + $0x20] sm:$0xff] %vm970, %v951
      %974 = vst.msk [vmem:[#allocation2 + $0x30] sm:$0xff] %vm970, %v953
      %975 = vst.msk [vmem:[#allocation2 + $0x40] sm:$0xff] %vm970, %v955
      %976 = vst.msk [vmem:[#allocation2 + $0x50] sm:$0xff] %vm970, %v957
      %977 = vst.msk [vmem:[#allocation2 + $0x60] sm:$0xff] %vm970, %v959
      %978 = vst.msk [vmem:[#allocation2 + $0x70] sm:$0xff] %vm970, %v961
      %v979 = vld [vmem:[%s929 + $0x1] sm:$0xff]
      %v980 = vld [vmem:[%s929 + $0x11] sm:$0xff]
      %v981 = vld [vmem:[%s929 + $0x21] sm:$0xff]
      %v982 = vld [vmem:[%s929 + $0x31] sm:$0xff]
      %v983 = vld [vmem:[%s929 + $0x41] sm:$0xff]
      %v984 = vld [vmem:[%s929 + $0x51] sm:$0xff]
      %v985 = vld [vmem:[%s929 + $0x61] sm:$0xff]
      %v986 = vld [vmem:[%s929 + $0x71] sm:$0xff]
      %995 = vrot.lane.b32.xlu0 %v979, 104
      %v996 = vpop.permute.xlu0 %995
      %997 = vrot.lane.b32.xlu0 %v980, 104
      %v998 = vpop.permute.xlu0 %997
      %999 = vrot.lane.b32.xlu0 %v981, 104
      %v1000 = vpop.permute.xlu0 %999
      %1001 = vrot.lane.b32.xlu0 %v982, 104
      %v1002 = vpop.permute.xlu0 %1001
      %1003 = vrot.lane.b32.xlu0 %v983, 104
      %v1004 = vpop.permute.xlu0 %1003
      %1005 = vrot.lane.b32.xlu0 %v984, 104
      %v1006 = vpop.permute.xlu0 %1005
      %1007 = vrot.lane.b32.xlu0 %v985, 104
      %v1008 = vpop.permute.xlu0 %1007
      %1009 = vrot.lane.b32.xlu0 %v986, 104
      %v1010 = vpop.permute.xlu0 %1009
      %vm1019 = vcmask 917312
      %1020 = vst.msk [vmem:[#allocation2] sm:$0xff] %vm1019, %v996
      %1021 = vst.msk [vmem:[#allocation2 + $0x10] sm:$0xff] %vm1019, %v998
      %1022 = vst.msk [vmem:[#allocation2 + $0x20] sm:$0xff] %vm1019, %v1000
      %1023 = vst.msk [vmem:[#allocation2 + $0x30] sm:$0xff] %vm1019, %v1002
      %1024 = vst.msk [vmem:[#allocation2 + $0x40] sm:$0xff] %vm1019, %v1004
      %1025 = vst.msk [vmem:[#allocation2 + $0x50] sm:$0xff] %vm1019, %v1006
      %1026 = vst.msk [vmem:[#allocation2 + $0x60] sm:$0xff] %vm1019, %v1008
      %1027 = vst.msk [vmem:[#allocation2 + $0x70] sm:$0xff] %vm1019, %v1010
      %v1028 = vld [vmem:[%s929 + $0x2] sm:$0xff]
      %v1029 = vld [vmem:[%s929 + $0x12] sm:$0xff]
      %v1030 = vld [vmem:[%s929 + $0x22] sm:$0xff]
      %v1031 = vld [vmem:[%s929 + $0x32] sm:$0xff]
      %v1032 = vld [vmem:[%s929 + $0x42] sm:$0xff]
      %v1033 = vld [vmem:[%s929 + $0x52] sm:$0xff]
      %v1034 = vld [vmem:[%s929 + $0x62] sm:$0xff]
      %v1035 = vld [vmem:[%s929 + $0x72] sm:$0xff]
      %1044 = vrot.lane.b32.xlu0 %v1028, 112
      %v1045 = vpop.permute.xlu0 %1044
      %1046 = vrot.lane.b32.xlu0 %v1029, 112
      %v1047 = vpop.permute.xlu0 %1046
      %1048 = vrot.lane.b32.xlu0 %v1030, 112
      %v1049 = vpop.permute.xlu0 %1048
      %1050 = vrot.lane.b32.xlu0 %v1031, 112
      %v1051 = vpop.permute.xlu0 %1050
      %1052 = vrot.lane.b32.xlu0 %v1032, 112
      %v1053 = vpop.permute.xlu0 %1052
      %1054 = vrot.lane.b32.xlu0 %v1033, 112
      %v1055 = vpop.permute.xlu0 %1054
      %1056 = vrot.lane.b32.xlu0 %v1034, 112
      %v1057 = vpop.permute.xlu0 %1056
      %1058 = vrot.lane.b32.xlu0 %v1035, 112
      %v1059 = vpop.permute.xlu0 %1058
      %vm1068 = vcmask 982912
      %1069 = vst.msk [vmem:[#allocation2] sm:$0xff] %vm1068, %v1045
      %1070 = vst.msk [vmem:[#allocation2 + $0x10] sm:$0xff] %vm1068, %v1047
      %1071 = vst.msk [vmem:[#allocation2 + $0x20] sm:$0xff] %vm1068, %v1049
      %1072 = vst.msk [vmem:[#allocation2 + $0x30] sm:$0xff] %vm1068, %v1051
      %1073 = vst.msk [vmem:[#allocation2 + $0x40] sm:$0xff] %vm1068, %v1053
      %1074 = vst.msk [vmem:[#allocation2 + $0x50] sm:$0xff] %vm1068, %v1055
      %1075 = vst.msk [vmem:[#allocation2 + $0x60] sm:$0xff] %vm1068, %v1057
      %1076 = vst.msk [vmem:[#allocation2 + $0x70] sm:$0xff] %vm1068, %v1059
      %s1077 = scalar_lea.vmem %s348, 32
      %v1078 = vld [vmem:[%s1077] sm:$0xff]
      %v1079 = vld [vmem:[%s1077 + $0x10] sm:$0xff]
      %v1080 = vld [vmem:[%s1077 + $0x20] sm:$0xff]
      %v1081 = vld [vmem:[%s1077 + $0x30] sm:$0xff]
      %v1082 = vld [vmem:[%s1077 + $0x40] sm:$0xff]
      %v1083 = vld [vmem:[%s1077 + $0x50] sm:$0xff]
      %v1084 = vld [vmem:[%s1077 + $0x60] sm:$0xff]
      %v1085 = vld [vmem:[%s1077 + $0x70] sm:$0xff]
      %1094 = vrot.lane.b32.xlu0 %v1078, 120
      %v1095 = vpop.permute.xlu0 %1094
      %1096 = vrot.lane.b32.xlu0 %v1079, 120
      %v1097 = vpop.permute.xlu0 %1096
      %1098 = vrot.lane.b32.xlu0 %v1080, 120
      %v1099 = vpop.permute.xlu0 %1098
      %1100 = vrot.lane.b32.xlu0 %v1081, 120
      %v1101 = vpop.permute.xlu0 %1100
      %1102 = vrot.lane.b32.xlu0 %v1082, 120
      %v1103 = vpop.permute.xlu0 %1102
      %1104 = vrot.lane.b32.xlu0 %v1083, 120
      %v1105 = vpop.permute.xlu0 %1104
      %1106 = vrot.lane.b32.xlu0 %v1084, 120
      %v1107 = vpop.permute.xlu0 %1106
      %1108 = vrot.lane.b32.xlu0 %v1085, 120
      %v1109 = vpop.permute.xlu0 %1108
      %vm1118 = vcmask 1048512
      %1119 = vst.msk [vmem:[#allocation2] sm:$0xff] %vm1118, %v1095
      %1120 = vst.msk [vmem:[#allocation2 + $0x10] sm:$0xff] %vm1118, %v1097
      %1121 = vst.msk [vmem:[#allocation2 + $0x20] sm:$0xff] %vm1118, %v1099
      %1122 = vst.msk [vmem:[#allocation2 + $0x30] sm:$0xff] %vm1118, %v1101
      %1123 = vst.msk [vmem:[#allocation2 + $0x40] sm:$0xff] %vm1118, %v1103
      %1124 = vst.msk [vmem:[#allocation2 + $0x50] sm:$0xff] %vm1118, %v1105
      %1125 = vst.msk [vmem:[#allocation2 + $0x60] sm:$0xff] %vm1118, %v1107
      %1126 = vst.msk [vmem:[#allocation2 + $0x70] sm:$0xff] %vm1118, %v1109
      %v1127 = vld [vmem:[%s1077 + $0x1] sm:$0xff]
      %v1128 = vld [vmem:[%s1077 + $0x11] sm:$0xff]
      %v1129 = vld [vmem:[%s1077 + $0x21] sm:$0xff]
      %v1130 = vld [vmem:[%s1077 + $0x31] sm:$0xff]
      %v1131 = vld [vmem:[%s1077 + $0x41] sm:$0xff]
      %v1132 = vld [vmem:[%s1077 + $0x51] sm:$0xff]
      %v1133 = vld [vmem:[%s1077 + $0x61] sm:$0xff]
      %v1134 = vld [vmem:[%s1077 + $0x71] sm:$0xff]
      %1135 = vst.msk [vmem:[#allocation2 + $0x8] sm:$0xff] %vm379, %v1127
      %1136 = vst.msk [vmem:[#allocation2 + $0x18] sm:$0xff] %vm379, %v1128
      %1137 = vst.msk [vmem:[#allocation2 + $0x28] sm:$0xff] %vm379, %v1129
      %1138 = vst.msk [vmem:[#allocation2 + $0x38] sm:$0xff] %vm379, %v1130
      %1139 = vst.msk [vmem:[#allocation2 + $0x48] sm:$0xff] %vm379, %v1131
      %1140 = vst.msk [vmem:[#allocation2 + $0x58] sm:$0xff] %vm379, %v1132
      %1141 = vst.msk [vmem:[#allocation2 + $0x68] sm:$0xff] %vm379, %v1133
      %1142 = vst.msk [vmem:[#allocation2 + $0x78] sm:$0xff] %vm379, %v1134
      %v1143 = vld [vmem:[%s1077 + $0x2] sm:$0xff]
      %v1144 = vld [vmem:[%s1077 + $0x12] sm:$0xff]
      %v1145 = vld [vmem:[%s1077 + $0x22] sm:$0xff]
      %v1146 = vld [vmem:[%s1077 + $0x32] sm:$0xff]
      %v1147 = vld [vmem:[%s1077 + $0x42] sm:$0xff]
      %v1148 = vld [vmem:[%s1077 + $0x52] sm:$0xff]
      %v1149 = vld [vmem:[%s1077 + $0x62] sm:$0xff]
      %v1150 = vld [vmem:[%s1077 + $0x72] sm:$0xff]
      %1159 = vrot.lane.b32.xlu0 %v1143, 8
      %v1160 = vpop.permute.xlu0 %1159
      %1161 = vrot.lane.b32.xlu0 %v1144, 8
      %v1162 = vpop.permute.xlu0 %1161
      %1163 = vrot.lane.b32.xlu0 %v1145, 8
      %v1164 = vpop.permute.xlu0 %1163
      %1165 = vrot.lane.b32.xlu0 %v1146, 8
      %v1166 = vpop.permute.xlu0 %1165
      %1167 = vrot.lane.b32.xlu0 %v1147, 8
      %v1168 = vpop.permute.xlu0 %1167
      %1169 = vrot.lane.b32.xlu0 %v1148, 8
      %v1170 = vpop.permute.xlu0 %1169
      %1171 = vrot.lane.b32.xlu0 %v1149, 8
      %v1172 = vpop.permute.xlu0 %1171
      %1173 = vrot.lane.b32.xlu0 %v1150, 8
      %v1174 = vpop.permute.xlu0 %1173
      %1183 = vst.msk [vmem:[#allocation2 + $0x8] sm:$0xff] %vm428, %v1160
      %1184 = vst.msk [vmem:[#allocation2 + $0x18] sm:$0xff] %vm428, %v1162
      %1185 = vst.msk [vmem:[#allocation2 + $0x28] sm:$0xff] %vm428, %v1164
      %1186 = vst.msk [vmem:[#allocation2 + $0x38] sm:$0xff] %vm428, %v1166
      %1187 = vst.msk [vmem:[#allocation2 + $0x48] sm:$0xff] %vm428, %v1168
      %1188 = vst.msk [vmem:[#allocation2 + $0x58] sm:$0xff] %vm428, %v1170
      %1189 = vst.msk [vmem:[#allocation2 + $0x68] sm:$0xff] %vm428, %v1172
      %1190 = vst.msk [vmem:[#allocation2 + $0x78] sm:$0xff] %vm428, %v1174
      %v1191 = vld [vmem:[%s359] sm:$0xff]
      %v1192 = vld [vmem:[%s359 + $0x10] sm:$0xff]
      %v1193 = vld [vmem:[%s359 + $0x20] sm:$0xff]
      %v1194 = vld [vmem:[%s359 + $0x30] sm:$0xff]
      %v1195 = vld [vmem:[%s359 + $0x40] sm:$0xff]
      %v1196 = vld [vmem:[%s359 + $0x50] sm:$0xff]
      %v1197 = vld [vmem:[%s359 + $0x60] sm:$0xff]
      %v1198 = vld [vmem:[%s359 + $0x70] sm:$0xff]
      %1207 = vrot.lane.b32.xlu0 %v1191, 16
      %v1208 = vpop.permute.xlu0 %1207
      %1209 = vrot.lane.b32.xlu0 %v1192, 16
      %v1210 = vpop.permute.xlu0 %1209
      %1211 = vrot.lane.b32.xlu0 %v1193, 16
      %v1212 = vpop.permute.xlu0 %1211
      %1213 = vrot.lane.b32.xlu0 %v1194, 16
      %v1214 = vpop.permute.xlu0 %1213
      %1215 = vrot.lane.b32.xlu0 %v1195, 16
      %v1216 = vpop.permute.xlu0 %1215
      %1217 = vrot.lane.b32.xlu0 %v1196, 16
      %v1218 = vpop.permute.xlu0 %1217
      %1219 = vrot.lane.b32.xlu0 %v1197, 16
      %v1220 = vpop.permute.xlu0 %1219
      %1221 = vrot.lane.b32.xlu0 %v1198, 16
      %v1222 = vpop.permute.xlu0 %1221
      %1231 = vst.msk [vmem:[#allocation2 + $0x8] sm:$0xff] %vm477, %v1208
      %1232 = vst.msk [vmem:[#allocation2 + $0x18] sm:$0xff] %vm477, %v1210
      %1233 = vst.msk [vmem:[#allocation2 + $0x28] sm:$0xff] %vm477, %v1212
      %1234 = vst.msk [vmem:[#allocation2 + $0x38] sm:$0xff] %vm477, %v1214
      %1235 = vst.msk [vmem:[#allocation2 + $0x48] sm:$0xff] %vm477, %v1216
      %1236 = vst.msk [vmem:[#allocation2 + $0x58] sm:$0xff] %vm477, %v1218
      %1237 = vst.msk [vmem:[#allocation2 + $0x68] sm:$0xff] %vm477, %v1220
      %1238 = vst.msk [vmem:[#allocation2 + $0x78] sm:$0xff] %vm477, %v1222
      %v1239 = vld [vmem:[%s359 + $0x1] sm:$0xff]
      %v1240 = vld [vmem:[%s359 + $0x11] sm:$0xff]
      %v1241 = vld [vmem:[%s359 + $0x21] sm:$0xff]
      %v1242 = vld [vmem:[%s359 + $0x31] sm:$0xff]
      %v1243 = vld [vmem:[%s359 + $0x41] sm:$0xff]
      %v1244 = vld [vmem:[%s359 + $0x51] sm:$0xff]
      %v1245 = vld [vmem:[%s359 + $0x61] sm:$0xff]
      %v1246 = vld [vmem:[%s359 + $0x71] sm:$0xff]
      %1255 = vrot.lane.b32.xlu0 %v1239, 24
      %v1256 = vpop.permute.xlu0 %1255
      %1257 = vrot.lane.b32.xlu0 %v1240, 24
      %v1258 = vpop.permute.xlu0 %1257
      %1259 = vrot.lane.b32.xlu0 %v1241, 24
      %v1260 = vpop.permute.xlu0 %1259
      %1261 = vrot.lane.b32.xlu0 %v1242, 24
      %v1262 = vpop.permute.xlu0 %1261
      %1263 = vrot.lane.b32.xlu0 %v1243, 24
      %v1264 = vpop.permute.xlu0 %1263
      %1265 = vrot.lane.b32.xlu0 %v1244, 24
      %v1266 = vpop.permute.xlu0 %1265
      %1267 = vrot.lane.b32.xlu0 %v1245, 24
      %v1268 = vpop.permute.xlu0 %1267
      %1269 = vrot.lane.b32.xlu0 %v1246, 24
      %v1270 = vpop.permute.xlu0 %1269
      %1279 = vst.msk [vmem:[#allocation2 + $0x8] sm:$0xff] %vm527, %v1256
      %1280 = vst.msk [vmem:[#allocation2 + $0x18] sm:$0xff] %vm527, %v1258
      %1281 = vst.msk [vmem:[#allocation2 + $0x28] sm:$0xff] %vm527, %v1260
      %1282 = vst.msk [vmem:[#allocation2 + $0x38] sm:$0xff] %vm527, %v1262
      %1283 = vst.msk [vmem:[#allocation2 + $0x48] sm:$0xff] %vm527, %v1264
      %1284 = vst.msk [vmem:[#allocation2 + $0x58] sm:$0xff] %vm527, %v1266
      %1285 = vst.msk [vmem:[#allocation2 + $0x68] sm:$0xff] %vm527, %v1268
      %1286 = vst.msk [vmem:[#allocation2 + $0x78] sm:$0xff] %vm527, %v1270
      %v1287 = vld [vmem:[%s359 + $0x2] sm:$0xff]
      %v1288 = vld [vmem:[%s359 + $0x12] sm:$0xff]
      %v1289 = vld [vmem:[%s359 + $0x22] sm:$0xff]
      %v1290 = vld [vmem:[%s359 + $0x32] sm:$0xff]
      %v1291 = vld [vmem:[%s359 + $0x42] sm:$0xff]
      %v1292 = vld [vmem:[%s359 + $0x52] sm:$0xff]
      %v1293 = vld [vmem:[%s359 + $0x62] sm:$0xff]
      %v1294 = vld [vmem:[%s359 + $0x72] sm:$0xff]
      %1303 = vrot.lane.b32.xlu0 %v1287, 32
      %v1304 = vpop.permute.xlu0 %1303
      %1305 = vrot.lane.b32.xlu0 %v1288, 32
      %v1306 = vpop.permute.xlu0 %1305
      %1307 = vrot.lane.b32.xlu0 %v1289, 32
      %v1308 = vpop.permute.xlu0 %1307
      %1309 = vrot.lane.b32.xlu0 %v1290, 32
      %v1310 = vpop.permute.xlu0 %1309
      %1311 = vrot.lane.b32.xlu0 %v1291, 32
      %v1312 = vpop.permute.xlu0 %1311
      %1313 = vrot.lane.b32.xlu0 %v1292, 32
      %v1314 = vpop.permute.xlu0 %1313
      %1315 = vrot.lane.b32.xlu0 %v1293, 32
      %v1316 = vpop.permute.xlu0 %1315
      %1317 = vrot.lane.b32.xlu0 %v1294, 32
      %v1318 = vpop.permute.xlu0 %1317
      %1327 = vst.msk [vmem:[#allocation2 + $0x8] sm:$0xff] %vm576, %v1304
      %1328 = vst.msk [vmem:[#allocation2 + $0x18] sm:$0xff] %vm576, %v1306
      %1329 = vst.msk [vmem:[#allocation2 + $0x28] sm:$0xff] %vm576, %v1308
      %1330 = vst.msk [vmem:[#allocation2 + $0x38] sm:$0xff] %vm576, %v1310
      %1331 = vst.msk [vmem:[#allocation2 + $0x48] sm:$0xff] %vm576, %v1312
      %1332 = vst.msk [vmem:[#allocation2 + $0x58] sm:$0xff] %vm576, %v1314
      %1333 = vst.msk [vmem:[#allocation2 + $0x68] sm:$0xff] %vm576, %v1316
      %1334 = vst.msk [vmem:[#allocation2 + $0x78] sm:$0xff] %vm576, %v1318
      %s1335 = scalar_lea.vmem %s359, 16
      %v1336 = vld [vmem:[%s1335] sm:$0xff]
      %v1337 = vld [vmem:[%s1335 + $0x10] sm:$0xff]
      %v1338 = vld [vmem:[%s1335 + $0x20] sm:$0xff]
      %v1339 = vld [vmem:[%s1335 + $0x30] sm:$0xff]
      %v1340 = vld [vmem:[%s1335 + $0x40] sm:$0xff]
      %v1341 = vld [vmem:[%s1335 + $0x50] sm:$0xff]
      %v1342 = vld [vmem:[%s1335 + $0x60] sm:$0xff]
      %v1343 = vld [vmem:[%s1335 + $0x70] sm:$0xff]
      %1352 = vrot.lane.b32.xlu0 %v1336, 40
      %v1353 = vpop.permute.xlu0 %1352
      %1354 = vrot.lane.b32.xlu0 %v1337, 40
      %v1355 = vpop.permute.xlu0 %1354
      %1356 = vrot.lane.b32.xlu0 %v1338, 40
      %v1357 = vpop.permute.xlu0 %1356
      %1358 = vrot.lane.b32.xlu0 %v1339, 40
      %v1359 = vpop.permute.xlu0 %1358
      %1360 = vrot.lane.b32.xlu0 %v1340, 40
      %v1361 = vpop.permute.xlu0 %1360
      %1362 = vrot.lane.b32.xlu0 %v1341, 40
      %v1363 = vpop.permute.xlu0 %1362
      %1364 = vrot.lane.b32.xlu0 %v1342, 40
      %v1365 = vpop.permute.xlu0 %1364
      %1366 = vrot.lane.b32.xlu0 %v1343, 40
      %v1367 = vpop.permute.xlu0 %1366
      %1376 = vst.msk [vmem:[#allocation2 + $0x8] sm:$0xff] %vm625, %v1353
      %1377 = vst.msk [vmem:[#allocation2 + $0x18] sm:$0xff] %vm625, %v1355
      %1378 = vst.msk [vmem:[#allocation2 + $0x28] sm:$0xff] %vm625, %v1357
      %1379 = vst.msk [vmem:[#allocation2 + $0x38] sm:$0xff] %vm625, %v1359
      %1380 = vst.msk [vmem:[#allocation2 + $0x48] sm:$0xff] %vm625, %v1361
      %1381 = vst.msk [vmem:[#allocation2 + $0x58] sm:$0xff] %vm625, %v1363
      %1382 = vst.msk [vmem:[#allocation2 + $0x68] sm:$0xff] %vm625, %v1365
      %1383 = vst.msk [vmem:[#allocation2 + $0x78] sm:$0xff] %vm625, %v1367
      %v1384 = vld [vmem:[%s1335 + $0x1] sm:$0xff]
      %v1385 = vld [vmem:[%s1335 + $0x11] sm:$0xff]
      %v1386 = vld [vmem:[%s1335 + $0x21] sm:$0xff]
      %v1387 = vld [vmem:[%s1335 + $0x31] sm:$0xff]
      %v1388 = vld [vmem:[%s1335 + $0x41] sm:$0xff]
      %v1389 = vld [vmem:[%s1335 + $0x51] sm:$0xff]
      %v1390 = vld [vmem:[%s1335 + $0x61] sm:$0xff]
      %v1391 = vld [vmem:[%s1335 + $0x71] sm:$0xff]
      %1400 = vrot.lane.b32.xlu0 %v1384, 48
      %v1401 = vpop.permute.xlu0 %1400
      %1402 = vrot.lane.b32.xlu0 %v1385, 48
      %v1403 = vpop.permute.xlu0 %1402
      %1404 = vrot.lane.b32.xlu0 %v1386, 48
      %v1405 = vpop.permute.xlu0 %1404
      %1406 = vrot.lane.b32.xlu0 %v1387, 48
      %v1407 = vpop.permute.xlu0 %1406
      %1408 = vrot.lane.b32.xlu0 %v1388, 48
      %v1409 = vpop.permute.xlu0 %1408
      %1410 = vrot.lane.b32.xlu0 %v1389, 48
      %v1411 = vpop.permute.xlu0 %1410
      %1412 = vrot.lane.b32.xlu0 %v1390, 48
      %v1413 = vpop.permute.xlu0 %1412
      %1414 = vrot.lane.b32.xlu0 %v1391, 48
      %v1415 = vpop.permute.xlu0 %1414
      %1424 = vst.msk [vmem:[#allocation2 + $0x8] sm:$0xff] %vm675, %v1401
      %1425 = vst.msk [vmem:[#allocation2 + $0x18] sm:$0xff] %vm675, %v1403
      %1426 = vst.msk [vmem:[#allocation2 + $0x28] sm:$0xff] %vm675, %v1405
      %1427 = vst.msk [vmem:[#allocation2 + $0x38] sm:$0xff] %vm675, %v1407
      %1428 = vst.msk [vmem:[#allocation2 + $0x48] sm:$0xff] %vm675, %v1409
      %1429 = vst.msk [vmem:[#allocation2 + $0x58] sm:$0xff] %vm675, %v1411
      %1430 = vst.msk [vmem:[#allocation2 + $0x68] sm:$0xff] %vm675, %v1413
      %1431 = vst.msk [vmem:[#allocation2 + $0x78] sm:$0xff] %vm675, %v1415
      %v1432 = vld [vmem:[%s1335 + $0x2] sm:$0xff]
      %v1433 = vld [vmem:[%s1335 + $0x12] sm:$0xff]
      %v1434 = vld [vmem:[%s1335 + $0x22] sm:$0xff]
      %v1435 = vld [vmem:[%s1335 + $0x32] sm:$0xff]
      %v1436 = vld [vmem:[%s1335 + $0x42] sm:$0xff]
      %v1437 = vld [vmem:[%s1335 + $0x52] sm:$0xff]
      %v1438 = vld [vmem:[%s1335 + $0x62] sm:$0xff]
      %v1439 = vld [vmem:[%s1335 + $0x72] sm:$0xff]
      %1448 = vrot.lane.b32.xlu0 %v1432, 56
      %v1449 = vpop.permute.xlu0 %1448
      %1450 = vrot.lane.b32.xlu0 %v1433, 56
      %v1451 = vpop.permute.xlu0 %1450
      %1452 = vrot.lane.b32.xlu0 %v1434, 56
      %v1453 = vpop.permute.xlu0 %1452
      %1454 = vrot.lane.b32.xlu0 %v1435, 56
      %v1455 = vpop.permute.xlu0 %1454
      %1456 = vrot.lane.b32.xlu0 %v1436, 56
      %v1457 = vpop.permute.xlu0 %1456
      %1458 = vrot.lane.b32.xlu0 %v1437, 56
      %v1459 = vpop.permute.xlu0 %1458
      %1460 = vrot.lane.b32.xlu0 %v1438, 56
      %v1461 = vpop.permute.xlu0 %1460
      %1462 = vrot.lane.b32.xlu0 %v1439, 56
      %v1463 = vpop.permute.xlu0 %1462
      %1472 = vst.msk [vmem:[#allocation2 + $0x8] sm:$0xff] %vm724, %v1449
      %1473 = vst.msk [vmem:[#allocation2 + $0x18] sm:$0xff] %vm724, %v1451
      %1474 = vst.msk [vmem:[#allocation2 + $0x28] sm:$0xff] %vm724, %v1453
      %1475 = vst.msk [vmem:[#allocation2 + $0x38] sm:$0xff] %vm724, %v1455
      %1476 = vst.msk [vmem:[#allocation2 + $0x48] sm:$0xff] %vm724, %v1457
      %1477 = vst.msk [vmem:[#allocation2 + $0x58] sm:$0xff] %vm724, %v1459
      %1478 = vst.msk [vmem:[#allocation2 + $0x68] sm:$0xff] %vm724, %v1461
      %1479 = vst.msk [vmem:[#allocation2 + $0x78] sm:$0xff] %vm724, %v1463
      %s1480 = scalar_lea.vmem %s359, 32
      %v1481 = vld [vmem:[%s1480] sm:$0xff]
      %v1482 = vld [vmem:[%s1480 + $0x10] sm:$0xff]
      %v1483 = vld [vmem:[%s1480 + $0x20] sm:$0xff]
      %v1484 = vld [vmem:[%s1480 + $0x30] sm:$0xff]
      %v1485 = vld [vmem:[%s1480 + $0x40] sm:$0xff]
      %v1486 = vld [vmem:[%s1480 + $0x50] sm:$0xff]
      %v1487 = vld [vmem:[%s1480 + $0x60] sm:$0xff]
      %v1488 = vld [vmem:[%s1480 + $0x70] sm:$0xff]
      %1497 = vrot.lane.b32.xlu0 %v1481, 64
      %v1498 = vpop.permute.xlu0 %1497
      %1499 = vrot.lane.b32.xlu0 %v1482, 64
      %v1500 = vpop.permute.xlu0 %1499
      %1501 = vrot.lane.b32.xlu0 %v1483, 64
      %v1502 = vpop.permute.xlu0 %1501
      %1503 = vrot.lane.b32.xlu0 %v1484, 64
      %v1504 = vpop.permute.xlu0 %1503
      %1505 = vrot.lane.b32.xlu0 %v1485, 64
      %v1506 = vpop.permute.xlu0 %1505
      %1507 = vrot.lane.b32.xlu0 %v1486, 64
      %v1508 = vpop.permute.xlu0 %1507
      %1509 = vrot.lane.b32.xlu0 %v1487, 64
      %v1510 = vpop.permute.xlu0 %1509
      %1511 = vrot.lane.b32.xlu0 %v1488, 64
      %v1512 = vpop.permute.xlu0 %1511
      %1521 = vst.msk [vmem:[#allocation2 + $0x8] sm:$0xff] %vm773, %v1498
      %1522 = vst.msk [vmem:[#allocation2 + $0x18] sm:$0xff] %vm773, %v1500
      %1523 = vst.msk [vmem:[#allocation2 + $0x28] sm:$0xff] %vm773, %v1502
      %1524 = vst.msk [vmem:[#allocation2 + $0x38] sm:$0xff] %vm773, %v1504
      %1525 = vst.msk [vmem:[#allocation2 + $0x48] sm:$0xff] %vm773, %v1506
      %1526 = vst.msk [vmem:[#allocation2 + $0x58] sm:$0xff] %vm773, %v1508
      %1527 = vst.msk [vmem:[#allocation2 + $0x68] sm:$0xff] %vm773, %v1510
      %1528 = vst.msk [vmem:[#allocation2 + $0x78] sm:$0xff] %vm773, %v1512
      %v1529 = vld [vmem:[%s1480 + $0x1] sm:$0xff]
      %v1530 = vld [vmem:[%s1480 + $0x11] sm:$0xff]
      %v1531 = vld [vmem:[%s1480 + $0x21] sm:$0xff]
      %v1532 = vld [vmem:[%s1480 + $0x31] sm:$0xff]
      %v1533 = vld [vmem:[%s1480 + $0x41] sm:$0xff]
      %v1534 = vld [vmem:[%s1480 + $0x51] sm:$0xff]
      %v1535 = vld [vmem:[%s1480 + $0x61] sm:$0xff]
      %v1536 = vld [vmem:[%s1480 + $0x71] sm:$0xff]
      %1545 = vrot.lane.b32.xlu0 %v1529, 72
      %v1546 = vpop.permute.xlu0 %1545
      %1547 = vrot.lane.b32.xlu0 %v1530, 72
      %v1548 = vpop.permute.xlu0 %1547
      %1549 = vrot.lane.b32.xlu0 %v1531, 72
      %v1550 = vpop.permute.xlu0 %1549
      %1551 = vrot.lane.b32.xlu0 %v1532, 72
      %v1552 = vpop.permute.xlu0 %1551
      %1553 = vrot.lane.b32.xlu0 %v1533, 72
      %v1554 = vpop.permute.xlu0 %1553
      %1555 = vrot.lane.b32.xlu0 %v1534, 72
      %v1556 = vpop.permute.xlu0 %1555
      %1557 = vrot.lane.b32.xlu0 %v1535, 72
      %v1558 = vpop.permute.xlu0 %1557
      %1559 = vrot.lane.b32.xlu0 %v1536, 72
      %v1560 = vpop.permute.xlu0 %1559
      %1569 = vst.msk [vmem:[#allocation2 + $0x8] sm:$0xff] %vm822, %v1546
      %1570 = vst.msk [vmem:[#allocation2 + $0x18] sm:$0xff] %vm822, %v1548
      %1571 = vst.msk [vmem:[#allocation2 + $0x28] sm:$0xff] %vm822, %v1550
      %1572 = vst.msk [vmem:[#allocation2 + $0x38] sm:$0xff] %vm822, %v1552
      %1573 = vst.msk [vmem:[#allocation2 + $0x48] sm:$0xff] %vm822, %v1554
      %1574 = vst.msk [vmem:[#allocation2 + $0x58] sm:$0xff] %vm822, %v1556
      %1575 = vst.msk [vmem:[#allocation2 + $0x68] sm:$0xff] %vm822, %v1558
      %1576 = vst.msk [vmem:[#allocation2 + $0x78] sm:$0xff] %vm822, %v1560
      %v1577 = vld [vmem:[%s1480 + $0x2] sm:$0xff]
      %v1578 = vld [vmem:[%s1480 + $0x12] sm:$0xff]
      %v1579 = vld [vmem:[%s1480 + $0x22] sm:$0xff]
      %v1580 = vld [vmem:[%s1480 + $0x32] sm:$0xff]
      %v1581 = vld [vmem:[%s1480 + $0x42] sm:$0xff]
      %v1582 = vld [vmem:[%s1480 + $0x52] sm:$0xff]
      %v1583 = vld [vmem:[%s1480 + $0x62] sm:$0xff]
      %v1584 = vld [vmem:[%s1480 + $0x72] sm:$0xff]
      %1593 = vrot.lane.b32.xlu0 %v1577, 80
      %v1594 = vpop.permute.xlu0 %1593
      %1595 = vrot.lane.b32.xlu0 %v1578, 80
      %v1596 = vpop.permute.xlu0 %1595
      %1597 = vrot.lane.b32.xlu0 %v1579, 80
      %v1598 = vpop.permute.xlu0 %1597
      %1599 = vrot.lane.b32.xlu0 %v1580, 80
      %v1600 = vpop.permute.xlu0 %1599
      %1601 = vrot.lane.b32.xlu0 %v1581, 80
      %v1602 = vpop.permute.xlu0 %1601
      %1603 = vrot.lane.b32.xlu0 %v1582, 80
      %v1604 = vpop.permute.xlu0 %1603
      %1605 = vrot.lane.b32.xlu0 %v1583, 80
      %v1606 = vpop.permute.xlu0 %1605
      %1607 = vrot.lane.b32.xlu0 %v1584, 80
      %v1608 = vpop.permute.xlu0 %1607
      %1617 = vst.msk [vmem:[#allocation2 + $0x8] sm:$0xff] %vm871, %v1594
      %1618 = vst.msk [vmem:[#allocation2 + $0x18] sm:$0xff] %vm871, %v1596
      %1619 = vst.msk [vmem:[#allocation2 + $0x28] sm:$0xff] %vm871, %v1598
      %1620 = vst.msk [vmem:[#allocation2 + $0x38] sm:$0xff] %vm871, %v1600
      %1621 = vst.msk [vmem:[#allocation2 + $0x48] sm:$0xff] %vm871, %v1602
      %1622 = vst.msk [vmem:[#allocation2 + $0x58] sm:$0xff] %vm871, %v1604
      %1623 = vst.msk [vmem:[#allocation2 + $0x68] sm:$0xff] %vm871, %v1606
      %1624 = vst.msk [vmem:[#allocation2 + $0x78] sm:$0xff] %vm871, %v1608
      %v1625 = vld [vmem:[#allocation2] sm:$0xff]
      %v1626 = vld [vmem:[#allocation2 + $0x8] sm:$0xff]
      %v1627 = vld [vmem:[#allocation2 + $0x10] sm:$0xff]
      %v1628 = vld [vmem:[#allocation2 + $0x18] sm:$0xff]
      %v1629 = vld [vmem:[#allocation2 + $0x20] sm:$0xff]
      %v1630 = vld [vmem:[#allocation2 + $0x28] sm:$0xff]
      %v1631 = vld [vmem:[#allocation2 + $0x30] sm:$0xff]
      %v1632 = vld [vmem:[#allocation2 + $0x38] sm:$0xff]
      %v1633 = vld [vmem:[#allocation2 + $0x40] sm:$0xff]
      %v1634 = vld [vmem:[#allocation2 + $0x48] sm:$0xff]
      %v1635 = vld [vmem:[#allocation2 + $0x50] sm:$0xff]
      %v1636 = vld [vmem:[#allocation2 + $0x58] sm:$0xff]
      %v1637 = vld [vmem:[#allocation2 + $0x60] sm:$0xff]
      %v1638 = vld [vmem:[#allocation2 + $0x68] sm:$0xff]
      %v1639 = vld [vmem:[#allocation2 + $0x70] sm:$0xff]
      %v1640 = vld [vmem:[#allocation2 + $0x78] sm:$0xff]
      %v1641 = vpack.c.bf16 %v1627, %v1625
      %v1642 = vpack.c.bf16 %v1628, %v1626
      %v1643 = vpack.c.bf16 %v1631, %v1629
      %v1644 = vpack.c.bf16 %v1632, %v1630
      %v1645 = vpack.c.bf16 %v1635, %v1633
      %v1646 = vpack.c.bf16 %v1636, %v1634
      %v1647 = vpack.c.bf16 %v1639, %v1637
      %v1648 = vpack.c.bf16 %v1640, %v1638
      %v1649 = vld [vmem:[%s3] sm:$0xf]
      %v1650 = vld [vmem:[%s3 + $0x4] sm:$0xf]
      %v1651 = vld [vmem:[%s3 + $0x8] sm:$0xf]
      %v1652 = vld [vmem:[%s3 + $0xc] sm:$0xf]
      %v1653 = vld [vmem:[%s3 + $0x10] sm:$0xf]
      %v1654 = vld [vmem:[%s3 + $0x14] sm:$0xf]
      %v1655 = vld [vmem:[%s3 + $0x18] sm:$0xf]
      %v1656 = vld [vmem:[%s3 + $0x1c] sm:$0xf]
      %v1657 = vld [vmem:[%s3 + $0x20] sm:$0xf]
      %v1658 = vld [vmem:[%s3 + $0x24] sm:$0xf]
      %v1659 = vld [vmem:[%s3 + $0x28] sm:$0xf]
      %v1660 = vld [vmem:[%s3 + $0x2c] sm:$0xf]
      %v1661 = vld [vmem:[%s3 + $0x30] sm:$0xf]
      %v1662 = vld [vmem:[%s3 + $0x34] sm:$0xf]
      %v1663 = vld [vmem:[%s3 + $0x38] sm:$0xf]
      %v1664 = vld [vmem:[%s3 + $0x3c] sm:$0xf]
      %v1665 = vld [vmem:[%s3 + $0x40] sm:$0xf]
      %v1666 = vld [vmem:[%s3 + $0x44] sm:$0xf]
      %v1667 = vld [vmem:[%s3 + $0x48] sm:$0xf]
      %v1668 = vld [vmem:[%s3 + $0x4c] sm:$0xf]
      %v1669 = vld [vmem:[%s3 + $0x50] sm:$0xf]
      %v1670 = vld [vmem:[%s3 + $0x54] sm:$0xf]
      %v1671 = vld [vmem:[%s3 + $0x58] sm:$0xf]
      %v1672 = vld [vmem:[%s3 + $0x5c] sm:$0xf]
      %v1673 = vld [vmem:[%s3 + $0x60] sm:$0xf]
      %v1674 = vld [vmem:[%s3 + $0x64] sm:$0xf]
      %v1675 = vld [vmem:[%s3 + $0x68] sm:$0xf]
      %v1703 = vunpack.c.l.b16 %v1649
      %v1704 = vunpack.c.l.b16 %v1650
      %v1705 = vunpack.c.l.b16 %v1651
      %v1706 = vunpack.c.l.b16 %v1652
      %v1707 = vunpack.c.l.b16 %v1653
      %v1708 = vunpack.c.l.b16 %v1654
      %v1709 = vunpack.c.l.b16 %v1655
      %v1710 = vunpack.c.l.b16 %v1656
      %v1711 = vunpack.c.l.b16 %v1657
      %v1712 = vunpack.c.l.b16 %v1658
      %v1713 = vunpack.c.l.b16 %v1659
      %v1714 = vunpack.c.l.b16 %v1660
      %v1715 = vunpack.c.l.b16 %v1661
      %v1716 = vunpack.c.l.b16 %v1662
      %v1717 = vunpack.c.l.b16 %v1663
      %v1718 = vunpack.c.l.b16 %v1664
      %v1719 = vunpack.c.l.b16 %v1665
      %v1720 = vunpack.c.l.b16 %v1666
      %v1721 = vunpack.c.l.b16 %v1667
      %v1722 = vunpack.c.l.b16 %v1668
      %v1723 = vunpack.c.l.b16 %v1669
      %v1724 = vunpack.c.l.b16 %v1670
      %v1725 = vunpack.c.l.b16 %v1671
      %v1726 = vunpack.c.l.b16 %v1672
      %v1727 = vunpack.c.l.b16 %v1673
      %v1728 = vunpack.c.l.b16 %v1674
      %v1729 = vunpack.c.l.b16 %v1675
      %v1730 = vpack.c.b16 %v1704, %v1703
      %v1731 = vpack.c.b16 %v1706, %v1705
      %v1732 = vpack.c.b16 %v1708, %v1707
      %v1733 = vpack.c.b16 %v1710, %v1709
      %v1734 = vpack.c.b16 %v1712, %v1711
      %v1735 = vpack.c.b16 %v1714, %v1713
      %v1736 = vpack.c.b16 %v1716, %v1715
      %v1737 = vpack.c.b16 %v1718, %v1717
      %v1738 = vpack.c.b16 %v1720, %v1719
      %v1739 = vpack.c.b16 %v1722, %v1721
      %v1740 = vpack.c.b16 %v1724, %v1723
      %v1741 = vpack.c.b16 %v1726, %v1725
      %v1742 = vpack.c.b16 %v1728, %v1727
      %v1743 = vpack.c.b16 %v1729, %v1729
      %vm1757 = vcmask 719872
      %v1759 = vsel %vm1757, %v1642, 0
      %v1762 = vsel %vm1757, %v1644, 0
      %v1765 = vsel %vm1757, %v1646, 0
      %v1768 = vsel %vm1757, %v1648, 0
      %vm1770 = vcmask 1043456
      %v1772 = vsel %vm1770, %v1743, 0
      %1774 = vmatprep.subr.bf16.mxu0 0
      %1775 = vmatpush1.bf16.msra.mxu0 %v1730
      %1776 = vmatprep.subr.bf16.mxu0 0
      %1777 = vmatpush1.bf16.msra.mxu0 %v1731
      %1778 = vmatprep.subr.bf16.mxu0 0
      %1779 = vmatpush1.bf16.msra.mxu0 %v1732
      %1780 = vmatprep.subr.bf16.mxu0 0
      %1781 = vmatpush1.bf16.msra.mxu0 %v1733
      %1782 = vmatprep.subr.bf16.mxu0 0
      %1783 = vmatpush1.bf16.msra.mxu0 %v1734
      %1784 = vmatprep.subr.bf16.mxu0 0
      %1785 = vmatpush1.bf16.msra.mxu0 %v1735
      %1786 = vmatprep.subr.bf16.mxu0 0
      %1787 = vmatpush1.bf16.msra.mxu0 %v1736
      %1788 = vmatprep.subr.bf16.mxu0 0
      %1789 = vmatpush1.bf16.msra.mxu0 %v1737
      %1790 = vmatprep.subr.bf16.mxu0 0
      %1791 = vmatpush1.bf16.msra.mxu0 %v1738
      %1792 = vmatprep.subr.bf16.mxu0 0
      %1793 = vmatpush1.bf16.msra.mxu0 %v1739
      %1794 = vmatprep.subr.bf16.mxu0 0
      %1795 = vmatpush1.bf16.msra.mxu0 %v1740
      %1796 = vmatprep.subr.bf16.mxu0 0
      %1797 = vmatpush1.bf16.msra.mxu0 %v1741
      %1798 = vmatprep.subr.bf16.mxu0 0
      %1799 = vmatpush1.bf16.msra.mxu0 %v1742
      %1800 = vmatprep.subr.bf16.mxu0 0
      %1801 = vmatpush1.bf16.msra.mxu0 %v1772
      %1802 = vmatprep.subr.bf16.mxu0 0
      %1803 = vmatpush1.bf16.msra.mxu0 0
      %1804 = vmatprep.subr.bf16.mxu0 0
      %1805 = vmatpush1.bf16.msra.mxu0 0
      %1806 = vmatprep.mubr.bf16.mxu0 %v1759
      %1807 = vmatmul.mubr.bf16.gmra.mrb[0].mxu0 %v1641
      %v1808 = vpop.f32.mrb[0].mxu0
      %v1809 = vadd.f32 0.0, %v1808
      %v1810 = vpop.f32.mrb[0].mxu0
      %v1811 = vpop.f32.mrb[0].mxu0
      %v1812 = vadd.f32 0.0, %v1811
      %v1813 = vpop.f32.mrb[0].mxu0
      %1814 = vmatprep.mubr.bf16.mxu0 %v1762
      %1815 = vmatmul.mubr.bf16.gmra.mrb[0].mxu0 %v1643
      %v1816 = vpop.f32.mrb[0].mxu0
      %v1817 = vadd.f32 0.0, %v1816
      %v1818 = vpop.f32.mrb[0].mxu0
      %v1819 = vpop.f32.mrb[0].mxu0
      %v1820 = vadd.f32 0.0, %v1819
      %v1821 = vpop.f32.mrb[0].mxu0
      %1822 = vmatprep.mubr.bf16.mxu0 %v1765
      %1823 = vmatmul.mubr.bf16.gmra.mrb[0].mxu0 %v1645
      %v1824 = vpop.f32.mrb[0].mxu0
      %v1825 = vadd.f32 0.0, %v1824
      %v1826 = vpop.f32.mrb[0].mxu0
      %v1827 = vpop.f32.mrb[0].mxu0
      %v1828 = vadd.f32 0.0, %v1827
      %v1829 = vpop.f32.mrb[0].mxu0
      %1830 = vmatprep.mubr.bf16.mxu0 %v1768
      %1831 = vmatmul.mubr.bf16.gmra.mrb[0].mxu0 %v1647
      %v1832 = vpop.f32.mrb[0].mxu0
      %v1833 = vadd.f32 0.0, %v1832
      %v1834 = vpop.f32.mrb[0].mxu0
      %v1835 = vpop.f32.mrb[0].mxu0
      %v1836 = vadd.f32 0.0, %v1835
      %v1837 = vpop.f32.mrb[0].mxu0
      %1838 = vdwg.mxu0
      %v1839 = vld [vmem:[%s4] sm:$0x1]
      %v1841 = vlaneseq
      %v1842 = vshrl.u32 %v1841, 7
      %v1843 = vsub.s32 0, %v1842
      %v1844 = vrot.slane %v1839, %v1843
      %v1846 = vmul.f32 %v1809, %v1844
      %v1847 = vmul.f32 %v1812, %v1844
      %v1848 = vmul.f32 %v1817, %v1844
      %v1849 = vmul.f32 %v1820, %v1844
      %v1850 = vmul.f32 %v1825, %v1844
      %v1851 = vmul.f32 %v1828, %v1844
      %v1852 = vmul.f32 %v1833, %v1844
      %v1853 = vmul.f32 %v1836, %v1844
      %v1854 = vld [vmem:[%s5] sm:$0x1]
      %v1856 = vlaneseq
      %v1857 = vshrl.u32 %v1856, 7
      %v1858 = vsub.s32 0, %v1857
      %v1859 = vrot.slane %v1854, %v1858
      %v1861 = vadd.f32 %v1846, %v1859
      %v1862 = vadd.f32 %v1847, %v1859
      %v1863 = vadd.f32 %v1848, %v1859
      %v1864 = vadd.f32 %v1849, %v1859
      %v1865 = vadd.f32 %v1850, %v1859
      %v1866 = vadd.f32 %v1851, %v1859
      %v1867 = vadd.f32 %v1852, %v1859
      %v1868 = vadd.f32 %v1853, %v1859
      %v1869 = vmax.f32 %v1861, 0.0
      %v1870 = vmax.f32 %v1862, 0.0
      %v1871 = vmax.f32 %v1863, 0.0
      %v1872 = vmax.f32 %v1864, 0.0
      %v1873 = vmax.f32 %v1865, 0.0
      %v1874 = vmax.f32 %v1866, 0.0
      %v1875 = vmax.f32 %v1867, 0.0
      %v1876 = vmax.f32 %v1868, 0.0
      %vm1877 = vcmask 130048
      %1878 = vst.msk [vmem:[%s369] sm:$0xff] %vm1877, %v1869
      %1879 = vst.msk [vmem:[%s369 + $0x8] sm:$0xff] %vm1877, %v1870
      %1880 = vst.msk [vmem:[%s369 + $0x10] sm:$0xff] %vm1877, %v1871
      %1881 = vst.msk [vmem:[%s369 + $0x18] sm:$0xff] %vm1877, %v1872
      %1882 = vst.msk [vmem:[%s369 + $0x20] sm:$0xff] %vm1877, %v1873
      %1883 = vst.msk [vmem:[%s369 + $0x28] sm:$0xff] %vm1877, %v1874
      %1884 = vst.msk [vmem:[%s369 + $0x30] sm:$0xff] %vm1877, %v1875
      %1885 = vst.msk [vmem:[%s369 + $0x38] sm:$0xff] %vm1877, %v1876
      %p1886 = scmp.lt.s32.totalorder %s21, 1
      %s1887 = scalar_select %p1886, %s21, 1
      %p1888 = scmp.lt.s32.totalorder %s22, 3
      %s1889 = scalar_select %p1888, %s22, 3
      %s1890 = smul.addr %s1889, 8
      %s1891 = smul.addr %s1887, 32
      %s1892 = sadd.s32 %s1890, %s1891
      %s1893 = smul.addr %s1892, 8
      %s1894 = scalar_lea.vmem %s6, %s1893
      // Predicated region
      $region45: #{mf_unit_pallas.4} parent=43 // pred_check
        %p1895 = pneg %p200
      $region46: #{mf_unit_pallas.4} parent=43 // pred_check_branch
        %1897 = sbr.rel (%p1895) target = $region48
      $region47: #{mf_unit_pallas.4} parent=43 // pred_region
        _
      $region48: #{mf_unit_pallas.4} parent=43 // pred_fallthru
        _
    $region44: #{mf_unit_pallas.4} parent=5 // pred_fallthru
      _
    %p1898 = scmp.le.s32.totalorder 2, %s12
    // Predicated region
    $region49: #{mf_unit_pallas.4} parent=5 // pred_check
      %p1899 = pneg %p1898
    $region50: #{mf_unit_pallas.4} parent=5 // pred_check_branch
      %1901 = sbr.rel (%p1899) target = $region52
    $region51: #{mf_unit_pallas.4} parent=5 // pred_region
      %s1902 = ssub.s32 %s12, 2
      // Predicated region
      $region53: #{mf_unit_pallas.4} parent=51 // pred_check
        %p1903 = pneg %p206
      $region54: #{mf_unit_pallas.4} parent=51 // pred_check_branch
        %1905 = sbr.rel (%p1903) target = $region56
      $region55: #{mf_unit_pallas.4} parent=51 // pred_region
        %p1906 = scmp.lt.s32.totalorder %s23, 1
        %s1907 = scalar_select %p1906, %s23, 1
        %p1908 = scmp.lt.s32.totalorder %s24, 3
        %s1909 = scalar_select %p1908, %s24, 3
        %s1910 = smul.addr %s1909, 8
        %s1911 = smul.addr %s1907, 32
        %s1912 = sadd.s32 %s1910, %s1911
        %s1913 = smul.addr %s1912, 8
        %s1914 = scalar_lea.vmem %s6, %s1913
      $region56: #{mf_unit_pallas.4} parent=51 // pred_fallthru
        _
    $region52: #{mf_unit_pallas.4} parent=5 // pred_fallthru
      _
  $region6: #{mf_unit_pallas.4} parent=0 // loop_footer
    %s16 = sadd.s32 1, %s12
  $region7: #{mf_unit_pallas.4} parent=0 // loop_footer_branch
    %11 = sbr.rel target = $region3
  $region8: #{mf_unit_pallas.4} parent=0 // loop_exit
    _

</llo_original>
